<compile_context>
chip_gen: v7x
topology: tpu7x:2x2x1
jax: 0.10.0
libtpu: 0.0.40
codegen_flags: <defaults>
</compile_context>

<pallas_src>
import functools
import math

import jax
import jax.numpy as jnp
from jax.experimental import pallas as pl
from jax.experimental.pallas import tpu as pltpu


def _encoder_kernel(chunk_ref, halo_ref, dft_ref, wglu_ref, cwf_ref, mw_ref,
                    vec_ref, out_ref, *, n_frames, tile_frames, lookahead,
                    mlp_depth, hidden, n_freq_pad):
    f32 = jnp.float32
    bf16 = jnp.bfloat16
    TF = tile_frames
    H = hidden

    # --- in-kernel framing: hop-sized chunks -> 50%-overlap frames --------------
    # chunk c = x_pad[c*hop:(c+1)*hop]; frame t = [chunk_t ; chunk_{t+1}].
    c_cur = jnp.concatenate([chunk_ref[0], halo_ref[0]], axis=1)      # (hop, W) f32
    W = c_cur.shape[1]                                                # TF + 128
    # pltpu.roll == jnp.roll; shift = W-1 == -1 (mod W), i.e. c_nxt[:,t] = c_cur[:,t+1].
    # The wrapped column only pollutes the topmost halo frame, never a kept frame
    # (kept frames need lookahead context <= TF-1+lookahead << W-1).
    c_nxt = pltpu.roll(c_cur, shift=W - 1, axis=1)
    frames = jnp.concatenate([c_cur, c_nxt], axis=0)                  # (n_fft, W) f32

    # --- power spectrogram: ONE stacked [cos; sin] windowed-DFT matmul (f32) ----
    y = jnp.dot(dft_ref[...], frames, preferred_element_type=f32)     # (2*nfp, W)
    power = y[:n_freq_pad] * y[:n_freq_pad] + y[n_freq_pad:] * y[n_freq_pad:]
    # spec = self.spec(x) + 1e-6 ; 10*log10(spec + 1e-8) ; norm = Identity
    logspec = (10.0 / math.log(10.0)) * jnp.log(power + 1e-6 + 1e-8)

    # --- GLU head: fused 1x1 Conv1d(n_freq_pad -> 2H) + GLU ---------------------
    ag = jnp.dot(wglu_ref[...], logspec.astype(bf16), preferred_element_type=f32)
    val = ag[:H] + vec_ref[0]
    gate = ag[H:] + vec_ref[1]
    h = val * jax.nn.sigmoid(gate)                                    # (H, W) f32

    # Frame-validity mask (global frame index < n_frames), re-applied before every
    # conv layer: frames past the sequence end read as zero, exactly like the fresh
    # zero future frame that CausalPadding(1) appends at every layer.
    start = pl.program_id(1) * TF
    col = jax.lax.broadcasted_iota(jnp.int32, (1, W), 1)
    valid = ((col + start) < n_frames).astype(f32)

    # --- lookahead conv stack: k=2 conv + folded BatchNorm as ONE (H,2H) matmul --
    for i in range(lookahead):
        h_m = h * valid
        h_nxt = pltpu.roll(h_m, shift=W - 1, axis=1)                  # h_nxt[t] = h_m[t+1]
        hcat = jnp.concatenate([h_m, h_nxt], axis=0).astype(bf16)     # (2H, W)
        z = jnp.dot(cwf_ref[i], hcat, preferred_element_type=f32) + vec_ref[2 + i]
        h = jnp.maximum(z, 0.0)                                       # ReLU

    # --- MLP on the kept (lane-aligned) frames: Linear -> LayerNorm -> ReLU ------
    h = h[:, :TF]
    off_mb = 2 + lookahead
    off_lg = off_mb + mlp_depth
    off_lb = off_lg + mlp_depth
    inv_h = 1.0 / H
    for d in range(mlp_depth):
        z = (jnp.dot(mw_ref[d], h.astype(bf16), preferred_element_type=f32)
             + vec_ref[off_mb + d])
        mu = jnp.sum(z, axis=0, keepdims=True) * inv_h                # one-pass LN:
        ms = jnp.sum(z * z, axis=0, keepdims=True) * inv_h            # var = E[z^2]-mu^2
        z = (z - mu) * jax.lax.rsqrt(ms - mu * mu + 1e-5)
        z = z * vec_ref[off_lg + d] + vec_ref[off_lb + d]
        h = jnp.maximum(z, 0.0)

    out_ref[0, 0] = h                                                 # (H, TF) wide vst


def _dft_matrix(n_fft, n_freq, n_freq_pad):
    """Stacked, window-folded one-sided [cos; sin] DFT matrix, (2*n_freq_pad, n_fft) f32."""
    n = jnp.arange(n_fft, dtype=jnp.float32)
    k = jnp.arange(n_freq, dtype=jnp.float32)
    win = 0.5 - 0.5 * jnp.cos(2.0 * jnp.pi * n / n_fft)    # periodic hann (torch.hann_window)
    ang = 2.0 * jnp.pi * k[:, None] * n[None, :] / n_fft
    cosm = win[None, :] * jnp.cos(ang)
    sinm = win[None, :] * jnp.sin(ang)
    pad = ((0, n_freq_pad - n_freq), (0, 0))
    return jnp.concatenate([jnp.pad(cosm, pad), jnp.pad(sinm, pad)], axis=0)


def init_params(key, n_freq, hidden, lookahead, depth):
    ks = jax.random.split(key, 11)
    f32 = jnp.float32

    def nrm(k, shape, scale):
        return scale * jax.random.normal(k, shape, f32)

    H = hidden
    p = {}
    # GLU 1x1 conv (n_freq -> 2H): rows [0:H] value branch, rows [H:2H] gate branch
    p["w_glu"] = nrm(ks[0], (2 * H, n_freq), 1.0 / math.sqrt(n_freq))
    p["b_glu"] = nrm(ks[1], (2 * H, 1), 0.01)
    # causal conv stack: kernel-size-2 conv split into two (out,in) taps per layer
    p["cw0"] = nrm(ks[2], (lookahead, H, H), 1.0 / math.sqrt(2 * H))
    p["cw1"] = nrm(ks[3], (lookahead, H, H), 1.0 / math.sqrt(2 * H))
    p["cb"] = nrm(ks[4], (lookahead, H, 1), 0.01)
    # BatchNorm (eval) folded: scale = gamma/sqrt(var+eps), shift = beta - mean*scale
    gamma = 1.0 + 0.1 * jax.random.normal(ks[5], (lookahead, H, 1), f32)
    beta = 0.01 * jax.random.normal(ks[6], (lookahead, H, 1), f32)
    rmean = 0.1 * jax.random.normal(ks[7], (lookahead, H, 1), f32)
    rvar = 1.0 + 0.1 * jnp.abs(jax.random.normal(ks[8], (lookahead, H, 1), f32))
    scale = gamma / jnp.sqrt(rvar + 1e-5)
    shift = beta - rmean * scale
    scale = scale.at[-1].set(1.0)   # last conv layer uses Identity instead of BatchNorm
    shift = shift.at[-1].set(0.0)
    p["bn_s"] = scale
    p["bn_b"] = shift
    # MLP
    p["mw"] = nrm(ks[9], (depth, H, H), 1.0 / math.sqrt(H))
    p["mb"] = nrm(ks[10], (depth, H, 1), 0.01)
    p["ln_g"] = jnp.ones((depth, H, 1), f32)
    p["ln_b"] = jnp.zeros((depth, H, 1), f32)
    return p


def _prepare_weights(params, n_freq, n_freq_pad, hidden):
    bf16 = jnp.bfloat16
    H = hidden
    # zero-pad GLU weight columns matching the zero-padded DFT frequency rows
    wglu = jnp.pad(params["w_glu"], ((0, 0), (0, n_freq_pad - n_freq))).astype(bf16)
    # fold BatchNorm into the k=2 conv taps and fuse the taps into one (H, 2H) weight
    cw = jnp.concatenate([params["cw0"], params["cw1"]], axis=2)          # (L, H, 2H)
    cwf = (params["bn_s"] * cw).astype(bf16)
    cbf = params["bn_s"] * params["cb"] + params["bn_b"]                  # (L, H, 1)
    mw = params["mw"].astype(bf16)
    # pack all small (H,1) vectors into one array -> fewer DMA streams / BlockSpecs
    vec = jnp.concatenate(
        [params["b_glu"].reshape(2, H, 1), cbf, params["mb"],
         params["ln_g"], params["ln_b"]], axis=0).astype(jnp.float32)
    return wglu, cwf, mw, vec


def spectrogram_encoder(x, params, *, win_length=64, hidden_size=32,
                        lookahead=5, mlp_depth=2, tile_frames=512):
    """Pallas SpectrogramEncoder.forward (spec_type='linear', win_type='hann',
    normalize=None, inference-mode BatchNorm). Returns (B, n_frames, hidden_size)."""
    assert x.ndim >= 2
    if x.ndim == 2:
        x = x[:, None, :]
    assert x.shape[-1] >= win_length
    assert tile_frames % 128 == 0, "tile_frames must be lane-aligned (multiple of 128)"
    x = jnp.mean(x.astype(jnp.float32), axis=1)                       # (B, T)

    n_fft = win_length
    hop = win_length // 2                                             # hann -> hop = win//2
    n_freq = win_length // 2 + 1
    n_freq_pad = -(-n_freq // 8) * 8                                  # 33 -> 40 (sublane-aligned)
    H = hidden_size
    B = x.shape[0]

    # torch.stft(center=True) framing: reflect-pad n_fft//2 each side, stride = hop
    pad = n_fft // 2
    xp = jnp.pad(x, ((0, 0), (pad, pad)), mode="reflect")
    Lp = xp.shape[1]
    n_frames = 1 + (Lp - n_fft) // hop

    TF = tile_frames
    NB = -(-n_frames // TF)

    # hop-sized chunk matrix, chunks on lanes; frame t = [chunk_t ; chunk_{t+1}] is
    # rebuilt inside the kernel (no 2x frame duplication, no XLA gather/swapaxes).
    # +128 trailing chunks so every tile's 128-chunk halo BlockSpec view is in-bounds.
    n_chunks = NB * TF + 128
    need = n_chunks * hop
    xp = jnp.pad(xp, ((0, 0), (0, max(0, need - Lp))))[:, :need]
    chunks = jnp.transpose(xp.reshape(B, n_chunks, hop), (0, 2, 1))   # (B, hop, NC) f32

    dft = _dft_matrix(n_fft, n_freq, n_freq_pad)                      # (2*nfp, n_fft) f32
    wglu, cwf, mw, vec = _prepare_weights(params, n_freq, n_freq_pad, H)
    n_vec = 2 + lookahead + 3 * mlp_depth

    kernel = functools.partial(_encoder_kernel, n_frames=n_frames, tile_frames=TF,
                               lookahead=lookahead, mlp_depth=mlp_depth,
                               hidden=H, n_freq_pad=n_freq_pad)

    def bcast(shape):
        zeros = (0,) * len(shape)
        return pl.BlockSpec(shape, lambda b, f, _z=zeros: _z)

    out = pl.pallas_call(
        kernel,
        out_shape=jax.ShapeDtypeStruct((B, NB, H, TF), jnp.float32),
        grid=(B, NB),
        in_specs=[
            # chunk array, two views: the tile's own TF chunks + a 128-chunk halo
            pl.BlockSpec((1, hop, TF), lambda b, f: (b, 0, f)),
            pl.BlockSpec((1, hop, 128), lambda b, f: (b, 0, (f + 1) * (TF // 128))),
            bcast((2 * n_freq_pad, n_fft)),      # stacked [cos; sin] windowed DFT
            bcast((2 * H, n_freq_pad)),          # fused GLU 1x1 conv weight
            bcast((lookahead, H, 2 * H)),        # BN-folded, tap-fused conv weights
            bcast((mlp_depth, H, H)),            # MLP weights
            bcast((n_vec, H, 1)),                # packed per-layer bias/scale vectors
        ],
        out_specs=pl.BlockSpec((1, 1, H, TF), lambda b, f: (b, f, 0, 0)),
        compiler_params=pltpu.CompilerParams(
            dimension_semantics=("parallel", "parallel")),
    )(chunks, chunks, dft, wglu, cwf, mw, vec)

    # (B, NB, H, TF) -> (B, F, H) permute in XLA, drop frame padding
    out = jnp.transpose(out, (0, 1, 3, 2)).reshape(B, NB * TF, H)
    return out[:, :n_frames, :]


if __name__ == "__main__":
    # Small shapes consistent with the module: win_length=64 -> n_freq=33, hop=32.
    # 400 frames with tile_frames=256 -> 2 lane-aligned frame tiles (exercises the
    # cross-tile halo and the end-of-sequence mask) and a (B, NB) = (2, 2) grid so
    # both v7x TensorCores get parallel work.
    B, C = 2, 2
    WIN, HID, LOOK, DEPTH = 64, 32, 5, 2
    N_FRAMES = 400
    T = (N_FRAMES - 1) * (WIN // 2)

    k_x, k_p = jax.random.split(jax.random.PRNGKey(0))
    x = jax.random.normal(k_x, (B, C, T), jnp.float32)
    params = init_params(k_p, n_freq=WIN // 2 + 1, hidden=HID,
                         lookahead=LOOK, depth=DEPTH)

    out = spectrogram_encoder(x, params, win_length=WIN, hidden_size=HID,
                              lookahead=LOOK, mlp_depth=DEPTH, tile_frames=256)
    jax.block_until_ready(out)
    assert out.shape == (B, N_FRAMES, HID), out.shape
    print("KERNEL_OK")
</pallas_src>

<mosaic_0001>
module attributes {stable_mosaic.version = 11 : i64} {
  func.func @_encoder_kernel(%arg0: i32, %arg1: i32, %arg2: memref<1x32x256xf32, #tpu.memory_space<vmem>>, %arg3: memref<1x32x128xf32, #tpu.memory_space<vmem>>, %arg4: memref<80x64xf32, #tpu.memory_space<vmem>>, %arg5: memref<64x40xbf16, #tpu.memory_space<vmem>>, %arg6: memref<5x32x64xbf16, #tpu.memory_space<vmem>>, %arg7: memref<2x32x32xbf16, #tpu.memory_space<vmem>>, %arg8: memref<13x32x1xf32, #tpu.memory_space<vmem>>, %arg9: memref<1x1x32x256xf32, #tpu.memory_space<vmem>>) attributes {dimension_semantics = [#tpu.dimension_semantics<parallel>, #tpu.dimension_semantics<parallel>], iteration_bounds = array<i64: 2, 2>, scalar_prefetch = 0 : i64, scratch_operands = 0 : i64, tpu.core_type = #tpu.core_type<tc>, window_params = [{transform_indices = @transform_0, window_bounds = array<i64: 1, 32, 256>}, {transform_indices = @transform_1, window_bounds = array<i64: 1, 32, 128>}, {pipeline_mode = #tpu.pipeline_mode<synchronous>, transform_indices = @transform_2, window_bounds = array<i64: 80, 64>}, {pipeline_mode = #tpu.pipeline_mode<synchronous>, transform_indices = @transform_3, window_bounds = array<i64: 64, 40>}, {pipeline_mode = #tpu.pipeline_mode<synchronous>, transform_indices = @transform_4, window_bounds = array<i64: 5, 32, 64>}, {pipeline_mode = #tpu.pipeline_mode<synchronous>, transform_indices = @transform_5, window_bounds = array<i64: 2, 32, 32>}, {pipeline_mode = #tpu.pipeline_mode<synchronous>, transform_indices = @transform_6, window_bounds = array<i64: 13, 32, 1>}, {transform_indices = @transform_7, window_bounds = array<i64: 1, 1, 32, 256>}]} {
    %c0 = arith.constant 0 : index
    %c0_0 = arith.constant 0 : index
    %c0_1 = arith.constant 0 : index
    %0 = vector.load %arg2[%c0, %c0_0, %c0_1] : memref<1x32x256xf32, #tpu.memory_space<vmem>>, vector<1x32x256xf32>
    %1 = vector.shape_cast %0 : vector<1x32x256xf32> to vector<32x256xf32>
    %c0_2 = arith.constant 0 : index
    %c0_3 = arith.constant 0 : index
    %c0_4 = arith.constant 0 : index
    %2 = vector.load %arg3[%c0_2, %c0_3, %c0_4] : memref<1x32x128xf32, #tpu.memory_space<vmem>>, vector<1x32x128xf32>
    %3 = vector.shape_cast %2 : vector<1x32x128xf32> to vector<32x128xf32>
    %4 = tpu.concatenate %1, %3 in 1 : vector<32x256xf32>, vector<32x128xf32> -> vector<32x384xf32>
    %c383_i32 = arith.constant 383 : i32
    %5 = tpu.dynamic_rotate %4 by %c383_i32 dim 1 : vector<32x384xf32>, i32 -> vector<32x384xf32>
    %6 = tpu.concatenate %4, %5 in 0 : vector<32x384xf32>, vector<32x384xf32> -> vector<64x384xf32>
    %c0_5 = arith.constant 0 : index
    %c0_6 = arith.constant 0 : index
    %7 = vector.load %arg4[%c0_5, %c0_6] : memref<80x64xf32, #tpu.memory_space<vmem>>, vector<80x64xf32>
    %cst = arith.constant dense<0.000000e+00> : vector<80x384xf32>
    %8 = tpu.matmul %7, %6, %cst {dimension_numbers = #tpu.dot_dimension_numbers<[1], [0], [0], [1], [0, 0, 1, 1], [], []>} : vector<80x64xf32>, vector<64x384xf32>, vector<80x384xf32> -> vector<80x384xf32>
    %9 = vector.extract_strided_slice %8 {offsets = [0, 0], sizes = [40, 384], strides = [1, 1]} : vector<80x384xf32> to vector<40x384xf32>
    %10 = vector.extract_strided_slice %8 {offsets = [0, 0], sizes = [40, 384], strides = [1, 1]} : vector<80x384xf32> to vector<40x384xf32>
    %11 = arith.mulf %9, %10 : vector<40x384xf32>
    %12 = vector.extract_strided_slice %8 {offsets = [40, 0], sizes = [40, 384], strides = [1, 1]} : vector<80x384xf32> to vector<40x384xf32>
    %13 = vector.extract_strided_slice %8 {offsets = [40, 0], sizes = [40, 384], strides = [1, 1]} : vector<80x384xf32> to vector<40x384xf32>
    %14 = arith.mulf %12, %13 : vector<40x384xf32>
    %15 = arith.addf %11, %14 : vector<40x384xf32>
    %cst_7 = arith.constant 9.99999997E-7 : f32
    %16 = vector.broadcast %cst_7 : f32 to vector<40x384xf32>
    %17 = arith.addf %15, %16 : vector<40x384xf32>
    %cst_8 = arith.constant 9.99999993E-9 : f32
    %18 = vector.broadcast %cst_8 : f32 to vector<40x384xf32>
    %19 = arith.addf %17, %18 : vector<40x384xf32>
    %20 = math.log %19 : vector<40x384xf32>
    %cst_9 = arith.constant 4.34294462 : f32
    %21 = vector.broadcast %cst_9 : f32 to vector<40x384xf32>
    %22 = arith.mulf %21, %20 : vector<40x384xf32>
    %c0_10 = arith.constant 0 : index
    %c0_11 = arith.constant 0 : index
    %23 = vector.load %arg5[%c0_10, %c0_11] : memref<64x40xbf16, #tpu.memory_space<vmem>>, vector<64x40xbf16>
    %24 = arith.truncf %22 : vector<40x384xf32> to vector<40x384xbf16>
    %cst_12 = arith.constant dense<0.000000e+00> : vector<64x384xf32>
    %25 = tpu.matmul %23, %24, %cst_12 {dimension_numbers = #tpu.dot_dimension_numbers<[1], [0], [0], [1], [0, 0, 1, 1], [], []>} : vector<64x40xbf16>, vector<40x384xbf16>, vector<64x384xf32> -> vector<64x384xf32>
    %26 = vector.extract_strided_slice %25 {offsets = [0, 0], sizes = [32, 384], strides = [1, 1]} : vector<64x384xf32> to vector<32x384xf32>
    %c0_13 = arith.constant 0 : index
    %c0_14 = arith.constant 0 : index
    %c0_15 = arith.constant 0 : index
    %27 = vector.load %arg8[%c0_13, %c0_14, %c0_15] : memref<13x32x1xf32, #tpu.memory_space<vmem>>, vector<1x32x1xf32>
    %28 = vector.shape_cast %27 : vector<1x32x1xf32> to vector<32x1xf32>
    %29 = vector.broadcast %28 : vector<32x1xf32> to vector<32x384xf32>
    %30 = arith.addf %26, %29 : vector<32x384xf32>
    %31 = vector.extract_strided_slice %25 {offsets = [32, 0], sizes = [32, 384], strides = [1, 1]} : vector<64x384xf32> to vector<32x384xf32>
    %c1 = arith.constant 1 : index
    %c0_16 = arith.constant 0 : index
    %c0_17 = arith.constant 0 : index
    %32 = vector.load %arg8[%c1, %c0_16, %c0_17] : memref<13x32x1xf32, #tpu.memory_space<vmem>>, vector<1x32x1xf32>
    %33 = vector.shape_cast %32 : vector<1x32x1xf32> to vector<32x1xf32>
    %34 = vector.broadcast %33 : vector<32x1xf32> to vector<32x384xf32>
    %35 = arith.addf %31, %34 : vector<32x384xf32>
    %36 = arith.negf %35 : vector<32x384xf32>
    %37 = math.exp %36 : vector<32x384xf32>
    %cst_18 = arith.constant 1.000000e+00 : f32
    %38 = vector.broadcast %cst_18 : f32 to vector<32x384xf32>
    %39 = arith.addf %38, %37 : vector<32x384xf32>
    %40 = arith.divf %38, %39 : vector<32x384xf32>
    %41 = arith.mulf %30, %40 : vector<32x384xf32>
    %c256_i32 = arith.constant 256 : i32
    %42 = arith.muli %arg1, %c256_i32 : i32
    %43 = tpu.iota {dimensions = array<i32: 1>} : vector<1x384xi32>
    %44 = vector.broadcast %42 : i32 to vector<1x384xi32>
    %45 = arith.addi %43, %44 : vector<1x384xi32>
    %c400_i32 = arith.constant 400 : i32
    %46 = vector.broadcast %c400_i32 : i32 to vector<1x384xi32>
    %47 = arith.cmpi slt, %45, %46 : vector<1x384xi32>
    %48 = arith.extui %47 : vector<1x384xi1> to vector<1x384xi32>
    %49 = arith.sitofp %48 : vector<1x384xi32> to vector<1x384xf32>
    %50 = vector.broadcast %49 : vector<1x384xf32> to vector<32x384xf32>
    %51 = arith.mulf %41, %50 : vector<32x384xf32>
    %c383_i32_19 = arith.constant 383 : i32
    %52 = tpu.dynamic_rotate %51 by %c383_i32_19 dim 1 : vector<32x384xf32>, i32 -> vector<32x384xf32>
    %53 = tpu.concatenate %51, %52 in 0 : vector<32x384xf32>, vector<32x384xf32> -> vector<64x384xf32>
    %54 = arith.truncf %53 : vector<64x384xf32> to vector<64x384xbf16>
    %c0_20 = arith.constant 0 : index
    %c0_21 = arith.constant 0 : index
    %c0_22 = arith.constant 0 : index
    %55 = vector.load %arg6[%c0_20, %c0_21, %c0_22] : memref<5x32x64xbf16, #tpu.memory_space<vmem>>, vector<1x32x64xbf16>
    %56 = vector.shape_cast %55 : vector<1x32x64xbf16> to vector<32x64xbf16>
    %cst_23 = arith.constant dense<0.000000e+00> : vector<32x384xf32>
    %57 = tpu.matmul %56, %54, %cst_23 {dimension_numbers = #tpu.dot_dimension_numbers<[1], [0], [0], [1], [0, 0, 1, 1], [], []>} : vector<32x64xbf16>, vector<64x384xbf16>, vector<32x384xf32> -> vector<32x384xf32>
    %c2 = arith.constant 2 : index
    %c0_24 = arith.constant 0 : index
    %c0_25 = arith.constant 0 : index
    %58 = vector.load %arg8[%c2, %c0_24, %c0_25] : memref<13x32x1xf32, #tpu.memory_space<vmem>>, vector<1x32x1xf32>
    %59 = vector.shape_cast %58 : vector<1x32x1xf32> to vector<32x1xf32>
    %60 = vector.broadcast %59 : vector<32x1xf32> to vector<32x384xf32>
    %61 = arith.addf %57, %60 : vector<32x384xf32>
    %cst_26 = arith.constant 0.000000e+00 : f32
    %62 = vector.broadcast %cst_26 : f32 to vector<32x384xf32>
    %63 = arith.maximumf %61, %62 : vector<32x384xf32>
    %64 = vector.broadcast %49 : vector<1x384xf32> to vector<32x384xf32>
    %65 = arith.mulf %63, %64 : vector<32x384xf32>
    %c383_i32_27 = arith.constant 383 : i32
    %66 = tpu.dynamic_rotate %65 by %c383_i32_27 dim 1 : vector<32x384xf32>, i32 -> vector<32x384xf32>
    %67 = tpu.concatenate %65, %66 in 0 : vector<32x384xf32>, vector<32x384xf32> -> vector<64x384xf32>
    %68 = arith.truncf %67 : vector<64x384xf32> to vector<64x384xbf16>
    %c1_28 = arith.constant 1 : index
    %c0_29 = arith.constant 0 : index
    %c0_30 = arith.constant 0 : index
    %69 = vector.load %arg6[%c1_28, %c0_29, %c0_30] : memref<5x32x64xbf16, #tpu.memory_space<vmem>>, vector<1x32x64xbf16>
    %70 = vector.shape_cast %69 : vector<1x32x64xbf16> to vector<32x64xbf16>
    %cst_31 = arith.constant dense<0.000000e+00> : vector<32x384xf32>
    %71 = tpu.matmul %70, %68, %cst_31 {dimension_numbers = #tpu.dot_dimension_numbers<[1], [0], [0], [1], [0, 0, 1, 1], [], []>} : vector<32x64xbf16>, vector<64x384xbf16>, vector<32x384xf32> -> vector<32x384xf32>
    %c3 = arith.constant 3 : index
    %c0_32 = arith.constant 0 : index
    %c0_33 = arith.constant 0 : index
    %72 = vector.load %arg8[%c3, %c0_32, %c0_33] : memref<13x32x1xf32, #tpu.memory_space<vmem>>, vector<1x32x1xf32>
    %73 = vector.shape_cast %72 : vector<1x32x1xf32> to vector<32x1xf32>
    %74 = vector.broadcast %73 : vector<32x1xf32> to vector<32x384xf32>
    %75 = arith.addf %71, %74 : vector<32x384xf32>
    %cst_34 = arith.constant 0.000000e+00 : f32
    %76 = vector.broadcast %cst_34 : f32 to vector<32x384xf32>
    %77 = arith.maximumf %75, %76 : vector<32x384xf32>
    %78 = vector.broadcast %49 : vector<1x384xf32> to vector<32x384xf32>
    %79 = arith.mulf %77, %78 : vector<32x384xf32>
    %c383_i32_35 = arith.constant 383 : i32
    %80 = tpu.dynamic_rotate %79 by %c383_i32_35 dim 1 : vector<32x384xf32>, i32 -> vector<32x384xf32>
    %81 = tpu.concatenate %79, %80 in 0 : vector<32x384xf32>, vector<32x384xf32> -> vector<64x384xf32>
    %82 = arith.truncf %81 : vector<64x384xf32> to vector<64x384xbf16>
    %c2_36 = arith.constant 2 : index
    %c0_37 = arith.constant 0 : index
    %c0_38 = arith.constant 0 : index
    %83 = vector.load %arg6[%c2_36, %c0_37, %c0_38] : memref<5x32x64xbf16, #tpu.memory_space<vmem>>, vector<1x32x64xbf16>
    %84 = vector.shape_cast %83 : vector<1x32x64xbf16> to vector<32x64xbf16>
    %cst_39 = arith.constant dense<0.000000e+00> : vector<32x384xf32>
    %85 = tpu.matmul %84, %82, %cst_39 {dimension_numbers = #tpu.dot_dimension_numbers<[1], [0], [0], [1], [0, 0, 1, 1], [], []>} : vector<32x64xbf16>, vector<64x384xbf16>, vector<32x384xf32> -> vector<32x384xf32>
    %c4 = arith.constant 4 : index
    %c0_40 = arith.constant 0 : index
    %c0_41 = arith.constant 0 : index
    %86 = vector.load %arg8[%c4, %c0_40, %c0_41] : memref<13x32x1xf32, #tpu.memory_space<vmem>>, vector<1x32x1xf32>
    %87 = vector.shape_cast %86 : vector<1x32x1xf32> to vector<32x1xf32>
    %88 = vector.broadcast %87 : vector<32x1xf32> to vector<32x384xf32>
    %89 = arith.addf %85, %88 : vector<32x384xf32>
    %cst_42 = arith.constant 0.000000e+00 : f32
    %90 = vector.broadcast %cst_42 : f32 to vector<32x384xf32>
    %91 = arith.maximumf %89, %90 : vector<32x384xf32>
    %92 = vector.broadcast %49 : vector<1x384xf32> to vector<32x384xf32>
    %93 = arith.mulf %91, %92 : vector<32x384xf32>
    %c383_i32_43 = arith.constant 383 : i32
    %94 = tpu.dynamic_rotate %93 by %c383_i32_43 dim 1 : vector<32x384xf32>, i32 -> vector<32x384xf32>
    %95 = tpu.concatenate %93, %94 in 0 : vector<32x384xf32>, vector<32x384xf32> -> vector<64x384xf32>
    %96 = arith.truncf %95 : vector<64x384xf32> to vector<64x384xbf16>
    %c3_44 = arith.constant 3 : index
    %c0_45 = arith.constant 0 : index
    %c0_46 = arith.constant 0 : index
    %97 = vector.load %arg6[%c3_44, %c0_45, %c0_46] : memref<5x32x64xbf16, #tpu.memory_space<vmem>>, vector<1x32x64xbf16>
    %98 = vector.shape_cast %97 : vector<1x32x64xbf16> to vector<32x64xbf16>
    %cst_47 = arith.constant dense<0.000000e+00> : vector<32x384xf32>
    %99 = tpu.matmul %98, %96, %cst_47 {dimension_numbers = #tpu.dot_dimension_numbers<[1], [0], [0], [1], [0, 0, 1, 1], [], []>} : vector<32x64xbf16>, vector<64x384xbf16>, vector<32x384xf32> -> vector<32x384xf32>
    %c5 = arith.constant 5 : index
    %c0_48 = arith.constant 0 : index
    %c0_49 = arith.constant 0 : index
    %100 = vector.load %arg8[%c5, %c0_48, %c0_49] : memref<13x32x1xf32, #tpu.memory_space<vmem>>, vector<1x32x1xf32>
    %101 = vector.shape_cast %100 : vector<1x32x1xf32> to vector<32x1xf32>
    %102 = vector.broadcast %101 : vector<32x1xf32> to vector<32x384xf32>
    %103 = arith.addf %99, %102 : vector<32x384xf32>
    %cst_50 = arith.constant 0.000000e+00 : f32
    %104 = vector.broadcast %cst_50 : f32 to vector<32x384xf32>
    %105 = arith.maximumf %103, %104 : vector<32x384xf32>
    %106 = vector.broadcast %49 : vector<1x384xf32> to vector<32x384xf32>
    %107 = arith.mulf %105, %106 : vector<32x384xf32>
    %c383_i32_51 = arith.constant 383 : i32
    %108 = tpu.dynamic_rotate %107 by %c383_i32_51 dim 1 : vector<32x384xf32>, i32 -> vector<32x384xf32>
    %109 = tpu.concatenate %107, %108 in 0 : vector<32x384xf32>, vector<32x384xf32> -> vector<64x384xf32>
    %110 = arith.truncf %109 : vector<64x384xf32> to vector<64x384xbf16>
    %c4_52 = arith.constant 4 : index
    %c0_53 = arith.constant 0 : index
    %c0_54 = arith.constant 0 : index
    %111 = vector.load %arg6[%c4_52, %c0_53, %c0_54] : memref<5x32x64xbf16, #tpu.memory_space<vmem>>, vector<1x32x64xbf16>
    %112 = vector.shape_cast %111 : vector<1x32x64xbf16> to vector<32x64xbf16>
    %cst_55 = arith.constant dense<0.000000e+00> : vector<32x384xf32>
    %113 = tpu.matmul %112, %110, %cst_55 {dimension_numbers = #tpu.dot_dimension_numbers<[1], [0], [0], [1], [0, 0, 1, 1], [], []>} : vector<32x64xbf16>, vector<64x384xbf16>, vector<32x384xf32> -> vector<32x384xf32>
    %c6 = arith.constant 6 : index
    %c0_56 = arith.constant 0 : index
    %c0_57 = arith.constant 0 : index
    %114 = vector.load %arg8[%c6, %c0_56, %c0_57] : memref<13x32x1xf32, #tpu.memory_space<vmem>>, vector<1x32x1xf32>
    %115 = vector.shape_cast %114 : vector<1x32x1xf32> to vector<32x1xf32>
    %116 = vector.broadcast %115 : vector<32x1xf32> to vector<32x384xf32>
    %117 = arith.addf %113, %116 : vector<32x384xf32>
    %cst_58 = arith.constant 0.000000e+00 : f32
    %118 = vector.broadcast %cst_58 : f32 to vector<32x384xf32>
    %119 = arith.maximumf %117, %118 : vector<32x384xf32>
    %120 = vector.extract_strided_slice %119 {offsets = [0, 0], sizes = [32, 256], strides = [1, 1]} : vector<32x384xf32> to vector<32x256xf32>
    %c0_59 = arith.constant 0 : index
    %c0_60 = arith.constant 0 : index
    %c0_61 = arith.constant 0 : index
    %121 = vector.load %arg7[%c0_59, %c0_60, %c0_61] : memref<2x32x32xbf16, #tpu.memory_space<vmem>>, vector<1x32x32xbf16>
    %122 = vector.shape_cast %121 : vector<1x32x32xbf16> to vector<32x32xbf16>
    %123 = arith.truncf %120 : vector<32x256xf32> to vector<32x256xbf16>
    %cst_62 = arith.constant dense<0.000000e+00> : vector<32x256xf32>
    %124 = tpu.matmul %122, %123, %cst_62 {dimension_numbers = #tpu.dot_dimension_numbers<[1], [0], [0], [1], [0, 0, 1, 1], [], []>} : vector<32x32xbf16>, vector<32x256xbf16>, vector<32x256xf32> -> vector<32x256xf32>
    %c7 = arith.constant 7 : index
    %c0_63 = arith.constant 0 : index
    %c0_64 = arith.constant 0 : index
    %125 = vector.load %arg8[%c7, %c0_63, %c0_64] : memref<13x32x1xf32, #tpu.memory_space<vmem>>, vector<1x32x1xf32>
    %126 = vector.shape_cast %125 : vector<1x32x1xf32> to vector<32x1xf32>
    %127 = vector.broadcast %126 : vector<32x1xf32> to vector<32x256xf32>
    %128 = arith.addf %124, %127 : vector<32x256xf32>
    %cst_65 = arith.constant dense<0.000000e+00> : vector<256xf32>
    %129 = vector.multi_reduction <add>, %128, %cst_65 [0] : vector<32x256xf32> to vector<256xf32>
    %130 = vector.shape_cast %129 : vector<256xf32> to vector<1x256xf32>
    %cst_66 = arith.constant 3.125000e-02 : f32
    %131 = vector.broadcast %cst_66 : f32 to vector<1x256xf32>
    %132 = arith.mulf %130, %131 : vector<1x256xf32>
    %133 = arith.mulf %128, %128 : vector<32x256xf32>
    %cst_67 = arith.constant dense<0.000000e+00> : vector<256xf32>
    %134 = vector.multi_reduction <add>, %133, %cst_67 [0] : vector<32x256xf32> to vector<256xf32>
    %135 = vector.shape_cast %134 : vector<256xf32> to vector<1x256xf32>
    %cst_68 = arith.constant 3.125000e-02 : f32
    %136 = vector.broadcast %cst_68 : f32 to vector<1x256xf32>
    %137 = arith.mulf %135, %136 : vector<1x256xf32>
    %138 = vector.broadcast %132 : vector<1x256xf32> to vector<32x256xf32>
    %139 = arith.subf %128, %138 : vector<32x256xf32>
    %140 = arith.mulf %132, %132 : vector<1x256xf32>
    %141 = arith.subf %137, %140 : vector<1x256xf32>
    %cst_69 = arith.constant 9.99999974E-6 : f32
    %142 = vector.broadcast %cst_69 : f32 to vector<1x256xf32>
    %143 = arith.addf %141, %142 : vector<1x256xf32>
    %144 = math.rsqrt %143 : vector<1x256xf32>
    %145 = vector.broadcast %144 : vector<1x256xf32> to vector<32x256xf32>
    %146 = arith.mulf %139, %145 : vector<32x256xf32>
    %c9 = arith.constant 9 : index
    %c0_70 = arith.constant 0 : index
    %c0_71 = arith.constant 0 : index
    %147 = vector.load %arg8[%c9, %c0_70, %c0_71] : memref<13x32x1xf32, #tpu.memory_space<vmem>>, vector<1x32x1xf32>
    %148 = vector.shape_cast %147 : vector<1x32x1xf32> to vector<32x1xf32>
    %149 = vector.broadcast %148 : vector<32x1xf32> to vector<32x256xf32>
    %150 = arith.mulf %146, %149 : vector<32x256xf32>
    %c11 = arith.constant 11 : index
    %c0_72 = arith.constant 0 : index
    %c0_73 = arith.constant 0 : index
    %151 = vector.load %arg8[%c11, %c0_72, %c0_73] : memref<13x32x1xf32, #tpu.memory_space<vmem>>, vector<1x32x1xf32>
    %152 = vector.shape_cast %151 : vector<1x32x1xf32> to vector<32x1xf32>
    %153 = vector.broadcast %152 : vector<32x1xf32> to vector<32x256xf32>
    %154 = arith.addf %150, %153 : vector<32x256xf32>
    %cst_74 = arith.constant 0.000000e+00 : f32
    %155 = vector.broadcast %cst_74 : f32 to vector<32x256xf32>
    %156 = arith.maximumf %154, %155 : vector<32x256xf32>
    %c1_75 = arith.constant 1 : index
    %c0_76 = arith.constant 0 : index
    %c0_77 = arith.constant 0 : index
    %157 = vector.load %arg7[%c1_75, %c0_76, %c0_77] : memref<2x32x32xbf16, #tpu.memory_space<vmem>>, vector<1x32x32xbf16>
    %158 = vector.shape_cast %157 : vector<1x32x32xbf16> to vector<32x32xbf16>
    %159 = arith.truncf %156 : vector<32x256xf32> to vector<32x256xbf16>
    %cst_78 = arith.constant dense<0.000000e+00> : vector<32x256xf32>
    %160 = tpu.matmul %158, %159, %cst_78 {dimension_numbers = #tpu.dot_dimension_numbers<[1], [0], [0], [1], [0, 0, 1, 1], [], []>} : vector<32x32xbf16>, vector<32x256xbf16>, vector<32x256xf32> -> vector<32x256xf32>
    %c8 = arith.constant 8 : index
    %c0_79 = arith.constant 0 : index
    %c0_80 = arith.constant 0 : index
    %161 = vector.load %arg8[%c8, %c0_79, %c0_80] : memref<13x32x1xf32, #tpu.memory_space<vmem>>, vector<1x32x1xf32>
    %162 = vector.shape_cast %161 : vector<1x32x1xf32> to vector<32x1xf32>
    %163 = vector.broadcast %162 : vector<32x1xf32> to vector<32x256xf32>
    %164 = arith.addf %160, %163 : vector<32x256xf32>
    %cst_81 = arith.constant dense<0.000000e+00> : vector<256xf32>
    %165 = vector.multi_reduction <add>, %164, %cst_81 [0] : vector<32x256xf32> to vector<256xf32>
    %166 = vector.shape_cast %165 : vector<256xf32> to vector<1x256xf32>
    %cst_82 = arith.constant 3.125000e-02 : f32
    %167 = vector.broadcast %cst_82 : f32 to vector<1x256xf32>
    %168 = arith.mulf %166, %167 : vector<1x256xf32>
    %169 = arith.mulf %164, %164 : vector<32x256xf32>
    %cst_83 = arith.constant dense<0.000000e+00> : vector<256xf32>
    %170 = vector.multi_reduction <add>, %169, %cst_83 [0] : vector<32x256xf32> to vector<256xf32>
    %171 = vector.shape_cast %170 : vector<256xf32> to vector<1x256xf32>
    %cst_84 = arith.constant 3.125000e-02 : f32
    %172 = vector.broadcast %cst_84 : f32 to vector<1x256xf32>
    %173 = arith.mulf %171, %172 : vector<1x256xf32>
    %174 = vector.broadcast %168 : vector<1x256xf32> to vector<32x256xf32>
    %175 = arith.subf %164, %174 : vector<32x256xf32>
    %176 = arith.mulf %168, %168 : vector<1x256xf32>
    %177 = arith.subf %173, %176 : vector<1x256xf32>
    %cst_85 = arith.constant 9.99999974E-6 : f32
    %178 = vector.broadcast %cst_85 : f32 to vector<1x256xf32>
    %179 = arith.addf %177, %178 : vector<1x256xf32>
    %180 = math.rsqrt %179 : vector<1x256xf32>
    %181 = vector.broadcast %180 : vector<1x256xf32> to vector<32x256xf32>
    %182 = arith.mulf %175, %181 : vector<32x256xf32>
    %c10 = arith.constant 10 : index
    %c0_86 = arith.constant 0 : index
    %c0_87 = arith.constant 0 : index
    %183 = vector.load %arg8[%c10, %c0_86, %c0_87] : memref<13x32x1xf32, #tpu.memory_space<vmem>>, vector<1x32x1xf32>
    %184 = vector.shape_cast %183 : vector<1x32x1xf32> to vector<32x1xf32>
    %185 = vector.broadcast %184 : vector<32x1xf32> to vector<32x256xf32>
    %186 = arith.mulf %182, %185 : vector<32x256xf32>
    %c12 = arith.constant 12 : index
    %c0_88 = arith.constant 0 : index
    %c0_89 = arith.constant 0 : index
    %187 = vector.load %arg8[%c12, %c0_88, %c0_89] : memref<13x32x1xf32, #tpu.memory_space<vmem>>, vector<1x32x1xf32>
    %188 = vector.shape_cast %187 : vector<1x32x1xf32> to vector<32x1xf32>
    %189 = vector.broadcast %188 : vector<32x1xf32> to vector<32x256xf32>
    %190 = arith.addf %186, %189 : vector<32x256xf32>
    %cst_90 = arith.constant 0.000000e+00 : f32
    %191 = vector.broadcast %cst_90 : f32 to vector<32x256xf32>
    %192 = arith.maximumf %190, %191 : vector<32x256xf32>
    %c0_91 = arith.constant 0 : index
    %c0_92 = arith.constant 0 : index
    %c0_93 = arith.constant 0 : index
    %c0_94 = arith.constant 0 : index
    %193 = vector.load %arg9[%c0_91, %c0_92, %c0_93, %c0_94] : memref<1x1x32x256xf32, #tpu.memory_space<vmem>>, vector<1x1x32x256xf32>
    %194 = vector.shape_cast %193 : vector<1x1x32x256xf32> to vector<32x256xf32>
    %195 = vector.shape_cast %192 : vector<32x256xf32> to vector<1x1x32x256xf32>
    tpu.vector_store %arg9[%c0_91, %c0_92, %c0_93, %c0_94], %195 {strides = array<i32>} : memref<1x1x32x256xf32, #tpu.memory_space<vmem>>, vector<1x1x32x256xf32>,
    return
  }
  func.func @transform_0(%arg0: i32, %arg1: i32) -> (i32, i32, i32) {
    %c0_i32 = arith.constant 0 : i32
    %c0_i32_0 = arith.constant 0 : i32
    return %arg0, %c0_i32, %arg1 : i32, i32, i32
  }
  func.func @transform_1(%arg0: i32, %arg1: i32) -> (i32, i32, i32) {
    %c1_i32 = arith.constant 1 : i32
    %0 = arith.addi %arg1, %c1_i32 : i32
    %c2_i32 = arith.constant 2 : i32
    %1 = arith.muli %0, %c2_i32 : i32
    %c0_i32 = arith.constant 0 : i32
    %c0_i32_0 = arith.constant 0 : i32
    return %arg0, %c0_i32, %1 : i32, i32, i32
  }
  func.func @transform_2(%arg0: i32, %arg1: i32) -> (i32, i32) {
    %c0_i32 = arith.constant 0 : i32
    %c0_i32_0 = arith.constant 0 : i32
    %c0_i32_1 = arith.constant 0 : i32
    return %c0_i32, %c0_i32_0 : i32, i32
  }
  func.func @transform_3(%arg0: i32, %arg1: i32) -> (i32, i32) {
    %c0_i32 = arith.constant 0 : i32
    %c0_i32_0 = arith.constant 0 : i32
    %c0_i32_1 = arith.constant 0 : i32
    return %c0_i32, %c0_i32_0 : i32, i32
  }
  func.func @transform_4(%arg0: i32, %arg1: i32) -> (i32, i32, i32) {
    %c0_i32 = arith.constant 0 : i32
    %c0_i32_0 = arith.constant 0 : i32
    %c0_i32_1 = arith.constant 0 : i32
    %c0_i32_2 = arith.constant 0 : i32
    return %c0_i32, %c0_i32_0, %c0_i32_1 : i32, i32, i32
  }
  func.func @transform_5(%arg0: i32, %arg1: i32) -> (i32, i32, i32) {
    %c0_i32 = arith.constant 0 : i32
    %c0_i32_0 = arith.constant 0 : i32
    %c0_i32_1 = arith.constant 0 : i32
    %c0_i32_2 = arith.constant 0 : i32
    return %c0_i32, %c0_i32_0, %c0_i32_1 : i32, i32, i32
  }
  func.func @transform_6(%arg0: i32, %arg1: i32) -> (i32, i32, i32) {
    %c0_i32 = arith.constant 0 : i32
    %c0_i32_0 = arith.constant 0 : i32
    %c0_i32_1 = arith.constant 0 : i32
    %c0_i32_2 = arith.constant 0 : i32
    return %c0_i32, %c0_i32_0, %c0_i32_1 : i32, i32, i32
  }
  func.func @transform_7(%arg0: i32, %arg1: i32) -> (i32, i32, i32, i32) {
    %c0_i32 = arith.constant 0 : i32
    %c0_i32_0 = arith.constant 0 : i32
    %c0_i32_1 = arith.constant 0 : i32
    return %arg0, %arg1, %c0_i32, %c0_i32_0 : i32, i32, i32, i32
  }
}

</mosaic_0001>

<llo_original>
// kernel: tpu_custom_call.1
$region0: #{tpu_custom_call.1}
  #allocation0 [shape = 'u32[]', space=smem, size = 0x4, offset = 0x4, fixed_abs, tag = 'smem constant byte address 0x4 - core index']
  #allocation1 [shape = 'u32[144,128]{1,0:T(1,128)}', space=vmem, size = 0x12000, scoped, tag = 'internal scratch']
  %s0 = inlined_call_operand.vmem [shape: f32[2,32,640], index: 0, kind: input, shape index: {}]
  %s1 = inlined_call_operand.hbm [shape: f32[2,32,640], index: 1, kind: input, shape index: {}]
  %s2 = inlined_call_operand.vmem [shape: f32[80,64], index: 2, kind: input, shape index: {}]
  %s3 = inlined_call_operand.vmem [shape: bf16[64,40], index: 3, kind: input, shape index: {}]
  %s4 = inlined_call_operand.vmem [shape: bf16[5,32,64], index: 4, kind: input, shape index: {}]
  %s5 = inlined_call_operand.vmem [shape: bf16[2,32,32], index: 5, kind: input, shape index: {}]
  %s6 = inlined_call_operand.vmem [shape: f32[13,32,1], index: 6, kind: input, shape index: {}]
  %s7 = inlined_call_operand.hbm [shape: f32[2,2,32,256], index: 7, kind: output, shape index: {}]
  %s8 = sld [smem:[#allocation0]]
  $region131: #{tpu_custom_call.1} parent=0
    _
  %s10 = ssub.s32 1, %s8
  %s11 = scalar_select 0, %s10, %s8
  $region1: #{tpu_custom_call.1} parent=0
    #allocation2 [shape = 'u8[65536]{0}', space=vmem, size = 0x10000, scoped, tag = 'input window, operand 0']
    #allocation3 [shape = 'u8[32768]{0}', space=vmem, size = 0x8000, scoped, tag = 'input window, operand 1']
    #allocation4 [shape = 's32[2]{0}', space=sflag, size = 0x8, scoped, tag = 'scoped memory for tpu_custom_call.1']
    #allocation5 [shape = 's32[2]{0}', space=sflag, size = 0x8, scoped, tag = 'scoped memory for tpu_custom_call.1']
    #allocation6 [shape = 'u8[65536]{0}', space=vmem, size = 0x10000, scoped, tag = 'output window, operand 0']
    %12 = vsyncpa [#allocation4], 0
    %s13 = scalar_lea.sflag [#allocation4], 1
    %14 = vsyncpa %s13, 0
    %15 = vsyncpa [#allocation5], 0
    %s16 = scalar_lea.sflag [#allocation5], 1
    %17 = vsyncpa %s16, 0
    loop: start=0, step=1, limit=6
    $region2: #{tpu_custom_call.1} parent=1 // loop_pre_header
      _
    $region3: #{tpu_custom_call.1} parent=1 // loop_header
      %s19 = sphi 0, %s23
      %p20 = scmp.ge.s32.totalorder %s19, 6
      %s26 = sphi 0, %s38
      %s27 = sphi 0, %s34
      %s28 = sphi 0, %s26
      %s29 = sphi 0, %s27
      %s30 = sphi 0, %s28
      %s31 = sphi 0, %s29
      %s43 = sphi 0, %s45
      %s46 = sphi 0, %s43
      %s47 = sphi 0, %s46
      %s63 = sphi 0, %s47
      %s75 = sphi 0, %s77
      %s78 = sphi 0, %s75
      %s79 = sphi 0, %s78
      %s95 = sphi 0, %s79
      %s99 = sphi 0, %s99
      %s101 = sphi 0, %s99
      %s102 = sphi 0, %s101
      %s116 = sphi 0, %s102
      %s120 = sphi 0, %s120
      %s122 = sphi 0, %s120
      %s123 = sphi 0, %s122
      %s137 = sphi 0, %s123
      %s141 = sphi 0, %s141
      %s143 = sphi 0, %s141
      %s144 = sphi 0, %s143
      %s158 = sphi 0, %s144
      %s162 = sphi 0, %s162
      %s164 = sphi 0, %s162
      %s165 = sphi 0, %s164
      %s179 = sphi 0, %s165
      %s183 = sphi 0, %s183
      %s185 = sphi 0, %s183
      %s186 = sphi 0, %s185
      %s200 = sphi 0, %s186
      %s208 = sphi 0, %s210
      %s211 = sphi 0, %s208
      %s212 = sphi 0, %s211
      %s228 = sphi 0, %s212
    $region4: #{tpu_custom_call.1} parent=1 // loop_header_branch
      %22 = sbr.rel (%p20) target = $region8
    $region5: #{tpu_custom_call.1} parent=1 // loop_body
      %s24 = ssub.s32 %s19, 1
      %s25 = ssub.s32 %s19, 2
      %s32 = sadd.s32 1, %s27
      %p33 = scmp.ge.s32.totalorder %s32, 2
      %s34 = scalar_select %p33, 0, %s32
      %s35 = sadd.s32 1, %s26
      %s36 = scalar_select %p33, %s35, %s26
      %p37 = scmp.ge.s32.totalorder %s36, 2
      %s38 = scalar_select %p37, 0, %s36
      %s39 = ssub.s32 %s26, %s38
      %s40 = ssub.s32 %s27, %s34
      %s41 = sor.u32 %s39, %s40
      %p42 = scmp.eq.s32.totalorder %s41, 0
      %s44 = sadd.s32 %s43, 1
      %s45 = scalar_select %p42, %s43, %s44
      %p48 = pneg %p42
      %p49 = scmp.eq.s32.totalorder %s19, 3
      %p50 = por %p48, %p49
      %p51 = scmp.ne.s32.totalorder %s43, %s46
      %p52 = scmp.eq.s32.totalorder %s19, 0
      %p53 = por %p51, %p52
      %p54 = scmp.ne.s32.totalorder %s43, %s46
      %p55 = scmp.eq.s32.totalorder %s24, 3
      %p56 = por %p54, %p55
      %p57 = scmp.ne.s32.totalorder %s46, %s47
      %p58 = scmp.eq.s32.totalorder %s24, 0
      %p59 = por %p57, %p58
      %p60 = scmp.ne.s32.totalorder %s46, %s47
      %p61 = scmp.eq.s32.totalorder %s25, 3
      %p62 = por %p60, %p61
      %p64 = scmp.ne.s32.totalorder %s47, %s63
      %p65 = scmp.eq.s32.totalorder %s25, 0
      %p66 = por %p64, %p65
      %s67 = sadd.s32 %s27, 1
      %s68 = smul.u32 %s67, 2
      %s69 = sadd.s32 %s34, 1
      %s70 = smul.u32 %s69, 2
      %s71 = ssub.s32 %s26, %s38
      %s72 = ssub.s32 %s68, %s70
      %s73 = sor.u32 %s71, %s72
      %p74 = scmp.eq.s32.totalorder %s73, 0
      %s76 = sadd.s32 %s75, 1
      %s77 = scalar_select %p74, %s75, %s76
      %p80 = pneg %p74
      %p81 = scmp.eq.s32.totalorder %s19, 3
      %p82 = por %p80, %p81
      %p83 = scmp.ne.s32.totalorder %s75, %s78
      %p84 = scmp.eq.s32.totalorder %s19, 0
      %p85 = por %p83, %p84
      %p86 = scmp.ne.s32.totalorder %s75, %s78
      %p87 = scmp.eq.s32.totalorder %s24, 3
      %p88 = por %p86, %p87
      %p89 = scmp.ne.s32.totalorder %s78, %s79
      %p90 = scmp.eq.s32.totalorder %s24, 0
      %p91 = por %p89, %p90
      %p92 = scmp.ne.s32.totalorder %s78, %s79
      %p93 = scmp.eq.s32.totalorder %s25, 3
      %p94 = por %p92, %p93
      %p96 = scmp.ne.s32.totalorder %s79, %s95
      %p97 = scmp.eq.s32.totalorder %s25, 0
      %p98 = por %p96, %p97
      %s100 = sadd.s32 %s99, 1
      %p103 = scmp.eq.s32.totalorder %s19, 3
      %p104 = scmp.ne.s32.totalorder %s99, %s101
      %p105 = scmp.eq.s32.totalorder %s19, 0
      %p106 = por %p104, %p105
      %p107 = scmp.ne.s32.totalorder %s99, %s101
      %p108 = scmp.eq.s32.totalorder %s24, 3
      %p109 = por %p107, %p108
      %p110 = scmp.ne.s32.totalorder %s101, %s102
      %p111 = scmp.eq.s32.totalorder %s24, 0
      %p112 = por %p110, %p111
      %p113 = scmp.ne.s32.totalorder %s101, %s102
      %p114 = scmp.eq.s32.totalorder %s25, 3
      %p115 = por %p113, %p114
      %p117 = scmp.ne.s32.totalorder %s102, %s116
      %p118 = scmp.eq.s32.totalorder %s25, 0
      %p119 = por %p117, %p118
      %s121 = sadd.s32 %s120, 1
      %p124 = scmp.eq.s32.totalorder %s19, 3
      %p125 = scmp.ne.s32.totalorder %s120, %s122
      %p126 = scmp.eq.s32.totalorder %s19, 0
      %p127 = por %p125, %p126
      %p128 = scmp.ne.s32.totalorder %s120, %s122
      %p129 = scmp.eq.s32.totalorder %s24, 3
      %p130 = por %p128, %p129
      %p131 = scmp.ne.s32.totalorder %s122, %s123
      %p132 = scmp.eq.s32.totalorder %s24, 0
      %p133 = por %p131, %p132
      %p134 = scmp.ne.s32.totalorder %s122, %s123
      %p135 = scmp.eq.s32.totalorder %s25, 3
      %p136 = por %p134, %p135
      %p138 = scmp.ne.s32.totalorder %s123, %s137
      %p139 = scmp.eq.s32.totalorder %s25, 0
      %p140 = por %p138, %p139
      %s142 = sadd.s32 %s141, 1
      %p145 = scmp.eq.s32.totalorder %s19, 3
      %p146 = scmp.ne.s32.totalorder %s141, %s143
      %p147 = scmp.eq.s32.totalorder %s19, 0
      %p148 = por %p146, %p147
      %p149 = scmp.ne.s32.totalorder %s141, %s143
      %p150 = scmp.eq.s32.totalorder %s24, 3
      %p151 = por %p149, %p150
      %p152 = scmp.ne.s32.totalorder %s143, %s144
      %p153 = scmp.eq.s32.totalorder %s24, 0
      %p154 = por %p152, %p153
      %p155 = scmp.ne.s32.totalorder %s143, %s144
      %p156 = scmp.eq.s32.totalorder %s25, 3
      %p157 = por %p155, %p156
      %p159 = scmp.ne.s32.totalorder %s144, %s158
      %p160 = scmp.eq.s32.totalorder %s25, 0
      %p161 = por %p159, %p160
      %s163 = sadd.s32 %s162, 1
      %p166 = scmp.eq.s32.totalorder %s19, 3
      %p167 = scmp.ne.s32.totalorder %s162, %s164
      %p168 = scmp.eq.s32.totalorder %s19, 0
      %p169 = por %p167, %p168
      %p170 = scmp.ne.s32.totalorder %s162, %s164
      %p171 = scmp.eq.s32.totalorder %s24, 3
      %p172 = por %p170, %p171
      %p173 = scmp.ne.s32.totalorder %s164, %s165
      %p174 = scmp.eq.s32.totalorder %s24, 0
      %p175 = por %p173, %p174
      %p176 = scmp.ne.s32.totalorder %s164, %s165
      %p177 = scmp.eq.s32.totalorder %s25, 3
      %p178 = por %p176, %p177
      %p180 = scmp.ne.s32.totalorder %s165, %s179
      %p181 = scmp.eq.s32.totalorder %s25, 0
      %p182 = por %p180, %p181
      %s184 = sadd.s32 %s183, 1
      %p187 = scmp.eq.s32.totalorder %s19, 3
      %p188 = scmp.ne.s32.totalorder %s183, %s185
      %p189 = scmp.eq.s32.totalorder %s19, 0
      %p190 = por %p188, %p189
      %p191 = scmp.ne.s32.totalorder %s183, %s185
      %p192 = scmp.eq.s32.totalorder %s24, 3
      %p193 = por %p191, %p192
      %p194 = scmp.ne.s32.totalorder %s185, %s186
      %p195 = scmp.eq.s32.totalorder %s24, 0
      %p196 = por %p194, %p195
      %p197 = scmp.ne.s32.totalorder %s185, %s186
      %p198 = scmp.eq.s32.totalorder %s25, 3
      %p199 = por %p197, %p198
      %p201 = scmp.ne.s32.totalorder %s186, %s200
      %p202 = scmp.eq.s32.totalorder %s25, 0
      %p203 = por %p201, %p202
      %s204 = ssub.s32 %s26, %s38
      %s205 = ssub.s32 %s27, %s34
      %s206 = sor.u32 %s204, %s205
      %p207 = scmp.eq.s32.totalorder %s206, 0
      %s209 = sadd.s32 %s208, 1
      %s210 = scalar_select %p207, %s208, %s209
      %p213 = pneg %p207
      %p214 = scmp.eq.s32.totalorder %s19, 3
      %p215 = por %p213, %p214
      %p216 = scmp.ne.s32.totalorder %s208, %s211
      %p217 = scmp.eq.s32.totalorder %s19, 0
      %p218 = por %p216, %p217
      %p219 = scmp.ne.s32.totalorder %s208, %s211
      %p220 = scmp.eq.s32.totalorder %s24, 3
      %p221 = por %p219, %p220
      %p222 = scmp.ne.s32.totalorder %s211, %s212
      %p223 = scmp.eq.s32.totalorder %s24, 0
      %p224 = por %p222, %p223
      %p225 = scmp.ne.s32.totalorder %s211, %s212
      %p226 = scmp.eq.s32.totalorder %s25, 3
      %p227 = por %p225, %p226
      %p229 = scmp.ne.s32.totalorder %s212, %s228
      %p230 = scmp.eq.s32.totalorder %s25, 0
      %p231 = por %p229, %p230
      %p232 = scmp.le.s32.totalorder 1, %s19
      %p233 = scmp.lt.s32.totalorder %s19, 5
      %p234 = pnand %p232, %p233
      %p235 = pneg %p234
      // Predicated region
      $region9: #{tpu_custom_call.1} parent=5 // pred_check
        _
      $region10: #{tpu_custom_call.1} parent=5 // pred_check_branch
        %237 = sbr.rel (%p234) target = $region12
      $region11: #{tpu_custom_call.1} parent=5 // pred_region
        %s238 = ssub.s32 %s19, 1
        // Predicated region
        $region13: #{tpu_custom_call.1} parent=11 // pred_check
          %p239 = pneg %p112
        $region14: #{tpu_custom_call.1} parent=11 // pred_check_branch
          %241 = sbr.rel (%p239) target = $region16
        $region15: #{tpu_custom_call.1} parent=11 // pred_region
          _
        $region16: #{tpu_custom_call.1} parent=11 // pred_fallthru
          _
        // Predicated region
        $region17: #{tpu_custom_call.1} parent=11 // pred_check
          %p242 = pneg %p133
        $region18: #{tpu_custom_call.1} parent=11 // pred_check_branch
          %244 = sbr.rel (%p242) target = $region20
        $region19: #{tpu_custom_call.1} parent=11 // pred_region
          _
        $region20: #{tpu_custom_call.1} parent=11 // pred_fallthru
          _
        // Predicated region
        $region21: #{tpu_custom_call.1} parent=11 // pred_check
          %p245 = pneg %p154
        $region22: #{tpu_custom_call.1} parent=11 // pred_check_branch
          %247 = sbr.rel (%p245) target = $region24
        $region23: #{tpu_custom_call.1} parent=11 // pred_region
          _
        $region24: #{tpu_custom_call.1} parent=11 // pred_fallthru
          _
        // Predicated region
        $region25: #{tpu_custom_call.1} parent=11 // pred_check
          %p248 = pneg %p175
        $region26: #{tpu_custom_call.1} parent=11 // pred_check_branch
          %250 = sbr.rel (%p248) target = $region28
        $region27: #{tpu_custom_call.1} parent=11 // pred_region
          _
        $region28: #{tpu_custom_call.1} parent=11 // pred_fallthru
          _
        // Predicated region
        $region29: #{tpu_custom_call.1} parent=11 // pred_check
          %p251 = pneg %p196
        $region30: #{tpu_custom_call.1} parent=11 // pred_check_branch
          %253 = sbr.rel (%p251) target = $region32
        $region31: #{tpu_custom_call.1} parent=11 // pred_region
          _
        $region32: #{tpu_custom_call.1} parent=11 // pred_fallthru
          _
      $region12: #{tpu_custom_call.1} parent=5 // pred_fallthru
        _
      %p254 = scmp.lt.s32.totalorder %s19, 4
      // Predicated region
      $region33: #{tpu_custom_call.1} parent=5 // pred_check
        %p255 = pneg %p254
      $region34: #{tpu_custom_call.1} parent=5 // pred_check_branch
        %257 = sbr.rel (%p255) target = $region36
      $region35: #{tpu_custom_call.1} parent=5 // pred_region
        // Predicated region
        $region37: #{tpu_custom_call.1} parent=35 // pred_check
          %p258 = pneg %p53
        $region38: #{tpu_custom_call.1} parent=35 // pred_check_branch
          %260 = sbr.rel (%p258) target = $region40
        $region39: #{tpu_custom_call.1} parent=35 // pred_region
          %s261 = sand.u32 %s43, 1
          %s262 = sand.u32 %s43, 1
          %s263 = smul.addr %s262, 64
          %s264 = scalar_lea.vmem [#allocation2], %s263
          %s265 = smul.u32 2, %s27
          %s266 = ssub.s32 5, %s265
          %p267 = scmp.lt.s32.totalorder %s266, 2
          %s268 = scalar_select %p267, %s266, 2
          %s269 = smul.u32 512, %s268
          %p270 = scmp.ne.s32.totalorder 0, %s269
          %s271 = smul.addr %s26, 20
          %s272 = sadd.s32 %s265, %s271
          %s273 = smul.addr %s272, 8
          %s274 = scalar_lea.vmem %s0, %s273
          %s275 = smul.u32 %s268, 8
          // Predicated region
          $region41: #{tpu_custom_call.1} parent=39 // pred_check
            %p276 = pneg %p270
          $region42: #{tpu_custom_call.1} parent=39 // pred_check_branch
            %278 = sbr.rel (%p276) target = $region44
          $region43: #{tpu_custom_call.1} parent=39 // pred_region
            %p279 = scmp.lt.u32.totalorder %s275, 8
            %p280 = pneg %p279
            // Predicated region
            $region45: #{tpu_custom_call.1} parent=43 // pred_check
              _
            $region46: #{tpu_custom_call.1} parent=43 // pred_check_branch
              %282 = sbr.rel (%p279) target = $region48
            $region47: #{tpu_custom_call.1} parent=43 // pred_region
              %s303 = sand.u32 %s275, 7
              %p304 = scmp.eq.s32.totalorder %s303, 0
              // Predicated region
              $region60: #{tpu_custom_call.1} parent=47 // pred_check
                %p305 = pneg %p304
              $region61: #{tpu_custom_call.1} parent=47 // pred_check_branch
                %307 = sbr.rel (%p305) target = $region63
              $region62: #{tpu_custom_call.1} parent=47 // pred_region
                %s308 = sshrl.u32 %s275, 3
                %s309 = sshrl.u32 %s308, 4
                // While loop
                $region64: #{tpu_custom_call.1} parent=62 // loop_pre_header
                  _
                $region65: #{tpu_custom_call.1} parent=62 // loop_header
                  %s313 = sphi 0, %s315
                  %p314 = scmp.ge.s32.totalorder %s313, %s309
                  %s318 = sphi 0, %s451
                  %s319 = sphi %s274, %s454
                  %s320 = sphi %s264, %s455
                $region66: #{tpu_custom_call.1} parent=62 // loop_header_branch
                  %317 = sbr.rel (%p314) target = $region70
                $region67: #{tpu_custom_call.1} parent=62 // loop_body
                  %v321 = vld [vmem:[%s319] sm:$0xff]
                  %322 = vst [vmem:[%s320] sm:$0xff] %v321
                  %v323 = vld [vmem:[%s319 + $0x8] sm:$0xff]
                  %324 = vst [vmem:[%s320 + $0x8] sm:$0xff] %v323
                  %v325 = vld [vmem:[%s319 + $0x10] sm:$0xff]
                  %326 = vst [vmem:[%s320 + $0x10] sm:$0xff] %v325
                  %v327 = vld [vmem:[%s319 + $0x18] sm:$0xff]
                  %328 = vst [vmem:[%s320 + $0x18] sm:$0xff] %v327
                  %v329 = vld [vmem:[%s319 + $0x20] sm:$0xff]
                  %330 = vst [vmem:[%s320 + $0x20] sm:$0xff] %v329
                  %v331 = vld [vmem:[%s319 + $0x28] sm:$0xff]
                  %332 = vst [vmem:[%s320 + $0x28] sm:$0xff] %v331
                  %v333 = vld [vmem:[%s319 + $0x30] sm:$0xff]
                  %334 = vst [vmem:[%s320 + $0x30] sm:$0xff] %v333
                  %v335 = vld [vmem:[%s319 + $0x38] sm:$0xff]
                  %336 = vst [vmem:[%s320 + $0x38] sm:$0xff] %v335
                  %v337 = vld [vmem:[%s319 + $0x40] sm:$0xff]
                  %338 = vst [vmem:[%s320 + $0x40] sm:$0xff] %v337
                  %v339 = vld [vmem:[%s319 + $0x48] sm:$0xff]
                  %340 = vst [vmem:[%s320 + $0x48] sm:$0xff] %v339
                  %v341 = vld [vmem:[%s319 + $0x50] sm:$0xff]
                  %342 = vst [vmem:[%s320 + $0x50] sm:$0xff] %v341
                  %v343 = vld [vmem:[%s319 + $0x58] sm:$0xff]
                  %344 = vst [vmem:[%s320 + $0x58] sm:$0xff] %v343
                  %v345 = vld [vmem:[%s319 + $0x60] sm:$0xff]
                  %346 = vst [vmem:[%s320 + $0x60] sm:$0xff] %v345
                  %v347 = vld [vmem:[%s319 + $0x68] sm:$0xff]
                  %348 = vst [vmem:[%s320 + $0x68] sm:$0xff] %v347
                  %v349 = vld [vmem:[%s319 + $0x70] sm:$0xff]
                  %350 = vst [vmem:[%s320 + $0x70] sm:$0xff] %v349
                  %v351 = vld [vmem:[%s319 + $0x78] sm:$0xff]
                  %352 = vst [vmem:[%s320 + $0x78] sm:$0xff] %v351
                  %v353 = vld [vmem:[%s319 + $0x28] sm:$0xff]
                  %354 = vst [vmem:[%s320 + $0x10] sm:$0xff] %v353
                  %v355 = vld [vmem:[%s319 + $0x30] sm:$0xff]
                  %356 = vst [vmem:[%s320 + $0x18] sm:$0xff] %v355
                  %v357 = vld [vmem:[%s319 + $0x38] sm:$0xff]
                  %358 = vst [vmem:[%s320 + $0x20] sm:$0xff] %v357
                  %v359 = vld [vmem:[%s319 + $0x40] sm:$0xff]
                  %360 = vst [vmem:[%s320 + $0x28] sm:$0xff] %v359
                  %v361 = vld [vmem:[%s319 + $0x48] sm:$0xff]
                  %362 = vst [vmem:[%s320 + $0x30] sm:$0xff] %v361
                  %v363 = vld [vmem:[%s319 + $0x50] sm:$0xff]
                  %364 = vst [vmem:[%s320 + $0x38] sm:$0xff] %v363
                  %v365 = vld [vmem:[%s319 + $0x58] sm:$0xff]
                  %366 = vst [vmem:[%s320 + $0x40] sm:$0xff] %v365
                  %v367 = vld [vmem:[%s319 + $0x60] sm:$0xff]
                  %368 = vst [vmem:[%s320 + $0x48] sm:$0xff] %v367
                  %v369 = vld [vmem:[%s319 + $0x68] sm:$0xff]
                  %370 = vst [vmem:[%s320 + $0x50] sm:$0xff] %v369
                  %v371 = vld [vmem:[%s319 + $0x70] sm:$0xff]
                  %372 = vst [vmem:[%s320 + $0x58] sm:$0xff] %v371
                  %v373 = vld [vmem:[%s319 + $0x78] sm:$0xff]
                  %374 = vst [vmem:[%s320 + $0x60] sm:$0xff] %v373
                  %v375 = vld [vmem:[%s319 + $0x80] sm:$0xff]
                  %376 = vst [vmem:[%s320 + $0x68] sm:$0xff] %v375
                  %v377 = vld [vmem:[%s319 + $0x88] sm:$0xff]
                  %378 = vst [vmem:[%s320 + $0x70] sm:$0xff] %v377
                  %v379 = vld [vmem:[%s319 + $0x90] sm:$0xff]
                  %380 = vst [vmem:[%s320 + $0x78] sm:$0xff] %v379
                  %v381 = vld [vmem:[%s319 + $0x98] sm:$0xff]
                  %382 = vst [vmem:[%s320 + $0x80] sm:$0xff] %v381
                  %v383 = vld [vmem:[%s319 + $0xa0] sm:$0xff]
                  %384 = vst [vmem:[%s320 + $0x88] sm:$0xff] %v383
                  %v385 = vld [vmem:[%s319 + $0x50] sm:$0xff]
                  %386 = vst [vmem:[%s320 + $0x20] sm:$0xff] %v385
                  %v387 = vld [vmem:[%s319 + $0x58] sm:$0xff]
                  %388 = vst [vmem:[%s320 + $0x28] sm:$0xff] %v387
                  %v389 = vld [vmem:[%s319 + $0x60] sm:$0xff]
                  %390 = vst [vmem:[%s320 + $0x30] sm:$0xff] %v389
                  %v391 = vld [vmem:[%s319 + $0x68] sm:$0xff]
                  %392 = vst [vmem:[%s320 + $0x38] sm:$0xff] %v391
                  %v393 = vld [vmem:[%s319 + $0x70] sm:$0xff]
                  %394 = vst [vmem:[%s320 + $0x40] sm:$0xff] %v393
                  %v395 = vld [vmem:[%s319 + $0x78] sm:$0xff]
                  %396 = vst [vmem:[%s320 + $0x48] sm:$0xff] %v395
                  %v397 = vld [vmem:[%s319 + $0x80] sm:$0xff]
                  %398 = vst [vmem:[%s320 + $0x50] sm:$0xff] %v397
                  %v399 = vld [vmem:[%s319 + $0x88] sm:$0xff]
                  %400 = vst [vmem:[%s320 + $0x58] sm:$0xff] %v399
                  %v401 = vld [vmem:[%s319 + $0x90] sm:$0xff]
                  %402 = vst [vmem:[%s320 + $0x60] sm:$0xff] %v401
                  %v403 = vld [vmem:[%s319 + $0x98] sm:$0xff]
                  %404 = vst [vmem:[%s320 + $0x68] sm:$0xff] %v403
                  %v405 = vld [vmem:[%s319 + $0xa0] sm:$0xff]
                  %406 = vst [vmem:[%s320 + $0x70] sm:$0xff] %v405
                  %v407 = vld [vmem:[%s319 + $0xa8] sm:$0xff]
                  %408 = vst [vmem:[%s320 + $0x78] sm:$0xff] %v407
                  %v409 = vld [vmem:[%s319 + $0xb0] sm:$0xff]
                  %410 = vst [vmem:[%s320 + $0x80] sm:$0xff] %v409
                  %v411 = vld [vmem:[%s319 + $0xb8] sm:$0xff]
                  %412 = vst [vmem:[%s320 + $0x88] sm:$0xff] %v411
                  %v413 = vld [vmem:[%s319 + $0xc0] sm:$0xff]
                  %414 = vst [vmem:[%s320 + $0x90] sm:$0xff] %v413
                  %v415 = vld [vmem:[%s319 + $0xc8] sm:$0xff]
                  %416 = vst [vmem:[%s320 + $0x98] sm:$0xff] %v415
                  %v417 = vld [vmem:[%s319 + $0x78] sm:$0xff]
                  %418 = vst [vmem:[%s320 + $0x30] sm:$0xff] %v417
                  %v419 = vld [vmem:[%s319 + $0x80] sm:$0xff]
                  %420 = vst [vmem:[%s320 + $0x38] sm:$0xff] %v419
                  %v421 = vld [vmem:[%s319 + $0x88] sm:$0xff]
                  %422 = vst [vmem:[%s320 + $0x40] sm:$0xff] %v421
                  %v423 = vld [vmem:[%s319 + $0x90] sm:$0xff]
                  %424 = vst [vmem:[%s320 + $0x48] sm:$0xff] %v423
                  %v425 = vld [vmem:[%s319 + $0x98] sm:$0xff]
                  %426 = vst [vmem:[%s320 + $0x50] sm:$0xff] %v425
                  %v427 = vld [vmem:[%s319 + $0xa0] sm:$0xff]
                  %428 = vst [vmem:[%s320 + $0x58] sm:$0xff] %v427
                  %v429 = vld [vmem:[%s319 + $0xa8] sm:$0xff]
                  %430 = vst [vmem:[%s320 + $0x60] sm:$0xff] %v429
                  %v431 = vld [vmem:[%s319 + $0xb0] sm:$0xff]
                  %432 = vst [vmem:[%s320 + $0x68] sm:$0xff] %v431
                  %v433 = vld [vmem:[%s319 + $0xb8] sm:$0xff]
                  %434 = vst [vmem:[%s320 + $0x70] sm:$0xff] %v433
                  %v435 = vld [vmem:[%s319 + $0xc0] sm:$0xff]
                  %436 = vst [vmem:[%s320 + $0x78] sm:$0xff] %v435
                  %v437 = vld [vmem:[%s319 + $0xc8] sm:$0xff]
                  %438 = vst [vmem:[%s320 + $0x80] sm:$0xff] %v437
                  %v439 = vld [vmem:[%s319 + $0xd0] sm:$0xff]
                  %440 = vst [vmem:[%s320 + $0x88] sm:$0xff] %v439
                  %v441 = vld [vmem:[%s319 + $0xd8] sm:$0xff]
                  %442 = vst [vmem:[%s320 + $0x90] sm:$0xff] %v441
                  %v443 = vld [vmem:[%s319 + $0xe0] sm:$0xff]
                  %444 = vst [vmem:[%s320 + $0x98] sm:$0xff] %v443
                  %v445 = vld [vmem:[%s319 + $0xe8] sm:$0xff]
                  %446 = vst [vmem:[%s320 + $0xa0] sm:$0xff] %v445
                  %v447 = vld [vmem:[%s319 + $0xf0] sm:$0xff]
                  %448 = vst [vmem:[%s320 + $0xa8] sm:$0xff] %v447
                  %s449 = sadd.s32 1, %s318
                  %p450 = scmp.ge.s32.totalorder %s449, %s309
                  %s451 = scalar_select %p450, 0, %s449
                  %s452 = smul.u32 %s451, 128
                  %s453 = smul.u32 %s451, 128
                  %s454 = scalar_lea.vmem %s274, %s452
                  %s455 = scalar_lea.vmem %s264, %s453 [#allocation2]
                $region68: #{tpu_custom_call.1} parent=62 // loop_footer
                  %s315 = sadd.s32 %s313, 1
                $region69: #{tpu_custom_call.1} parent=62 // loop_footer_branch
                  %312 = sbr.rel target = $region65
                $region70: #{tpu_custom_call.1} parent=62 // loop_exit
                  _
                %s456 = sshrl.u32 %s308, 4
                %s457 = sand.u32 %s308, 15
                %s458 = smul.u32 %s456, 16
                %s459 = smul.u32 128, %s458
                %s460 = sshra.s32 %s459, 4
                %s461 = scalar_lea.vmem %s274, %s460
                %s462 = smul.u32 128, %s458
                %s463 = sshra.s32 %s462, 4
                %s464 = scalar_lea.vmem %s264, %s463 [#allocation2]
                // While loop
                $region71: #{tpu_custom_call.1} parent=62 // loop_pre_header
                  _
                $region72: #{tpu_custom_call.1} parent=62 // loop_header
                  %s468 = sphi 0, %s470
                  %p469 = scmp.ge.s32.totalorder %s468, %s457
                  %s473 = sphi 0, %s486
                  %s474 = sphi %s461, %s489
                  %s475 = sphi %s464, %s490
                $region73: #{tpu_custom_call.1} parent=62 // loop_header_branch
                  %472 = sbr.rel (%p469) target = $region77
                $region74: #{tpu_custom_call.1} parent=62 // loop_body
                  %v476 = vld [vmem:[%s474] sm:$0xff]
                  %477 = vst [vmem:[%s475] sm:$0xff] %v476
                  %v478 = vld [vmem:[%s474 + $0x28] sm:$0xff]
                  %479 = vst [vmem:[%s475 + $0x10] sm:$0xff] %v478
                  %v480 = vld [vmem:[%s474 + $0x50] sm:$0xff]
                  %481 = vst [vmem:[%s475 + $0x20] sm:$0xff] %v480
                  %v482 = vld [vmem:[%s474 + $0x78] sm:$0xff]
                  %483 = vst [vmem:[%s475 + $0x30] sm:$0xff] %v482
                  %s484 = sadd.s32 1, %s473
                  %p485 = scmp.ge.s32.totalorder %s484, %s457
                  %s486 = scalar_select %p485, 0, %s484
                  %s487 = smul.u32 %s486, 8
                  %s488 = smul.u32 %s486, 8
                  %s489 = scalar_lea.vmem %s461, %s487
                  %s490 = scalar_lea.vmem %s464, %s488 [#allocation2]
                $region75: #{tpu_custom_call.1} parent=62 // loop_footer
                  %s470 = sadd.s32 %s468, 1
                $region76: #{tpu_custom_call.1} parent=62 // loop_footer_branch
                  %467 = sbr.rel target = $region72
                $region77: #{tpu_custom_call.1} parent=62 // loop_exit
                  _
              $region63: #{tpu_custom_call.1} parent=47 // pred_fallthru
                _
              %p491 = pneg %p304
              // Predicated region
              $region78: #{tpu_custom_call.1} parent=47 // pred_check
                _
              $region79: #{tpu_custom_call.1} parent=47 // pred_check_branch
                %493 = sbr.rel (%p304) target = $region81
              $region80: #{tpu_custom_call.1} parent=47 // pred_region
                %s494 = sand.u32 %s275, 7
                %s495 = ssub.s32 %s275, %s494
                %s496 = scalar_lea.vmem %s274, %s495
                %s497 = ssub.s32 %s275, %s494
                %s498 = scalar_lea.vmem %s264, %s497 [#allocation2]
                %s499 = sshrl.u32 %s275, 3
                %s500 = sshrl.u32 %s499, 4
                // While loop
                $region82: #{tpu_custom_call.1} parent=80 // loop_pre_header
                  _
                $region83: #{tpu_custom_call.1} parent=80 // loop_header
                  %s504 = sphi 0, %s506
                  %p505 = scmp.ge.s32.totalorder %s504, %s500
                  %s509 = sphi 0, %s642
                  %s510 = sphi %s274, %s645
                  %s511 = sphi %s264, %s646
                $region84: #{tpu_custom_call.1} parent=80 // loop_header_branch
                  %508 = sbr.rel (%p505) target = $region88
                $region85: #{tpu_custom_call.1} parent=80 // loop_body
                  %v512 = vld [vmem:[%s510] sm:$0xff]
                  %513 = vst [vmem:[%s511] sm:$0xff] %v512
                  %v514 = vld [vmem:[%s510 + $0x8] sm:$0xff]
                  %515 = vst [vmem:[%s511 + $0x8] sm:$0xff] %v514
                  %v516 = vld [vmem:[%s510 + $0x10] sm:$0xff]
                  %517 = vst [vmem:[%s511 + $0x10] sm:$0xff] %v516
                  %v518 = vld [vmem:[%s510 + $0x18] sm:$0xff]
                  %519 = vst [vmem:[%s511 + $0x18] sm:$0xff] %v518
                  %v520 = vld [vmem:[%s510 + $0x20] sm:$0xff]
                  %521 = vst [vmem:[%s511 + $0x20] sm:$0xff] %v520
                  %v522 = vld [vmem:[%s510 + $0x28] sm:$0xff]
                  %523 = vst [vmem:[%s511 + $0x28] sm:$0xff] %v522
                  %v524 = vld [vmem:[%s510 + $0x30] sm:$0xff]
                  %525 = vst [vmem:[%s511 + $0x30] sm:$0xff] %v524
                  %v526 = vld [vmem:[%s510 + $0x38] sm:$0xff]
                  %527 = vst [vmem:[%s511 + $0x38] sm:$0xff] %v526
                  %v528 = vld [vmem:[%s510 + $0x40] sm:$0xff]
                  %529 = vst [vmem:[%s511 + $0x40] sm:$0xff] %v528
                  %v530 = vld [vmem:[%s510 + $0x48] sm:$0xff]
                  %531 = vst [vmem:[%s511 + $0x48] sm:$0xff] %v530
                  %v532 = vld [vmem:[%s510 + $0x50] sm:$0xff]
                  %533 = vst [vmem:[%s511 + $0x50] sm:$0xff] %v532
                  %v534 = vld [vmem:[%s510 + $0x58] sm:$0xff]
                  %535 = vst [vmem:[%s511 + $0x58] sm:$0xff] %v534
                  %v536 = vld [vmem:[%s510 + $0x60] sm:$0xff]
                  %537 = vst [vmem:[%s511 + $0x60] sm:$0xff] %v536
                  %v538 = vld [vmem:[%s510 + $0x68] sm:$0xff]
                  %539 = vst [vmem:[%s511 + $0x68] sm:$0xff] %v538
                  %v540 = vld [vmem:[%s510 + $0x70] sm:$0xff]
                  %541 = vst [vmem:[%s511 + $0x70] sm:$0xff] %v540
                  %v542 = vld [vmem:[%s510 + $0x78] sm:$0xff]
                  %543 = vst [vmem:[%s511 + $0x78] sm:$0xff] %v542
                  %v544 = vld [vmem:[%s510 + $0x28] sm:$0xff]
                  %545 = vst [vmem:[%s511 + $0x10] sm:$0xff] %v544
                  %v546 = vld [vmem:[%s510 + $0x30] sm:$0xff]
                  %547 = vst [vmem:[%s511 + $0x18] sm:$0xff] %v546
                  %v548 = vld [vmem:[%s510 + $0x38] sm:$0xff]
                  %549 = vst [vmem:[%s511 + $0x20] sm:$0xff] %v548
                  %v550 = vld [vmem:[%s510 + $0x40] sm:$0xff]
                  %551 = vst [vmem:[%s511 + $0x28] sm:$0xff] %v550
                  %v552 = vld [vmem:[%s510 + $0x48] sm:$0xff]
                  %553 = vst [vmem:[%s511 + $0x30] sm:$0xff] %v552
                  %v554 = vld [vmem:[%s510 + $0x50] sm:$0xff]
                  %555 = vst [vmem:[%s511 + $0x38] sm:$0xff] %v554
                  %v556 = vld [vmem:[%s510 + $0x58] sm:$0xff]
                  %557 = vst [vmem:[%s511 + $0x40] sm:$0xff] %v556
                  %v558 = vld [vmem:[%s510 + $0x60] sm:$0xff]
                  %559 = vst [vmem:[%s511 + $0x48] sm:$0xff] %v558
                  %v560 = vld [vmem:[%s510 + $0x68] sm:$0xff]
                  %561 = vst [vmem:[%s511 + $0x50] sm:$0xff] %v560
                  %v562 = vld [vmem:[%s510 + $0x70] sm:$0xff]
                  %563 = vst [vmem:[%s511 + $0x58] sm:$0xff] %v562
                  %v564 = vld [vmem:[%s510 + $0x78] sm:$0xff]
                  %565 = vst [vmem:[%s511 + $0x60] sm:$0xff] %v564
                  %v566 = vld [vmem:[%s510 + $0x80] sm:$0xff]
                  %567 = vst [vmem:[%s511 + $0x68] sm:$0xff] %v566
                  %v568 = vld [vmem:[%s510 + $0x88] sm:$0xff]
                  %569 = vst [vmem:[%s511 + $0x70] sm:$0xff] %v568
                  %v570 = vld [vmem:[%s510 + $0x90] sm:$0xff]
                  %571 = vst [vmem:[%s511 + $0x78] sm:$0xff] %v570
                  %v572 = vld [vmem:[%s510 + $0x98] sm:$0xff]
                  %573 = vst [vmem:[%s511 + $0x80] sm:$0xff] %v572
                  %v574 = vld [vmem:[%s510 + $0xa0] sm:$0xff]
                  %575 = vst [vmem:[%s511 + $0x88] sm:$0xff] %v574
                  %v576 = vld [vmem:[%s510 + $0x50] sm:$0xff]
                  %577 = vst [vmem:[%s511 + $0x20] sm:$0xff] %v576
                  %v578 = vld [vmem:[%s510 + $0x58] sm:$0xff]
                  %579 = vst [vmem:[%s511 + $0x28] sm:$0xff] %v578
                  %v580 = vld [vmem:[%s510 + $0x60] sm:$0xff]
                  %581 = vst [vmem:[%s511 + $0x30] sm:$0xff] %v580
                  %v582 = vld [vmem:[%s510 + $0x68] sm:$0xff]
                  %583 = vst [vmem:[%s511 + $0x38] sm:$0xff] %v582
                  %v584 = vld [vmem:[%s510 + $0x70] sm:$0xff]
                  %585 = vst [vmem:[%s511 + $0x40] sm:$0xff] %v584
                  %v586 = vld [vmem:[%s510 + $0x78] sm:$0xff]
                  %587 = vst [vmem:[%s511 + $0x48] sm:$0xff] %v586
                  %v588 = vld [vmem:[%s510 + $0x80] sm:$0xff]
                  %589 = vst [vmem:[%s511 + $0x50] sm:$0xff] %v588
                  %v590 = vld [vmem:[%s510 + $0x88] sm:$0xff]
                  %591 = vst [vmem:[%s511 + $0x58] sm:$0xff] %v590
                  %v592 = vld [vmem:[%s510 + $0x90] sm:$0xff]
                  %593 = vst [vmem:[%s511 + $0x60] sm:$0xff] %v592
                  %v594 = vld [vmem:[%s510 + $0x98] sm:$0xff]
                  %595 = vst [vmem:[%s511 + $0x68] sm:$0xff] %v594
                  %v596 = vld [vmem:[%s510 + $0xa0] sm:$0xff]
                  %597 = vst [vmem:[%s511 + $0x70] sm:$0xff] %v596
                  %v598 = vld [vmem:[%s510 + $0xa8] sm:$0xff]
                  %599 = vst [vmem:[%s511 + $0x78] sm:$0xff] %v598
                  %v600 = vld [vmem:[%s510 + $0xb0] sm:$0xff]
                  %601 = vst [vmem:[%s511 + $0x80] sm:$0xff] %v600
                  %v602 = vld [vmem:[%s510 + $0xb8] sm:$0xff]
                  %603 = vst [vmem:[%s511 + $0x88] sm:$0xff] %v602
                  %v604 = vld [vmem:[%s510 + $0xc0] sm:$0xff]
                  %605 = vst [vmem:[%s511 + $0x90] sm:$0xff] %v604
                  %v606 = vld [vmem:[%s510 + $0xc8] sm:$0xff]
                  %607 = vst [vmem:[%s511 + $0x98] sm:$0xff] %v606
                  %v608 = vld [vmem:[%s510 + $0x78] sm:$0xff]
                  %609 = vst [vmem:[%s511 + $0x30] sm:$0xff] %v608
                  %v610 = vld [vmem:[%s510 + $0x80] sm:$0xff]
                  %611 = vst [vmem:[%s511 + $0x38] sm:$0xff] %v610
                  %v612 = vld [vmem:[%s510 + $0x88] sm:$0xff]
                  %613 = vst [vmem:[%s511 + $0x40] sm:$0xff] %v612
                  %v614 = vld [vmem:[%s510 + $0x90] sm:$0xff]
                  %615 = vst [vmem:[%s511 + $0x48] sm:$0xff] %v614
                  %v616 = vld [vmem:[%s510 + $0x98] sm:$0xff]
                  %617 = vst [vmem:[%s511 + $0x50] sm:$0xff] %v616
                  %v618 = vld [vmem:[%s510 + $0xa0] sm:$0xff]
                  %619 = vst [vmem:[%s511 + $0x58] sm:$0xff] %v618
                  %v620 = vld [vmem:[%s510 + $0xa8] sm:$0xff]
                  %621 = vst [vmem:[%s511 + $0x60] sm:$0xff] %v620
                  %v622 = vld [vmem:[%s510 + $0xb0] sm:$0xff]
                  %623 = vst [vmem:[%s511 + $0x68] sm:$0xff] %v622
                  %v624 = vld [vmem:[%s510 + $0xb8] sm:$0xff]
                  %625 = vst [vmem:[%s511 + $0x70] sm:$0xff] %v624
                  %v626 = vld [vmem:[%s510 + $0xc0] sm:$0xff]
                  %627 = vst [vmem:[%s511 + $0x78] sm:$0xff] %v626
                  %v628 = vld [vmem:[%s510 + $0xc8] sm:$0xff]
                  %629 = vst [vmem:[%s511 + $0x80] sm:$0xff] %v628
                  %v630 = vld [vmem:[%s510 + $0xd0] sm:$0xff]
                  %631 = vst [vmem:[%s511 + $0x88] sm:$0xff] %v630
                  %v632 = vld [vmem:[%s510 + $0xd8] sm:$0xff]
                  %633 = vst [vmem:[%s511 + $0x90] sm:$0xff] %v632
                  %v634 = vld [vmem:[%s510 + $0xe0] sm:$0xff]
                  %635 = vst [vmem:[%s511 + $0x98] sm:$0xff] %v634
                  %v636 = vld [vmem:[%s510 + $0xe8] sm:$0xff]
                  %637 = vst [vmem:[%s511 + $0xa0] sm:$0xff] %v636
                  %v638 = vld [vmem:[%s510 + $0xf0] sm:$0xff]
                  %639 = vst [vmem:[%s511 + $0xa8] sm:$0xff] %v638
                  %s640 = sadd.s32 1, %s509
                  %p641 = scmp.ge.s32.totalorder %s640, %s500
                  %s642 = scalar_select %p641, 0, %s640
                  %s643 = smul.u32 %s642, 128
                  %s644 = smul.u32 %s642, 128
                  %s645 = scalar_lea.vmem %s274, %s643
                  %s646 = scalar_lea.vmem %s264, %s644 [#allocation2]
                $region86: #{tpu_custom_call.1} parent=80 // loop_footer
                  %s506 = sadd.s32 %s504, 1
                $region87: #{tpu_custom_call.1} parent=80 // loop_footer_branch
                  %503 = sbr.rel target = $region83
                $region88: #{tpu_custom_call.1} parent=80 // loop_exit
                  _
                %s647 = sshrl.u32 %s499, 4
                %s648 = sand.u32 %s499, 15
                %s649 = smul.u32 %s647, 16
                %s650 = smul.u32 128, %s649
                %s651 = sshra.s32 %s650, 4
                %s652 = scalar_lea.vmem %s274, %s651
                %s653 = smul.u32 128, %s649
                %s654 = sshra.s32 %s653, 4
                %s655 = scalar_lea.vmem %s264, %s654 [#allocation2]
                // While loop
                $region89: #{tpu_custom_call.1} parent=80 // loop_pre_header
                  _
                $region90: #{tpu_custom_call.1} parent=80 // loop_header
                  %s659 = sphi 0, %s661
                  %p660 = scmp.ge.s32.totalorder %s659, %s648
                  %s664 = sphi 0, %s677
                  %s665 = sphi %s652, %s680
                  %s666 = sphi %s655, %s681
                $region91: #{tpu_custom_call.1} parent=80 // loop_header_branch
                  %663 = sbr.rel (%p660) target = $region95
                $region92: #{tpu_custom_call.1} parent=80 // loop_body
                  %v667 = vld [vmem:[%s665] sm:$0xff]
                  %668 = vst [vmem:[%s666] sm:$0xff] %v667
                  %v669 = vld [vmem:[%s665 + $0x28] sm:$0xff]
                  %670 = vst [vmem:[%s666 + $0x10] sm:$0xff] %v669
                  %v671 = vld [vmem:[%s665 + $0x50] sm:$0xff]
                  %672 = vst [vmem:[%s666 + $0x20] sm:$0xff] %v671
                  %v673 = vld [vmem:[%s665 + $0x78] sm:$0xff]
                  %674 = vst [vmem:[%s666 + $0x30] sm:$0xff] %v673
                  %s675 = sadd.s32 1, %s664
                  %p676 = scmp.ge.s32.totalorder %s675, %s648
                  %s677 = scalar_select %p676, 0, %s675
                  %s678 = smul.u32 %s677, 8
                  %s679 = smul.u32 %s677, 8
                  %s680 = scalar_lea.vmem %s652, %s678
                  %s681 = scalar_lea.vmem %s655, %s679 [#allocation2]
                $region93: #{tpu_custom_call.1} parent=80 // loop_footer
                  %s661 = sadd.s32 %s659, 1
                $region94: #{tpu_custom_call.1} parent=80 // loop_footer_branch
                  %658 = sbr.rel target = $region90
                $region95: #{tpu_custom_call.1} parent=80 // loop_exit
                  _
                %s682 = sshllo.u32 0, %s494
                loop: start=0, step=1, limit=1
                $region96: #{tpu_custom_call.1} parent=80 // loop_pre_header
                  _
                $region97: #{tpu_custom_call.1} parent=80 // loop_header
                  %s684 = sphi 0, %s688
                  %p685 = scmp.ge.s32.totalorder %s684, 1
                  %s689 = sphi %s496, %s496
                  %s690 = sphi %s498, %s498
                $region98: #{tpu_custom_call.1} parent=80 // loop_header_branch
                  %687 = sbr.rel (%p685) target = $region102
                $region99: #{tpu_custom_call.1} parent=80 // loop_body
                  %v691 = vld [vmem:[%s689] sm:%s682]
                  %692 = vst [vmem:[%s690] sm:%s682] %v691
                  %v693 = vld [vmem:[%s689 + $0x28] sm:%s682]
                  %694 = vst [vmem:[%s690 + $0x10] sm:%s682] %v693
                  %v695 = vld [vmem:[%s689 + $0x50] sm:%s682]
                  %696 = vst [vmem:[%s690 + $0x20] sm:%s682] %v695
                  %v697 = vld [vmem:[%s689 + $0x78] sm:%s682]
                  %698 = vst [vmem:[%s690 + $0x30] sm:%s682] %v697
                $region100: #{tpu_custom_call.1} parent=80 // loop_footer
                  %s688 = sadd.s32 1, %s684
                $region101: #{tpu_custom_call.1} parent=80 // loop_footer_branch
                  %683 = sbr.rel target = $region97
                $region102: #{tpu_custom_call.1} parent=80 // loop_exit
                  _
              $region81: #{tpu_custom_call.1} parent=47 // pred_fallthru
                _
            $region48: #{tpu_custom_call.1} parent=43 // pred_fallthru
              _
            // Predicated region
            $region49: #{tpu_custom_call.1} parent=43 // pred_check
              %p283 = pneg %p279
            $region50: #{tpu_custom_call.1} parent=43 // pred_check_branch
              %285 = sbr.rel (%p283) target = $region52
            $region51: #{tpu_custom_call.1} parent=43 // pred_region
              %s286 = sshllo.u32 0, %s275
              loop: start=0, step=1, limit=1
              $region53: #{tpu_custom_call.1} parent=51 // loop_pre_header
                _
              $region54: #{tpu_custom_call.1} parent=51 // loop_header
                %s288 = sphi 0, %s292
                %p289 = scmp.ge.s32.totalorder %s288, 1
                %s293 = sphi %s274, %s274
                %s294 = sphi %s264, %s264
              $region55: #{tpu_custom_call.1} parent=51 // loop_header_branch
                %291 = sbr.rel (%p289) target = $region59
              $region56: #{tpu_custom_call.1} parent=51 // loop_body
                %v295 = vld [vmem:[%s293] sm:%s286]
                %296 = vst [vmem:[%s294] sm:%s286] %v295
                %v297 = vld [vmem:[%s293 + $0x28] sm:%s286]
                %298 = vst [vmem:[%s294 + $0x10] sm:%s286] %v297
                %v299 = vld [vmem:[%s293 + $0x50] sm:%s286]
                %300 = vst [vmem:[%s294 + $0x20] sm:%s286] %v299
                %v301 = vld [vmem:[%s293 + $0x78] sm:%s286]
                %302 = vst [vmem:[%s294 + $0x30] sm:%s286] %v301
              $region57: #{tpu_custom_call.1} parent=51 // loop_footer
                %s292 = sadd.s32 1, %s288
              $region58: #{tpu_custom_call.1} parent=51 // loop_footer_branch
                %287 = sbr.rel target = $region54
              $region59: #{tpu_custom_call.1} parent=51 // loop_exit
                _
            $region52: #{tpu_custom_call.1} parent=43 // pred_fallthru
              _
          $region44: #{tpu_custom_call.1} parent=39 // pred_fallthru
            _
          %699 = vnop
        $region40: #{tpu_custom_call.1} parent=35 // pred_fallthru
          _
        // Predicated region
        $region103: #{tpu_custom_call.1} parent=35 // pred_check
          %p700 = pneg %p85
        $region104: #{tpu_custom_call.1} parent=35 // pred_check_branch
          %702 = sbr.rel (%p700) target = $region106
        $region105: #{tpu_custom_call.1} parent=35 // pred_region
          %s703 = sand.u32 %s75, 1
          %s704 = scalar_lea.sflag [#allocation4], %s703
          %s705 = sand.u32 %s75, 1
          %s706 = smul.addr %s705, 32
          %s707 = scalar_lea.vmem [#allocation3], %s706
          %s708 = sadd.s32 %s27, 1
          %s709 = smul.u32 %s708, 2
          %s711 = ssub.s32 512, 512
          %712 = vsyncadd %s704, %s711
          %s713 = smul.addr %s26, 20
          %s714 = sadd.s32 %s709, %s713
          %s715 = smul.addr %s714, 128
          %s716 = scalar_lea.hbm %s1, %s715
          %s717 = sshll.u32 %s707, 4
          %s718 = int_to_ptr.vmem [resolvable:$true] %s717
          %723 = dma.hbm_to_vmem [thread:$0]  %s716, 512, %s718, %s704, 640, 128, 8
        $region106: #{tpu_custom_call.1} parent=35 // pred_fallthru
          _
      $region36: #{tpu_custom_call.1} parent=5 // pred_fallthru
        _
      %p724 = scmp.le.s32.totalorder 1, %s19
      %p725 = scmp.lt.s32.totalorder %s19, 5
      %p726 = pnand %p724, %p725
      %p727 = pneg %p726
      // Predicated region
      $region107: #{tpu_custom_call.1} parent=5 // pred_check
        _
      $region108: #{tpu_custom_call.1} parent=5 // pred_check_branch
        %729 = sbr.rel (%p726) target = $region110
      $region109: #{tpu_custom_call.1} parent=5 // pred_region
        %s730 = ssub.s32 %s19, 1
        %s731 = sand.u32 %s46, 1
        %s732 = sand.u32 %s46, 1
        %s733 = smul.addr %s732, 64
        %s734 = scalar_lea.vmem [#allocation2], %s733
        // Predicated region
        $region111: #{tpu_custom_call.1} parent=109 // pred_check
          %p735 = pneg %p59
        $region112: #{tpu_custom_call.1} parent=109 // pred_check_branch
          %737 = sbr.rel (%p735) target = $region114
        $region113: #{tpu_custom_call.1} parent=109 // pred_region
          _
        $region114: #{tpu_custom_call.1} parent=109 // pred_fallthru
          _
        %s738 = sand.u32 %s78, 1
        %s739 = scalar_lea.sflag [#allocation4], %s738
        %s740 = sand.u32 %s78, 1
        %s741 = smul.addr %s740, 32
        %s742 = scalar_lea.vmem [#allocation3], %s741
        // Predicated region
        $region115: #{tpu_custom_call.1} parent=109 // pred_check
          %p743 = pneg %p91
        $region116: #{tpu_custom_call.1} parent=109 // pred_check_branch
          %745 = sbr.rel (%p743) target = $region118
        $region117: #{tpu_custom_call.1} parent=109 // pred_region
          %746 = dma.done %s739, 512
        $region118: #{tpu_custom_call.1} parent=109 // pred_fallthru
          _
        %s747 = sand.u32 %s46, 1
        %s748 = sand.u32 %s46, 1
        %s749 = smul.addr %s748, 64
        %s750 = scalar_lea.vmem [#allocation2], %s749
        %p751 = pneg %p59
        %p752 = pneg %p56
        %s753 = sand.u32 %s78, 1
        %s754 = scalar_lea.sflag [#allocation4], %s753
        %s755 = sand.u32 %s78, 1
        %s756 = smul.addr %s755, 32
        %s757 = scalar_lea.vmem [#allocation3], %s756
        %p758 = pneg %p91
        %p759 = pneg %p88
        %p760 = pneg %p112
        %p761 = pneg %p109
        %p762 = pneg %p133
        %p763 = pneg %p130
        %p764 = pneg %p154
        %p765 = pneg %p151
        %p766 = pneg %p175
        %p767 = pneg %p172
        %p768 = pneg %p196
        %p769 = pneg %p193
        %p770 = pneg %p224
        %p771 = pneg %p221
        %s772 = sand.u32 %s211, 1
        %s773 = scalar_lea.sflag [#allocation5], %s772
        %s774 = sand.u32 %s211, 1
        %s775 = smul.addr %s774, 64
        %s776 = scalar_lea.vmem [#allocation6], %s775
        %s777 = smul.u32 2, %s29
        %s778 = ssub.s32 5, %s777
        %p779 = scmp.lt.s32.totalorder %s778, 2
        %s780 = scalar_select %p779, %s778, 2
        %s781 = smul.u32 512, %s780
        %s782 = sadd.s32 %s29, 1
        %s783 = smul.u32 %s782, 2
        %v785 = vld [vmem:[%s734] sm:$0xff]
        %v786 = vld [vmem:[%s734 + $0x8] sm:$0xff]
        %v787 = vld [vmem:[%s734 + $0x10] sm:$0xff]
        %v788 = vld [vmem:[%s734 + $0x18] sm:$0xff]
        %v789 = vld [vmem:[%s734 + $0x20] sm:$0xff]
        %v790 = vld [vmem:[%s734 + $0x28] sm:$0xff]
        %v791 = vld [vmem:[%s734 + $0x30] sm:$0xff]
        %v792 = vld [vmem:[%s734 + $0x38] sm:$0xff]
        %v793 = vld [vmem:[%s742] sm:$0xff]
        %v794 = vld [vmem:[%s742 + $0x8] sm:$0xff]
        %v795 = vld [vmem:[%s742 + $0x10] sm:$0xff]
        %v796 = vld [vmem:[%s742 + $0x18] sm:$0xff]
        %797 = vrot.lane.b32.xlu0 %v785, 127
        %v798 = vpop.permute.xlu0 %797
        %799 = vrot.lane.b32.xlu0 %v787, 127
        %v800 = vpop.permute.xlu0 %799
        %801 = vrot.lane.b32.xlu0 %v789, 127
        %v802 = vpop.permute.xlu0 %801
        %803 = vrot.lane.b32.xlu0 %v791, 127
        %v804 = vpop.permute.xlu0 %803
        %805 = vrot.lane.b32.xlu0 %v786, 127
        %v806 = vpop.permute.xlu0 %805
        %807 = vrot.lane.b32.xlu0 %v788, 127
        %v808 = vpop.permute.xlu0 %807
        %809 = vrot.lane.b32.xlu0 %v790, 127
        %v810 = vpop.permute.xlu0 %809
        %811 = vrot.lane.b32.xlu0 %v792, 127
        %v812 = vpop.permute.xlu0 %811
        %813 = vrot.lane.b32.xlu0 %v793, 127
        %v814 = vpop.permute.xlu0 %813
        %815 = vrot.lane.b32.xlu0 %v794, 127
        %v816 = vpop.permute.xlu0 %815
        %817 = vrot.lane.b32.xlu0 %v795, 127
        %v818 = vpop.permute.xlu0 %817
        %819 = vrot.lane.b32.xlu0 %v796, 127
        %v820 = vpop.permute.xlu0 %819
        %v821 = vlaneseq
        %v822 = vand.u32 %v821, 127
        %vm823 = vcmp.lt.s32.totalorder %v822, 127
        %v824 = vsel %vm823, %v806, %v814
        %v825 = vsel %vm823, %v808, %v816
        %v826 = vsel %vm823, %v810, %v818
        %v827 = vsel %vm823, %v812, %v820
        %v828 = vsel %vm823, %v798, %v806
        %v829 = vsel %vm823, %v800, %v808
        %v830 = vsel %vm823, %v802, %v810
        %v831 = vsel %vm823, %v804, %v812
        %v832 = vsel %vm823, %v814, %v798
        %v833 = vsel %vm823, %v816, %v800
        %v834 = vsel %vm823, %v818, %v802
        %v835 = vsel %vm823, %v820, %v804
        %v836 = vld [vmem:[%s2] sm:$0xff]
        %v837 = vld [vmem:[%s2 + $0x8] sm:$0xff]
        %v838 = vld [vmem:[%s2 + $0x10] sm:$0xff]
        %v839 = vld [vmem:[%s2 + $0x18] sm:$0xff]
        %v840 = vld [vmem:[%s2 + $0x20] sm:$0xff]
        %v841 = vld [vmem:[%s2 + $0x28] sm:$0xff]
        %v842 = vld [vmem:[%s2 + $0x30] sm:$0xff]
        %v843 = vld [vmem:[%s2 + $0x38] sm:$0xff]
        %v844 = vld [vmem:[%s2 + $0x40] sm:$0xff]
        %v845 = vld [vmem:[%s2 + $0x48] sm:$0xff]
        %vm846 = vcmask 523264
        %v848 = vsel %vm846, %v836, 0
        %v851 = vsel %vm846, %v837, 0
        %v854 = vsel %vm846, %v838, 0
        %v857 = vsel %vm846, %v839, 0
        %v860 = vsel %vm846, %v840, 0
        %v863 = vsel %vm846, %v841, 0
        %v866 = vsel %vm846, %v842, 0
        %v869 = vsel %vm846, %v843, 0
        %v872 = vsel %vm846, %v844, 0
        %v875 = vsel %vm846, %v845, 0
        %877 = vmatprep.subr.mxu0 %v786
        %878 = vmatpush1.msra.mxu0 %v785
        %879 = vmatprep.subr.mxu0 %v788
        %880 = vmatpush1.msra.mxu0 %v787
        %881 = vmatprep.subr.mxu0 %v790
        %882 = vmatpush1.msra.mxu0 %v789
        %883 = vmatprep.subr.mxu0 %v792
        %884 = vmatpush1.msra.mxu0 %v791
        %885 = vmatprep.subr.mxu0 %v824
        %886 = vmatpush1.msra.mxu0 %v828
        %887 = vmatprep.subr.mxu0 %v825
        %888 = vmatpush1.msra.mxu0 %v829
        %889 = vmatprep.subr.mxu0 %v826
        %890 = vmatpush1.msra.mxu0 %v830
        %891 = vmatprep.subr.mxu0 %v827
        %892 = vmatpush1.msra.mxu0 %v831
        %893 = vmatprep.subr.mxu0 0.0
        %894 = vmatpush1.msra.mxu0 0.0
        %895 = vmatprep.subr.mxu0 0.0
        %896 = vmatpush1.msra.mxu0 0.0
        %897 = vmatprep.subr.mxu0 0.0
        %898 = vmatpush1.msra.mxu0 0.0
        %899 = vmatprep.subr.mxu0 0.0
        %900 = vmatpush1.msra.mxu0 0.0
        %901 = vmatprep.subr.mxu0 0.0
        %902 = vmatpush1.msra.mxu0 0.0
        %903 = vmatprep.subr.mxu0 0.0
        %904 = vmatpush1.msra.mxu0 0.0
        %905 = vmatprep.subr.mxu0 0.0
        %906 = vmatpush1.msra.mxu0 0.0
        %907 = vmatprep.subr.mxu0 0.0
        %908 = vmatpush1.msra.mxu0 0.0
        %909 = vmatprep.subr.mxu0 0.0
        %910 = vmatpush1.msra.mxu0 0.0
        %911 = vmatprep.subr.mxu0 0.0
        %912 = vmatpush1.msra.mxu0 0.0
        %913 = vmatprep.subr.mxu0 0.0
        %914 = vmatpush1.msra.mxu0 0.0
        %915 = vmatprep.subr.mxu0 0.0
        %916 = vmatpush1.msra.mxu0 0.0
        %917 = vmatprep.subr.mxu0 0.0
        %918 = vmatpush1.msra.mxu0 0.0
        %919 = vmatprep.subr.mxu0 0.0
        %920 = vmatpush1.msra.mxu0 0.0
        %921 = vmatprep.subr.mxu0 0.0
        %922 = vmatpush1.msra.mxu0 0.0
        %923 = vmatprep.subr.mxu0 0.0
        %924 = vmatpush1.msra.mxu0 0.0
        %925 = vmatprep.subr.mxu0 0.0
        %926 = vmatpush1.msra.mxu0 0.0
        %927 = vmatprep.subr.mxu0 0.0
        %928 = vmatpush1.msra.mxu0 0.0
        %929 = vmatprep.subr.mxu0 0.0
        %930 = vmatpush1.msra.mxu0 0.0
        %931 = vmatprep.subr.mxu0 0.0
        %932 = vmatpush1.msra.mxu0 0.0
        %933 = vmatprep.subr.mxu0 0.0
        %934 = vmatpush1.msra.mxu0 0.0
        %935 = vmatprep.subr.mxu0 0.0
        %936 = vmatpush1.msra.mxu0 0.0
        %937 = vmatprep.subr.mxu0 0.0
        %938 = vmatpush1.msra.mxu0 0.0
        %939 = vmatprep.subr.mxu0 0.0
        %940 = vmatpush1.msra.mxu0 0.0
        %941 = vmatprep.mubr.f32.mxu0 0.0
        %942 = vmatmul.mubr.f32.gmra.mrb[0].mxu0 %v848
        %v943 = vpop.f32.mrb[0].mxu0
        %v944 = vadd.f32 0.0, %v943
        %v945 = vpop.f32.mrb[0].mxu0
        %v946 = vadd.f32 0.0, %v945
        %947 = vmatprep.mubr.f32.mxu0 0.0
        %948 = vmatmul.mubr.f32.gmra.mrb[0].mxu0 %v851
        %v949 = vpop.f32.mrb[0].mxu0
        %v950 = vadd.f32 0.0, %v949
        %v951 = vpop.f32.mrb[0].mxu0
        %v952 = vadd.f32 0.0, %v951
        %953 = vmatprep.mubr.f32.mxu0 0.0
        %954 = vmatmul.mubr.f32.gmra.mrb[0].mxu0 %v854
        %v955 = vpop.f32.mrb[0].mxu0
        %v956 = vadd.f32 0.0, %v955
        %v957 = vpop.f32.mrb[0].mxu0
        %v958 = vadd.f32 0.0, %v957
        %959 = vmatprep.mubr.f32.mxu0 0.0
        %960 = vmatmul.mubr.f32.gmra.mrb[0].mxu0 %v857
        %v961 = vpop.f32.mrb[0].mxu0
        %v962 = vadd.f32 0.0, %v961
        %v963 = vpop.f32.mrb[0].mxu0
        %v964 = vadd.f32 0.0, %v963
        %965 = vmatprep.mubr.f32.mxu0 0.0
        %966 = vmatmul.mubr.f32.gmra.mrb[0].mxu0 %v860
        %v967 = vpop.f32.mrb[0].mxu0
        %v968 = vadd.f32 0.0, %v967
        %v969 = vpop.f32.mrb[0].mxu0
        %v970 = vadd.f32 0.0, %v969
        %971 = vmatprep.mubr.f32.mxu0 0.0
        %972 = vmatmul.mubr.f32.gmra.mrb[0].mxu0 %v863
        %v973 = vpop.f32.mrb[0].mxu0
        %v974 = vadd.f32 0.0, %v973
        %v975 = vpop.f32.mrb[0].mxu0
        %v976 = vadd.f32 0.0, %v975
        %977 = vmatprep.mubr.f32.mxu0 0.0
        %978 = vmatmul.mubr.f32.gmra.mrb[0].mxu0 %v866
        %v979 = vpop.f32.mrb[0].mxu0
        %v980 = vadd.f32 0.0, %v979
        %v981 = vpop.f32.mrb[0].mxu0
        %v982 = vadd.f32 0.0, %v981
        %983 = vmatprep.mubr.f32.mxu0 0.0
        %984 = vmatmul.mubr.f32.gmra.mrb[0].mxu0 %v869
        %v985 = vpop.f32.mrb[0].mxu0
        %v986 = vadd.f32 0.0, %v985
        %v987 = vpop.f32.mrb[0].mxu0
        %v988 = vadd.f32 0.0, %v987
        %989 = vmatprep.mubr.f32.mxu0 0.0
        %990 = vmatmul.mubr.f32.gmra.mrb[0].mxu0 %v872
        %v991 = vpop.f32.mrb[0].mxu0
        %v992 = vadd.f32 0.0, %v991
        %v993 = vpop.f32.mrb[0].mxu0
        %v994 = vadd.f32 0.0, %v993
        %995 = vmatprep.mubr.f32.mxu0 0.0
        %996 = vmatmul.mubr.f32.gmra.mrb[0].mxu0 %v875
        %v997 = vpop.f32.mrb[0].mxu0
        %v998 = vadd.f32 0.0, %v997
        %v999 = vpop.f32.mrb[0].mxu0
        %v1000 = vadd.f32 0.0, %v999
        %1001 = vdwg.mxu0
        %1002 = vmatprep.subr.mxu0 0.0
        %1003 = vmatpush1.msra.mxu0 %v793
        %1004 = vmatprep.subr.mxu0 0.0
        %1005 = vmatpush1.msra.mxu0 %v794
        %1006 = vmatprep.subr.mxu0 0.0
        %1007 = vmatpush1.msra.mxu0 %v795
        %1008 = vmatprep.subr.mxu0 0.0
        %1009 = vmatpush1.msra.mxu0 %v796
        %1010 = vmatprep.subr.mxu0 0.0
        %1011 = vmatpush1.msra.mxu0 %v832
        %1012 = vmatprep.subr.mxu0 0.0
        %1013 = vmatpush1.msra.mxu0 %v833
        %1014 = vmatprep.subr.mxu0 0.0
        %1015 = vmatpush1.msra.mxu0 %v834
        %1016 = vmatprep.subr.mxu0 0.0
        %1017 = vmatpush1.msra.mxu0 %v835
        %1018 = vmatprep.subr.mxu0 0.0
        %1019 = vmatpush1.msra.mxu0 0.0
        %1020 = vmatprep.subr.mxu0 0.0
        %1021 = vmatpush1.msra.mxu0 0.0
        %1022 = vmatprep.subr.mxu0 0.0
        %1023 = vmatpush1.msra.mxu0 0.0
        %1024 = vmatprep.subr.mxu0 0.0
        %1025 = vmatpush1.msra.mxu0 0.0
        %1026 = vmatprep.subr.mxu0 0.0
        %1027 = vmatpush1.msra.mxu0 0.0
        %1028 = vmatprep.subr.mxu0 0.0
        %1029 = vmatpush1.msra.mxu0 0.0
        %1030 = vmatprep.subr.mxu0 0.0
        %1031 = vmatpush1.msra.mxu0 0.0
        %1032 = vmatprep.subr.mxu0 0.0
        %1033 = vmatpush1.msra.mxu0 0.0
        %1034 = vmatprep.subr.mxu0 0.0
        %1035 = vmatpush1.msra.mxu0 0.0
        %1036 = vmatprep.subr.mxu0 0.0
        %1037 = vmatpush1.msra.mxu0 0.0
        %1038 = vmatprep.subr.mxu0 0.0
        %1039 = vmatpush1.msra.mxu0 0.0
        %1040 = vmatprep.subr.mxu0 0.0
        %1041 = vmatpush1.msra.mxu0 0.0
        %1042 = vmatprep.subr.mxu0 0.0
        %1043 = vmatpush1.msra.mxu0 0.0
        %1044 = vmatprep.subr.mxu0 0.0
        %1045 = vmatpush1.msra.mxu0 0.0
        %1046 = vmatprep.subr.mxu0 0.0
        %1047 = vmatpush1.msra.mxu0 0.0
        %1048 = vmatprep.subr.mxu0 0.0
        %1049 = vmatpush1.msra.mxu0 0.0
        %1050 = vmatprep.subr.mxu0 0.0
        %1051 = vmatpush1.msra.mxu0 0.0
        %1052 = vmatprep.subr.mxu0 0.0
        %1053 = vmatpush1.msra.mxu0 0.0
        %1054 = vmatprep.subr.mxu0 0.0
        %1055 = vmatpush1.msra.mxu0 0.0
        %1056 = vmatprep.subr.mxu0 0.0
        %1057 = vmatpush1.msra.mxu0 0.0
        %1058 = vmatprep.subr.mxu0 0.0
        %1059 = vmatpush1.msra.mxu0 0.0
        %1060 = vmatprep.subr.mxu0 0.0
        %1061 = vmatpush1.msra.mxu0 0.0
        %1062 = vmatprep.subr.mxu0 0.0
        %1063 = vmatpush1.msra.mxu0 0.0
        %1064 = vmatprep.subr.mxu0 0.0
        %1065 = vmatpush1.msra.mxu0 0.0
        %1066 = vmatprep.mubr.f32.mxu0 0.0
        %1067 = vmatmul.mubr.f32.gmra.mrb[0].mxu0 %v848
        %v1068 = vpop.f32.mrb[0].mxu0
        %v1069 = vadd.f32 0.0, %v1068
        %v1070 = vpop.f32.mrb[0].mxu0
        %1071 = vmatprep.mubr.f32.mxu0 0.0
        %1072 = vmatmul.mubr.f32.gmra.mrb[0].mxu0 %v851
        %v1073 = vpop.f32.mrb[0].mxu0
        %v1074 = vadd.f32 0.0, %v1073
        %v1075 = vpop.f32.mrb[0].mxu0
        %1076 = vmatprep.mubr.f32.mxu0 0.0
        %1077 = vmatmul.mubr.f32.gmra.mrb[0].mxu0 %v854
        %v1078 = vpop.f32.mrb[0].mxu0
        %v1079 = vadd.f32 0.0, %v1078
        %v1080 = vpop.f32.mrb[0].mxu0
        %1081 = vmatprep.mubr.f32.mxu0 0.0
        %1082 = vmatmul.mubr.f32.gmra.mrb[0].mxu0 %v857
        %v1083 = vpop.f32.mrb[0].mxu0
        %v1084 = vadd.f32 0.0, %v1083
        %v1085 = vpop.f32.mrb[0].mxu0
        %1086 = vmatprep.mubr.f32.mxu0 0.0
        %1087 = vmatmul.mubr.f32.gmra.mrb[0].mxu0 %v860
        %v1088 = vpop.f32.mrb[0].mxu0
        %v1089 = vadd.f32 0.0, %v1088
        %v1090 = vpop.f32.mrb[0].mxu0
        %1091 = vmatprep.mubr.f32.mxu0 0.0
        %1092 = vmatmul.mubr.f32.gmra.mrb[0].mxu0 %v863
        %v1093 = vpop.f32.mrb[0].mxu0
        %v1094 = vadd.f32 0.0, %v1093
        %v1095 = vpop.f32.mrb[0].mxu0
        %1096 = vmatprep.mubr.f32.mxu0 0.0
        %1097 = vmatmul.mubr.f32.gmra.mrb[0].mxu0 %v866
        %v1098 = vpop.f32.mrb[0].mxu0
        %v1099 = vadd.f32 0.0, %v1098
        %v1100 = vpop.f32.mrb[0].mxu0
        %1101 = vmatprep.mubr.f32.mxu0 0.0
        %1102 = vmatmul.mubr.f32.gmra.mrb[0].mxu0 %v869
        %v1103 = vpop.f32.mrb[0].mxu0
        %v1104 = vadd.f32 0.0, %v1103
        %v1105 = vpop.f32.mrb[0].mxu0
        %1106 = vmatprep.mubr.f32.mxu0 0.0
        %1107 = vmatmul.mubr.f32.gmra.mrb[0].mxu0 %v872
        %v1108 = vpop.f32.mrb[0].mxu0
        %v1109 = vadd.f32 0.0, %v1108
        %v1110 = vpop.f32.mrb[0].mxu0
        %1111 = vmatprep.mubr.f32.mxu0 0.0
        %1112 = vmatmul.mubr.f32.gmra.mrb[0].mxu0 %v875
        %v1113 = vpop.f32.mrb[0].mxu0
        %v1114 = vadd.f32 0.0, %v1113
        %v1115 = vpop.f32.mrb[0].mxu0
        %1116 = vdwg.mxu0
        %v1117 = vmul.f32 %v944, %v944
        %v1118 = vmul.f32 %v946, %v946
        %v1119 = vmul.f32 %v1069, %v1069
        %v1120 = vmul.f32 %v950, %v950
        %v1121 = vmul.f32 %v952, %v952
        %v1122 = vmul.f32 %v1074, %v1074
        %v1123 = vmul.f32 %v956, %v956
        %v1124 = vmul.f32 %v958, %v958
        %v1125 = vmul.f32 %v1079, %v1079
        %v1126 = vmul.f32 %v962, %v962
        %v1127 = vmul.f32 %v964, %v964
        %v1128 = vmul.f32 %v1084, %v1084
        %v1129 = vmul.f32 %v968, %v968
        %v1130 = vmul.f32 %v970, %v970
        %v1131 = vmul.f32 %v1089, %v1089
        %v1132 = vmul.f32 %v974, %v974
        %v1133 = vmul.f32 %v976, %v976
        %v1134 = vmul.f32 %v1094, %v1094
        %v1135 = vmul.f32 %v980, %v980
        %v1136 = vmul.f32 %v982, %v982
        %v1137 = vmul.f32 %v1099, %v1099
        %v1138 = vmul.f32 %v986, %v986
        %v1139 = vmul.f32 %v988, %v988
        %v1140 = vmul.f32 %v1104, %v1104
        %v1141 = vmul.f32 %v992, %v992
        %v1142 = vmul.f32 %v994, %v994
        %v1143 = vmul.f32 %v1109, %v1109
        %v1144 = vmul.f32 %v998, %v998
        %v1145 = vmul.f32 %v1000, %v1000
        %v1146 = vmul.f32 %v1114, %v1114
        %v1147 = vadd.f32 %v1117, %v1132
        %v1148 = vadd.f32 %v1118, %v1133
        %v1149 = vadd.f32 %v1119, %v1134
        %v1150 = vadd.f32 %v1120, %v1135
        %v1151 = vadd.f32 %v1121, %v1136
        %v1152 = vadd.f32 %v1122, %v1137
        %v1153 = vadd.f32 %v1123, %v1138
        %v1154 = vadd.f32 %v1124, %v1139
        %v1155 = vadd.f32 %v1125, %v1140
        %v1156 = vadd.f32 %v1126, %v1141
        %v1157 = vadd.f32 %v1127, %v1142
        %v1158 = vadd.f32 %v1128, %v1143
        %v1159 = vadd.f32 %v1129, %v1144
        %v1160 = vadd.f32 %v1130, %v1145
        %v1161 = vadd.f32 %v1131, %v1146
        %v1162 = vadd.f32 %v1147, 1e-06
        %v1163 = vadd.f32 %v1148, 1e-06
        %v1164 = vadd.f32 %v1149, 1e-06
        %v1165 = vadd.f32 %v1150, 1e-06
        %v1166 = vadd.f32 %v1151, 1e-06
        %v1167 = vadd.f32 %v1152, 1e-06
        %v1168 = vadd.f32 %v1153, 1e-06
        %v1169 = vadd.f32 %v1154, 1e-06
        %v1170 = vadd.f32 %v1155, 1e-06
        %v1171 = vadd.f32 %v1156, 1e-06
        %v1172 = vadd.f32 %v1157, 1e-06
        %v1173 = vadd.f32 %v1158, 1e-06
        %v1174 = vadd.f32 %v1159, 1e-06
        %v1175 = vadd.f32 %v1160, 1e-06
        %v1176 = vadd.f32 %v1161, 1e-06
        %v1177 = vadd.f32 %v1162, 1e-08
        %v1178 = vadd.f32 %v1163, 1e-08
        %v1179 = vadd.f32 %v1164, 1e-08
        %v1180 = vadd.f32 %v1165, 1e-08
        %v1181 = vadd.f32 %v1166, 1e-08
        %v1182 = vadd.f32 %v1167, 1e-08
        %v1183 = vadd.f32 %v1168, 1e-08
        %v1184 = vadd.f32 %v1169, 1e-08
        %v1185 = vadd.f32 %v1170, 1e-08
        %v1186 = vadd.f32 %v1171, 1e-08
        %v1187 = vadd.f32 %v1172, 1e-08
        %v1188 = vadd.f32 %v1173, 1e-08
        %v1189 = vadd.f32 %v1174, 1e-08
        %v1190 = vadd.f32 %v1175, 1e-08
        %v1191 = vadd.f32 %v1176, 1e-08
        %v1192 = vlog2.pop %v1177
        %v1193 = vmul.f32 %v1192, 0.6931472
        %v1194 = vlog2.pop %v1178
        %v1195 = vmul.f32 %v1194, 0.6931472
        %v1196 = vlog2.pop %v1179
        %v1197 = vmul.f32 %v1196, 0.6931472
        %v1198 = vlog2.pop %v1180
        %v1199 = vmul.f32 %v1198, 0.6931472
        %v1200 = vlog2.pop %v1181
        %v1201 = vmul.f32 %v1200, 0.6931472
        %v1202 = vlog2.pop %v1182
        %v1203 = vmul.f32 %v1202, 0.6931472
        %v1204 = vlog2.pop %v1183
        %v1205 = vmul.f32 %v1204, 0.6931472
        %v1206 = vlog2.pop %v1184
        %v1207 = vmul.f32 %v1206, 0.6931472
        %v1208 = vlog2.pop %v1185
        %v1209 = vmul.f32 %v1208, 0.6931472
        %v1210 = vlog2.pop %v1186
        %v1211 = vmul.f32 %v1210, 0.6931472
        %v1212 = vlog2.pop %v1187
        %v1213 = vmul.f32 %v1212, 0.6931472
        %v1214 = vlog2.pop %v1188
        %v1215 = vmul.f32 %v1214, 0.6931472
        %v1216 = vlog2.pop %v1189
        %v1217 = vmul.f32 %v1216, 0.6931472
        %v1218 = vlog2.pop %v1190
        %v1219 = vmul.f32 %v1218, 0.6931472
        %v1220 = vlog2.pop %v1191
        %v1221 = vmul.f32 %v1220, 0.6931472
        %v1222 = vmul.f32 %v1193, 4.3429446
        %v1223 = vmul.f32 %v1195, 4.3429446
        %v1224 = vmul.f32 %v1197, 4.3429446
        %v1225 = vmul.f32 %v1199, 4.3429446
        %v1226 = vmul.f32 %v1201, 4.3429446
        %v1227 = vmul.f32 %v1203, 4.3429446
        %v1228 = vmul.f32 %v1205, 4.3429446
        %v1229 = vmul.f32 %v1207, 4.3429446
        %v1230 = vmul.f32 %v1209, 4.3429446
        %v1231 = vmul.f32 %v1211, 4.3429446
        %v1232 = vmul.f32 %v1213, 4.3429446
        %v1233 = vmul.f32 %v1215, 4.3429446
        %v1234 = vmul.f32 %v1217, 4.3429446
        %v1235 = vmul.f32 %v1219, 4.3429446
        %v1236 = vmul.f32 %v1221, 4.3429446
        %v1237 = vld [vmem:[%s3] sm:$0xf]
        %v1238 = vld [vmem:[%s3 + $0x4] sm:$0xf]
        %v1239 = vld [vmem:[%s3 + $0x8] sm:$0xf]
        %v1240 = vld [vmem:[%s3 + $0xc] sm:$0xf]
        %v1241 = vld [vmem:[%s3 + $0x10] sm:$0xf]
        %v1242 = vld [vmem:[%s3 + $0x14] sm:$0xf]
        %v1243 = vld [vmem:[%s3 + $0x18] sm:$0xf]
        %v1244 = vld [vmem:[%s3 + $0x1c] sm:$0xf]
        %v1245 = vpack.c.bf16 %v1225, %v1222
        %v1246 = vpack.c.bf16 %v1226, %v1223
        %v1247 = vpack.c.bf16 %v1227, %v1224
        %v1248 = vpack.c.bf16 %v1231, %v1228
        %v1249 = vpack.c.bf16 %v1232, %v1229
        %v1250 = vpack.c.bf16 %v1233, %v1230
        %v1251 = vpack.c.bf16 %v1234, %v1234
        %v1252 = vpack.c.bf16 %v1235, %v1235
        %v1253 = vpack.c.bf16 %v1236, %v1236
        %v1262 = vunpack.c.l.b16 %v1237
        %v1263 = vunpack.c.l.b16 %v1238
        %v1264 = vunpack.c.l.b16 %v1239
        %v1265 = vunpack.c.l.b16 %v1240
        %v1266 = vunpack.c.l.b16 %v1241
        %v1267 = vunpack.c.l.b16 %v1242
        %v1268 = vunpack.c.l.b16 %v1243
        %v1269 = vunpack.c.l.b16 %v1244
        %v1270 = vpack.c.b16 %v1263, %v1262
        %v1271 = vpack.c.b16 %v1265, %v1264
        %v1272 = vpack.c.b16 %v1267, %v1266
        %v1273 = vpack.c.b16 %v1269, %v1268
        %vm1274 = vcmask 326656
        %v1276 = vsel %vm1274, %v1270, 0
        %v1279 = vsel %vm1274, %v1271, 0
        %v1282 = vsel %vm1274, %v1272, 0
        %v1285 = vsel %vm1274, %v1273, 0
        %vm1287 = vcmask 1043456
        %v1289 = vsel %vm1287, %v1251, 0
        %v1292 = vsel %vm1287, %v1252, 0
        %v1295 = vsel %vm1287, %v1253, 0
        %1297 = vmatprep.subr.bf16.mxu0 %v1246
        %1298 = vmatpush1.bf16.msra.mxu0 %v1245
        %1299 = vmatprep.subr.bf16.mxu0 %v1249
        %1300 = vmatpush1.bf16.msra.mxu0 %v1248
        %1301 = vmatprep.subr.bf16.mxu0 %v1292
        %1302 = vmatpush1.bf16.msra.mxu0 %v1289
        %1303 = vmatprep.subr.bf16.mxu0 0
        %1304 = vmatpush1.bf16.msra.mxu0 0
        %1305 = vmatprep.subr.bf16.mxu0 0
        %1306 = vmatpush1.bf16.msra.mxu0 0
        %1307 = vmatprep.subr.bf16.mxu0 0
        %1308 = vmatpush1.bf16.msra.mxu0 0
        %1309 = vmatprep.subr.bf16.mxu0 0
        %1310 = vmatpush1.bf16.msra.mxu0 0
        %1311 = vmatprep.subr.bf16.mxu0 0
        %1312 = vmatpush1.bf16.msra.mxu0 0
        %1313 = vmatprep.subr.bf16.mxu0 0
        %1314 = vmatpush1.bf16.msra.mxu0 0
        %1315 = vmatprep.subr.bf16.mxu0 0
        %1316 = vmatpush1.bf16.msra.mxu0 0
        %1317 = vmatprep.subr.bf16.mxu0 0
        %1318 = vmatpush1.bf16.msra.mxu0 0
        %1319 = vmatprep.subr.bf16.mxu0 0
        %1320 = vmatpush1.bf16.msra.mxu0 0
        %1321 = vmatprep.subr.bf16.mxu0 0
        %1322 = vmatpush1.bf16.msra.mxu0 0
        %1323 = vmatprep.subr.bf16.mxu0 0
        %1324 = vmatpush1.bf16.msra.mxu0 0
        %1325 = vmatprep.subr.bf16.mxu0 0
        %1326 = vmatpush1.bf16.msra.mxu0 0
        %1327 = vmatprep.subr.bf16.mxu0 0
        %1328 = vmatpush1.bf16.msra.mxu0 0
        %1329 = vmatprep.mubr.bf16.mxu0 0
        %1330 = vmatmul.mubr.bf16.gmra.mrb[0].mxu0 %v1276
        %v1331 = vpop.f32.mrb[0].mxu0
        %v1332 = vadd.f32 0.0, %v1331
        %v1333 = vpop.f32.mrb[0].mxu0
        %v1334 = vadd.f32 0.0, %v1333
        %v1335 = vpop.f32.mrb[0].mxu0
        %v1336 = vadd.f32 0.0, %v1335
        %v1337 = vpop.f32.mrb[0].mxu0
        %v1338 = vadd.f32 0.0, %v1337
        %1339 = vmatprep.mubr.bf16.mxu0 0
        %1340 = vmatmul.mubr.bf16.gmra.mrb[0].mxu0 %v1279
        %v1341 = vpop.f32.mrb[0].mxu0
        %v1342 = vadd.f32 0.0, %v1341
        %v1343 = vpop.f32.mrb[0].mxu0
        %v1344 = vadd.f32 0.0, %v1343
        %v1345 = vpop.f32.mrb[0].mxu0
        %v1346 = vadd.f32 0.0, %v1345
        %v1347 = vpop.f32.mrb[0].mxu0
        %v1348 = vadd.f32 0.0, %v1347
        %1349 = vmatprep.mubr.bf16.mxu0 0
        %1350 = vmatmul.mubr.bf16.gmra.mrb[0].mxu0 %v1282
        %v1351 = vpop.f32.mrb[0].mxu0
        %v1352 = vadd.f32 0.0, %v1351
        %v1353 = vpop.f32.mrb[0].mxu0
        %v1354 = vadd.f32 0.0, %v1353
        %v1355 = vpop.f32.mrb[0].mxu0
        %v1356 = vadd.f32 0.0, %v1355
        %v1357 = vpop.f32.mrb[0].mxu0
        %v1358 = vadd.f32 0.0, %v1357
        %1359 = vmatprep.mubr.bf16.mxu0 0
        %1360 = vmatmul.mubr.bf16.gmra.mrb[0].mxu0 %v1285
        %v1361 = vpop.f32.mrb[0].mxu0
        %v1362 = vadd.f32 0.0, %v1361
        %v1363 = vpop.f32.mrb[0].mxu0
        %v1364 = vadd.f32 0.0, %v1363
        %v1365 = vpop.f32.mrb[0].mxu0
        %v1366 = vadd.f32 0.0, %v1365
        %v1367 = vpop.f32.mrb[0].mxu0
        %v1368 = vadd.f32 0.0, %v1367
        %1369 = vdwg.mxu0
        %1370 = vmatprep.subr.bf16.mxu0 0
        %1371 = vmatpush1.bf16.msra.mxu0 %v1247
        %1372 = vmatprep.subr.bf16.mxu0 0
        %1373 = vmatpush1.bf16.msra.mxu0 %v1250
        %1374 = vmatprep.subr.bf16.mxu0 0
        %1375 = vmatpush1.bf16.msra.mxu0 %v1295
        %1376 = vmatprep.subr.bf16.mxu0 0
        %1377 = vmatpush1.bf16.msra.mxu0 0
        %1378 = vmatprep.subr.bf16.mxu0 0
        %1379 = vmatpush1.bf16.msra.mxu0 0
        %1380 = vmatprep.subr.bf16.mxu0 0
        %1381 = vmatpush1.bf16.msra.mxu0 0
        %1382 = vmatprep.subr.bf16.mxu0 0
        %1383 = vmatpush1.bf16.msra.mxu0 0
        %1384 = vmatprep.subr.bf16.mxu0 0
        %1385 = vmatpush1.bf16.msra.mxu0 0
        %1386 = vmatprep.subr.bf16.mxu0 0
        %1387 = vmatpush1.bf16.msra.mxu0 0
        %1388 = vmatprep.subr.bf16.mxu0 0
        %1389 = vmatpush1.bf16.msra.mxu0 0
        %1390 = vmatprep.subr.bf16.mxu0 0
        %1391 = vmatpush1.bf16.msra.mxu0 0
        %1392 = vmatprep.subr.bf16.mxu0 0
        %1393 = vmatpush1.bf16.msra.mxu0 0
        %1394 = vmatprep.subr.bf16.mxu0 0
        %1395 = vmatpush1.bf16.msra.mxu0 0
        %1396 = vmatprep.subr.bf16.mxu0 0
        %1397 = vmatpush1.bf16.msra.mxu0 0
        %1398 = vmatprep.subr.bf16.mxu0 0
        %1399 = vmatpush1.bf16.msra.mxu0 0
        %1400 = vmatprep.subr.bf16.mxu0 0
        %1401 = vmatpush1.bf16.msra.mxu0 0
        %1402 = vmatprep.mubr.bf16.mxu0 0
        %1403 = vmatmul.mubr.bf16.gmra.mrb[0].mxu0 %v1276
        %v1404 = vpop.f32.mrb[0].mxu0
        %v1405 = vadd.f32 0.0, %v1404
        %v1406 = vpop.f32.mrb[0].mxu0
        %v1407 = vpop.f32.mrb[0].mxu0
        %v1408 = vadd.f32 0.0, %v1407
        %v1409 = vpop.f32.mrb[0].mxu0
        %1410 = vmatprep.mubr.bf16.mxu0 0
        %1411 = vmatmul.mubr.bf16.gmra.mrb[0].mxu0 %v1279
        %v1412 = vpop.f32.mrb[0].mxu0
        %v1413 = vadd.f32 0.0, %v1412
        %v1414 = vpop.f32.mrb[0].mxu0
        %v1415 = vpop.f32.mrb[0].mxu0
        %v1416 = vadd.f32 0.0, %v1415
        %v1417 = vpop.f32.mrb[0].mxu0
        %1418 = vmatprep.mubr.bf16.mxu0 0
        %1419 = vmatmul.mubr.bf16.gmra.mrb[0].mxu0 %v1282
        %v1420 = vpop.f32.mrb[0].mxu0
        %v1421 = vadd.f32 0.0, %v1420
        %v1422 = vpop.f32.mrb[0].mxu0
        %v1423 = vpop.f32.mrb[0].mxu0
        %v1424 = vadd.f32 0.0, %v1423
        %v1425 = vpop.f32.mrb[0].mxu0
        %1426 = vmatprep.mubr.bf16.mxu0 0
        %1427 = vmatmul.mubr.bf16.gmra.mrb[0].mxu0 %v1285
        %v1428 = vpop.f32.mrb[0].mxu0
        %v1429 = vadd.f32 0.0, %v1428
        %v1430 = vpop.f32.mrb[0].mxu0
        %v1431 = vpop.f32.mrb[0].mxu0
        %v1432 = vadd.f32 0.0, %v1431
        %v1433 = vpop.f32.mrb[0].mxu0
        %1434 = vdwg.mxu0
        %v1435 = vld [vmem:[%s6] sm:$0xff]
        %v1436 = vld [vmem:[%s6 + $0x8] sm:$0xff]
        %v1437 = vld [vmem:[%s6 + $0x10] sm:$0xff]
        %v1438 = vld [vmem:[%s6 + $0x18] sm:$0xff]
        %1440 = vset.pattern.permute.xlu0 0
        %1441 = vperm.xlu0 %1440, %v1435
        %v1442 = vpop.permute.xlu0 %1441
        %1445 = vset.pattern.permute.xlu0 0
        %1446 = vperm.xlu0 %1445, %v1436
        %v1447 = vpop.permute.xlu0 %1446
        %1450 = vset.pattern.permute.xlu0 0
        %1451 = vperm.xlu0 %1450, %v1437
        %v1452 = vpop.permute.xlu0 %1451
        %1455 = vset.pattern.permute.xlu0 0
        %1456 = vperm.xlu0 %1455, %v1438
        %v1457 = vpop.permute.xlu0 %1456
        %v1459 = vadd.f32 %v1332, %v1442
        %v1460 = vadd.f32 %v1334, %v1442
        %v1461 = vadd.f32 %v1405, %v1442
        %v1462 = vadd.f32 %v1336, %v1447
        %v1463 = vadd.f32 %v1338, %v1447
        %v1464 = vadd.f32 %v1408, %v1447
        %v1465 = vadd.f32 %v1342, %v1452
        %v1466 = vadd.f32 %v1344, %v1452
        %v1467 = vadd.f32 %v1413, %v1452
        %v1468 = vadd.f32 %v1346, %v1457
        %v1469 = vadd.f32 %v1348, %v1457
        %v1470 = vadd.f32 %v1416, %v1457
        %s1471 = scalar_lea.vmem %s6, 32
        %v1472 = vld [vmem:[%s1471] sm:$0xff]
        %v1473 = vld [vmem:[%s1471 + $0x8] sm:$0xff]
        %v1474 = vld [vmem:[%s1471 + $0x10] sm:$0xff]
        %v1475 = vld [vmem:[%s1471 + $0x18] sm:$0xff]
        %1477 = vset.pattern.permute.xlu0 0
        %1478 = vperm.xlu0 %1477, %v1472
        %v1479 = vpop.permute.xlu0 %1478
        %1482 = vset.pattern.permute.xlu0 0
        %1483 = vperm.xlu0 %1482, %v1473
        %v1484 = vpop.permute.xlu0 %1483
        %1487 = vset.pattern.permute.xlu0 0
        %1488 = vperm.xlu0 %1487, %v1474
        %v1489 = vpop.permute.xlu0 %1488
        %1492 = vset.pattern.permute.xlu0 0
        %1493 = vperm.xlu0 %1492, %v1475
        %v1494 = vpop.permute.xlu0 %1493
        %v1496 = vadd.f32 %v1352, %v1479
        %v1497 = vadd.f32 %v1354, %v1479
        %v1498 = vadd.f32 %v1421, %v1479
        %v1499 = vadd.f32 %v1356, %v1484
        %v1500 = vadd.f32 %v1358, %v1484
        %v1501 = vadd.f32 %v1424, %v1484
        %v1502 = vadd.f32 %v1362, %v1489
        %v1503 = vadd.f32 %v1364, %v1489
        %v1504 = vadd.f32 %v1429, %v1489
        %v1505 = vadd.f32 %v1366, %v1494
        %v1506 = vadd.f32 %v1368, %v1494
        %v1507 = vadd.f32 %v1432, %v1494
        %v1508 = vxor.u32 %v1496, 2147483648
        %v1509 = vxor.u32 %v1497, 2147483648
        %v1510 = vxor.u32 %v1498, 2147483648
        %v1511 = vxor.u32 %v1499, 2147483648
        %v1512 = vxor.u32 %v1500, 2147483648
        %v1513 = vxor.u32 %v1501, 2147483648
        %v1514 = vxor.u32 %v1502, 2147483648
        %v1515 = vxor.u32 %v1503, 2147483648
        %v1516 = vxor.u32 %v1504, 2147483648
        %v1517 = vxor.u32 %v1505, 2147483648
        %v1518 = vxor.u32 %v1506, 2147483648
        %v1519 = vxor.u32 %v1507, 2147483648
        %v1520 = vmul.f32 %v1508, 1.442695
        %v1521 = vpow.pop %v1520
        %v1522 = vmul.f32 %v1509, 1.442695
        %v1523 = vpow.pop %v1522
        %v1524 = vmul.f32 %v1510, 1.442695
        %v1525 = vpow.pop %v1524
        %v1526 = vmul.f32 %v1511, 1.442695
        %v1527 = vpow.pop %v1526
        %v1528 = vmul.f32 %v1512, 1.442695
        %v1529 = vpow.pop %v1528
        %v1530 = vmul.f32 %v1513, 1.442695
        %v1531 = vpow.pop %v1530
        %v1532 = vmul.f32 %v1514, 1.442695
        %v1533 = vpow.pop %v1532
        %v1534 = vmul.f32 %v1515, 1.442695
        %v1535 = vpow.pop %v1534
        %v1536 = vmul.f32 %v1516, 1.442695
        %v1537 = vpow.pop %v1536
        %v1538 = vmul.f32 %v1517, 1.442695
        %v1539 = vpow.pop %v1538
        %v1540 = vmul.f32 %v1518, 1.442695
        %v1541 = vpow.pop %v1540
        %v1542 = vmul.f32 %v1519, 1.442695
        %v1543 = vpow.pop %v1542
        %v1544 = vadd.f32 %v1521, 1.0
        %v1545 = vadd.f32 %v1523, 1.0
        %v1546 = vadd.f32 %v1525, 1.0
        %v1547 = vadd.f32 %v1527, 1.0
        %v1548 = vadd.f32 %v1529, 1.0
        %v1549 = vadd.f32 %v1531, 1.0
        %v1550 = vadd.f32 %v1533, 1.0
        %v1551 = vadd.f32 %v1535, 1.0
        %v1552 = vadd.f32 %v1537, 1.0
        %v1553 = vadd.f32 %v1539, 1.0
        %v1554 = vadd.f32 %v1541, 1.0
        %v1555 = vadd.f32 %v1543, 1.0
        %v1556 = vrcp.pop %v1544
        %v1557 = vmul.f32 1.0, %v1556
        %v1558 = vrcp.pop %v1545
        %v1559 = vmul.f32 1.0, %v1558
        %v1560 = vrcp.pop %v1546
        %v1561 = vmul.f32 1.0, %v1560
        %v1562 = vrcp.pop %v1547
        %v1563 = vmul.f32 1.0, %v1562
        %v1564 = vrcp.pop %v1548
        %v1565 = vmul.f32 1.0, %v1564
        %v1566 = vrcp.pop %v1549
        %v1567 = vmul.f32 1.0, %v1566
        %v1568 = vrcp.pop %v1550
        %v1569 = vmul.f32 1.0, %v1568
        %v1570 = vrcp.pop %v1551
        %v1571 = vmul.f32 1.0, %v1570
        %v1572 = vrcp.pop %v1552
        %v1573 = vmul.f32 1.0, %v1572
        %v1574 = vrcp.pop %v1553
        %v1575 = vmul.f32 1.0, %v1574
        %v1576 = vrcp.pop %v1554
        %v1577 = vmul.f32 1.0, %v1576
        %v1578 = vrcp.pop %v1555
        %v1579 = vmul.f32 1.0, %v1578
        %v1580 = vmul.f32 %v1459, %v1557
        %v1581 = vmul.f32 %v1460, %v1559
        %v1582 = vmul.f32 %v1461, %v1561
        %v1583 = vmul.f32 %v1462, %v1563
        %v1584 = vmul.f32 %v1463, %v1565
        %v1585 = vmul.f32 %v1464, %v1567
        %v1586 = vmul.f32 %v1465, %v1569
        %v1587 = vmul.f32 %v1466, %v1571
        %v1588 = vmul.f32 %v1467, %v1573
        %v1589 = vmul.f32 %v1468, %v1575
        %v1590 = vmul.f32 %v1469, %v1577
        %v1591 = vmul.f32 %v1470, %v1579
        %s1592 = smul.u32 %s29, 256
        %v1593 = vadd.s32 %v822, 128
        %v1594 = vadd.s32 %v822, 256
        %v1595 = vstv %s1592
        %v1596 = vadd.s32 %v822, %v1595
        %v1597 = vadd.s32 %v1593, %v1595
        %v1598 = vadd.s32 %v1594, %v1595
        %vm1599 = vcmp.lt.s32.totalorder %v1596, 400
        %vm1600 = vcmp.lt.s32.totalorder %v1597, 400
        %vm1601 = vcmp.lt.s32.totalorder %v1598, 400
        %v1602 = vsel %vm1599, 1, 0
        %v1603 = vsel %vm1600, 1, 0
        %v1604 = vsel %vm1601, 1, 0
        %v1605 = vcvt.s32.f32 %v1602
        %v1606 = vcvt.s32.f32 %v1603
        %v1607 = vcvt.s32.f32 %v1604
        %v1608 = vmul.f32 %v1580, %v1605
        %v1609 = vmul.f32 %v1581, %v1606
        %v1610 = vmul.f32 %v1582, %v1607
        %v1611 = vmul.f32 %v1583, %v1605
        %v1612 = vmul.f32 %v1584, %v1606
        %v1613 = vmul.f32 %v1585, %v1607
        %v1614 = vmul.f32 %v1586, %v1605
        %v1615 = vmul.f32 %v1587, %v1606
        %v1616 = vmul.f32 %v1588, %v1607
        %v1617 = vmul.f32 %v1589, %v1605
        %v1618 = vmul.f32 %v1590, %v1606
        %v1619 = vmul.f32 %v1591, %v1607
        %1620 = vrot.lane.b32.xlu0 %v1608, 127
        %v1621 = vpop.permute.xlu0 %1620
        %1622 = vrot.lane.b32.xlu0 %v1611, 127
        %v1623 = vpop.permute.xlu0 %1622
        %1624 = vrot.lane.b32.xlu0 %v1614, 127
        %v1625 = vpop.permute.xlu0 %1624
        %1626 = vrot.lane.b32.xlu0 %v1617, 127
        %v1627 = vpop.permute.xlu0 %1626
        %1628 = vrot.lane.b32.xlu0 %v1609, 127
        %v1629 = vpop.permute.xlu0 %1628
        %1630 = vrot.lane.b32.xlu0 %v1612, 127
        %v1631 = vpop.permute.xlu0 %1630
        %1632 = vrot.lane.b32.xlu0 %v1615, 127
        %v1633 = vpop.permute.xlu0 %1632
        %1634 = vrot.lane.b32.xlu0 %v1618, 127
        %v1635 = vpop.permute.xlu0 %1634
        %1636 = vrot.lane.b32.xlu0 %v1610, 127
        %v1637 = vpop.permute.xlu0 %1636
        %1638 = vrot.lane.b32.xlu0 %v1613, 127
        %v1639 = vpop.permute.xlu0 %1638
        %1640 = vrot.lane.b32.xlu0 %v1616, 127
        %v1641 = vpop.permute.xlu0 %1640
        %1642 = vrot.lane.b32.xlu0 %v1619, 127
        %v1643 = vpop.permute.xlu0 %1642
        %v1644 = vsel %vm823, %v1629, %v1637
        %v1645 = vsel %vm823, %v1631, %v1639
        %v1646 = vsel %vm823, %v1633, %v1641
        %v1647 = vsel %vm823, %v1635, %v1643
        %v1648 = vsel %vm823, %v1621, %v1629
        %v1649 = vsel %vm823, %v1623, %v1631
        %v1650 = vsel %vm823, %v1625, %v1633
        %v1651 = vsel %vm823, %v1627, %v1635
        %v1652 = vsel %vm823, %v1637, %v1621
        %v1653 = vsel %vm823, %v1639, %v1623
        %v1654 = vsel %vm823, %v1641, %v1625
        %v1655 = vsel %vm823, %v1643, %v1627
        %v1656 = vpack.c.bf16 %v1611, %v1608
        %v1657 = vpack.c.bf16 %v1612, %v1609
        %v1658 = vpack.c.bf16 %v1613, %v1610
        %v1659 = vpack.c.bf16 %v1617, %v1614
        %v1660 = vpack.c.bf16 %v1618, %v1615
        %v1661 = vpack.c.bf16 %v1619, %v1616
        %v1662 = vpack.c.bf16 %v1649, %v1648
        %v1663 = vpack.c.bf16 %v1645, %v1644
        %v1664 = vpack.c.bf16 %v1653, %v1652
        %v1665 = vpack.c.bf16 %v1651, %v1650
        %v1666 = vpack.c.bf16 %v1647, %v1646
        %v1667 = vpack.c.bf16 %v1655, %v1654
        %v1668 = vld [vmem:[%s4] sm:$0xf]
        %v1669 = vld [vmem:[%s4 + $0x4] sm:$0xf]
        %v1670 = vld [vmem:[%s4 + $0x8] sm:$0xf]
        %v1671 = vld [vmem:[%s4 + $0xc] sm:$0xf]
        %s1672 = scalar_lea.vmem %s6, 64
        %v1673 = vld [vmem:[%s1672] sm:$0xff]
        %v1674 = vld [vmem:[%s1672 + $0x8] sm:$0xff]
        %v1675 = vld [vmem:[%s1672 + $0x10] sm:$0xff]
        %v1676 = vld [vmem:[%s1672 + $0x18] sm:$0xff]
        %1678 = vset.pattern.permute.xlu0 0
        %1679 = vperm.xlu0 %1678, %v1673
        %v1680 = vpop.permute.xlu0 %1679
        %1683 = vset.pattern.permute.xlu0 0
        %1684 = vperm.xlu0 %1683, %v1674
        %v1685 = vpop.permute.xlu0 %1684
        %1688 = vset.pattern.permute.xlu0 0
        %1689 = vperm.xlu0 %1688, %v1675
        %v1690 = vpop.permute.xlu0 %1689
        %1693 = vset.pattern.permute.xlu0 0
        %1694 = vperm.xlu0 %1693, %v1676
        %v1695 = vpop.permute.xlu0 %1694
        %v1701 = vunpack.c.l.b16 %v1668
        %v1702 = vunpack.c.l.b16 %v1669
        %v1703 = vunpack.c.l.b16 %v1670
        %v1704 = vunpack.c.l.b16 %v1671
        %v1705 = vpack.c.b16 %v1702, %v1701
        %v1706 = vpack.c.b16 %v1704, %v1703
        %v1708 = vsel %vm846, %v1705, 0
        %v1711 = vsel %vm846, %v1706, 0
        %1713 = vmatprep.subr.bf16.mxu0 %v1657
        %1714 = vmatpush1.bf16.msra.mxu0 %v1656
        %1715 = vmatprep.subr.bf16.mxu0 %v1660
        %1716 = vmatpush1.bf16.msra.mxu0 %v1659
        %1717 = vmatprep.subr.bf16.mxu0 %v1663
        %1718 = vmatpush1.bf16.msra.mxu0 %v1662
        %1719 = vmatprep.subr.bf16.mxu0 %v1666
        %1720 = vmatpush1.bf16.msra.mxu0 %v1665
        %1721 = vmatprep.subr.bf16.mxu0 0
        %1722 = vmatpush1.bf16.msra.mxu0 0
        %1723 = vmatprep.subr.bf16.mxu0 0
        %1724 = vmatpush1.bf16.msra.mxu0 0
        %1725 = vmatprep.subr.bf16.mxu0 0
        %1726 = vmatpush1.bf16.msra.mxu0 0
        %1727 = vmatprep.subr.bf16.mxu0 0
        %1728 = vmatpush1.bf16.msra.mxu0 0
        %1729 = vmatprep.subr.bf16.mxu0 0
        %1730 = vmatpush1.bf16.msra.mxu0 0
        %1731 = vmatprep.subr.bf16.mxu0 0
        %1732 = vmatpush1.bf16.msra.mxu0 0
        %1733 = vmatprep.subr.bf16.mxu0 0
        %1734 = vmatpush1.bf16.msra.mxu0 0
        %1735 = vmatprep.subr.bf16.mxu0 0
        %1736 = vmatpush1.bf16.msra.mxu0 0
        %1737 = vmatprep.subr.bf16.mxu0 0
        %1738 = vmatpush1.bf16.msra.mxu0 0
        %1739 = vmatprep.subr.bf16.mxu0 0
        %1740 = vmatpush1.bf16.msra.mxu0 0
        %1741 = vmatprep.subr.bf16.mxu0 0
        %1742 = vmatpush1.bf16.msra.mxu0 0
        %1743 = vmatprep.subr.bf16.mxu0 0
        %1744 = vmatpush1.bf16.msra.mxu0 0
        %1745 = vmatprep.mubr.bf16.mxu0 0
        %1746 = vmatmul.mubr.bf16.gmra.mrb[0].mxu0 %v1708
        %v1747 = vpop.f32.mrb[0].mxu0
        %v1748 = vadd.f32 %v1680, %v1747
        %v1749 = vpop.f32.mrb[0].mxu0
        %v1750 = vadd.f32 %v1680, %v1749
        %v1751 = vpop.f32.mrb[0].mxu0
        %v1752 = vadd.f32 %v1685, %v1751
        %v1753 = vpop.f32.mrb[0].mxu0
        %v1754 = vadd.f32 %v1685, %v1753
        %1755 = vmatprep.mubr.bf16.mxu0 0
        %1756 = vmatmul.mubr.bf16.gmra.mrb[0].mxu0 %v1711
        %v1757 = vpop.f32.mrb[0].mxu0
        %v1758 = vadd.f32 %v1690, %v1757
        %v1759 = vpop.f32.mrb[0].mxu0
        %v1760 = vadd.f32 %v1690, %v1759
        %v1761 = vpop.f32.mrb[0].mxu0
        %v1762 = vadd.f32 %v1695, %v1761
        %v1763 = vpop.f32.mrb[0].mxu0
        %v1764 = vadd.f32 %v1695, %v1763
        %1765 = vdwg.mxu0
        %1766 = vmatprep.subr.bf16.mxu0 0
        %1767 = vmatpush1.bf16.msra.mxu0 %v1658
        %1768 = vmatprep.subr.bf16.mxu0 0
        %1769 = vmatpush1.bf16.msra.mxu0 %v1661
        %1770 = vmatprep.subr.bf16.mxu0 0
        %1771 = vmatpush1.bf16.msra.mxu0 %v1664
        %1772 = vmatprep.subr.bf16.mxu0 0
        %1773 = vmatpush1.bf16.msra.mxu0 %v1667
        %1774 = vmatprep.subr.bf16.mxu0 0
        %1775 = vmatpush1.bf16.msra.mxu0 0
        %1776 = vmatprep.subr.bf16.mxu0 0
        %1777 = vmatpush1.bf16.msra.mxu0 0
        %1778 = vmatprep.subr.bf16.mxu0 0
        %1779 = vmatpush1.bf16.msra.mxu0 0
        %1780 = vmatprep.subr.bf16.mxu0 0
        %1781 = vmatpush1.bf16.msra.mxu0 0
        %1782 = vmatprep.subr.bf16.mxu0 0
        %1783 = vmatpush1.bf16.msra.mxu0 0
        %1784 = vmatprep.subr.bf16.mxu0 0
        %1785 = vmatpush1.bf16.msra.mxu0 0
        %1786 = vmatprep.subr.bf16.mxu0 0
        %1787 = vmatpush1.bf16.msra.mxu0 0
        %1788 = vmatprep.subr.bf16.mxu0 0
        %1789 = vmatpush1.bf16.msra.mxu0 0
        %1790 = vmatprep.subr.bf16.mxu0 0
        %1791 = vmatpush1.bf16.msra.mxu0 0
        %1792 = vmatprep.subr.bf16.mxu0 0
        %1793 = vmatpush1.bf16.msra.mxu0 0
        %1794 = vmatprep.subr.bf16.mxu0 0
        %1795 = vmatpush1.bf16.msra.mxu0 0
        %1796 = vmatprep.subr.bf16.mxu0 0
        %1797 = vmatpush1.bf16.msra.mxu0 0
        %1798 = vmatprep.mubr.bf16.mxu0 0
        %1799 = vmatmul.mubr.bf16.gmra.mrb[0].mxu0 %v1708
        %v1800 = vpop.f32.mrb[0].mxu0
        %v1801 = vadd.f32 %v1680, %v1800
        %v1802 = vpop.f32.mrb[0].mxu0
        %v1803 = vpop.f32.mrb[0].mxu0
        %v1804 = vadd.f32 %v1685, %v1803
        %v1805 = vpop.f32.mrb[0].mxu0
        %1806 = vmatprep.mubr.bf16.mxu0 0
        %1807 = vmatmul.mubr.bf16.gmra.mrb[0].mxu0 %v1711
        %v1808 = vpop.f32.mrb[0].mxu0
        %v1809 = vadd.f32 %v1690, %v1808
        %v1810 = vpop.f32.mrb[0].mxu0
        %v1811 = vpop.f32.mrb[0].mxu0
        %v1812 = vadd.f32 %v1695, %v1811
        %v1813 = vpop.f32.mrb[0].mxu0
        %1814 = vdwg.mxu0
        %v1815 = vmax.f32 %v1748, 0.0
        %v1816 = vmax.f32 %v1750, 0.0
        %v1817 = vmax.f32 %v1801, 0.0
        %v1818 = vmax.f32 %v1752, 0.0
        %v1819 = vmax.f32 %v1754, 0.0
        %v1820 = vmax.f32 %v1804, 0.0
        %v1821 = vmax.f32 %v1758, 0.0
        %v1822 = vmax.f32 %v1760, 0.0
        %v1823 = vmax.f32 %v1809, 0.0
        %v1824 = vmax.f32 %v1762, 0.0
        %v1825 = vmax.f32 %v1764, 0.0
        %v1826 = vmax.f32 %v1812, 0.0
        %v1827 = vmul.f32 %v1815, %v1605
        %v1828 = vmul.f32 %v1816, %v1606
        %v1829 = vmul.f32 %v1817, %v1607
        %v1830 = vmul.f32 %v1818, %v1605
        %v1831 = vmul.f32 %v1819, %v1606
        %v1832 = vmul.f32 %v1820, %v1607
        %v1833 = vmul.f32 %v1821, %v1605
        %v1834 = vmul.f32 %v1822, %v1606
        %v1835 = vmul.f32 %v1823, %v1607
        %v1836 = vmul.f32 %v1824, %v1605
        %v1837 = vmul.f32 %v1825, %v1606
        %v1838 = vmul.f32 %v1826, %v1607
        %1839 = vrot.lane.b32.xlu0 %v1827, 127
        %v1840 = vpop.permute.xlu0 %1839
        %1841 = vrot.lane.b32.xlu0 %v1830, 127
        %v1842 = vpop.permute.xlu0 %1841
        %1843 = vrot.lane.b32.xlu0 %v1833, 127
        %v1844 = vpop.permute.xlu0 %1843
        %1845 = vrot.lane.b32.xlu0 %v1836, 127
        %v1846 = vpop.permute.xlu0 %1845
        %1847 = vrot.lane.b32.xlu0 %v1828, 127
        %v1848 = vpop.permute.xlu0 %1847
        %1849 = vrot.lane.b32.xlu0 %v1831, 127
        %v1850 = vpop.permute.xlu0 %1849
        %1851 = vrot.lane.b32.xlu0 %v1834, 127
        %v1852 = vpop.permute.xlu0 %1851
        %1853 = vrot.lane.b32.xlu0 %v1837, 127
        %v1854 = vpop.permute.xlu0 %1853
        %1855 = vrot.lane.b32.xlu0 %v1829, 127
        %v1856 = vpop.permute.xlu0 %1855
        %1857 = vrot.lane.b32.xlu0 %v1832, 127
        %v1858 = vpop.permute.xlu0 %1857
        %1859 = vrot.lane.b32.xlu0 %v1835, 127
        %v1860 = vpop.permute.xlu0 %1859
        %1861 = vrot.lane.b32.xlu0 %v1838, 127
        %v1862 = vpop.permute.xlu0 %1861
        %v1863 = vsel %vm823, %v1848, %v1856
        %v1864 = vsel %vm823, %v1850, %v1858
        %v1865 = vsel %vm823, %v1852, %v1860
        %v1866 = vsel %vm823, %v1854, %v1862
        %v1867 = vsel %vm823, %v1840, %v1848
        %v1868 = vsel %vm823, %v1842, %v1850
        %v1869 = vsel %vm823, %v1844, %v1852
        %v1870 = vsel %vm823, %v1846, %v1854
        %v1871 = vsel %vm823, %v1856, %v1840
        %v1872 = vsel %vm823, %v1858, %v1842
        %v1873 = vsel %vm823, %v1860, %v1844
        %v1874 = vsel %vm823, %v1862, %v1846
        %v1875 = vpack.c.bf16 %v1830, %v1827
        %v1876 = vpack.c.bf16 %v1831, %v1828
        %v1877 = vpack.c.bf16 %v1832, %v1829
        %v1878 = vpack.c.bf16 %v1836, %v1833
        %v1879 = vpack.c.bf16 %v1837, %v1834
        %v1880 = vpack.c.bf16 %v1838, %v1835
        %v1881 = vpack.c.bf16 %v1868, %v1867
        %v1882 = vpack.c.bf16 %v1864, %v1863
        %v1883 = vpack.c.bf16 %v1872, %v1871
        %v1884 = vpack.c.bf16 %v1870, %v1869
        %v1885 = vpack.c.bf16 %v1866, %v1865
        %v1886 = vpack.c.bf16 %v1874, %v1873
        %s1887 = scalar_lea.vmem %s4, 16
        %v1888 = vld [vmem:[%s1887] sm:$0xf]
        %v1889 = vld [vmem:[%s1887 + $0x4] sm:$0xf]
        %v1890 = vld [vmem:[%s1887 + $0x8] sm:$0xf]
        %v1891 = vld [vmem:[%s1887 + $0xc] sm:$0xf]
        %s1892 = scalar_lea.vmem %s6, 96
        %v1893 = vld [vmem:[%s1892] sm:$0xff]
        %v1894 = vld [vmem:[%s1892 + $0x8] sm:$0xff]
        %v1895 = vld [vmem:[%s1892 + $0x10] sm:$0xff]
        %v1896 = vld [vmem:[%s1892 + $0x18] sm:$0xff]
        %1898 = vset.pattern.permute.xlu0 0
        %1899 = vperm.xlu0 %1898, %v1893
        %v1900 = vpop.permute.xlu0 %1899
        %1903 = vset.pattern.permute.xlu0 0
        %1904 = vperm.xlu0 %1903, %v1894
        %v1905 = vpop.permute.xlu0 %1904
        %1908 = vset.pattern.permute.xlu0 0
        %1909 = vperm.xlu0 %1908, %v1895
        %v1910 = vpop.permute.xlu0 %1909
        %1913 = vset.pattern.permute.xlu0 0
        %1914 = vperm.xlu0 %1913, %v1896
        %v1915 = vpop.permute.xlu0 %1914
        %v1921 = vunpack.c.l.b16 %v1888
        %v1922 = vunpack.c.l.b16 %v1889
        %v1923 = vunpack.c.l.b16 %v1890
        %v1924 = vunpack.c.l.b16 %v1891
        %v1925 = vpack.c.b16 %v1922, %v1921
        %v1926 = vpack.c.b16 %v1924, %v1923
        %v1928 = vsel %vm846, %v1925, 0
        %v1931 = vsel %vm846, %v1926, 0
        %1933 = vmatprep.subr.bf16.mxu0 %v1876
        %1934 = vmatpush1.bf16.msra.mxu0 %v1875
        %1935 = vmatprep.subr.bf16.mxu0 %v1879
        %1936 = vmatpush1.bf16.msra.mxu0 %v1878
        %1937 = vmatprep.subr.bf16.mxu0 %v1882
        %1938 = vmatpush1.bf16.msra.mxu0 %v1881
        %1939 = vmatprep.subr.bf16.mxu0 %v1885
        %1940 = vmatpush1.bf16.msra.mxu0 %v1884
        %1941 = vmatprep.subr.bf16.mxu0 0
        %1942 = vmatpush1.bf16.msra.mxu0 0
        %1943 = vmatprep.subr.bf16.mxu0 0
        %1944 = vmatpush1.bf16.msra.mxu0 0
        %1945 = vmatprep.subr.bf16.mxu0 0
        %1946 = vmatpush1.bf16.msra.mxu0 0
        %1947 = vmatprep.subr.bf16.mxu0 0
        %1948 = vmatpush1.bf16.msra.mxu0 0
        %1949 = vmatprep.subr.bf16.mxu0 0
        %1950 = vmatpush1.bf16.msra.mxu0 0
        %1951 = vmatprep.subr.bf16.mxu0 0
        %1952 = vmatpush1.bf16.msra.mxu0 0
        %1953 = vmatprep.subr.bf16.mxu0 0
        %1954 = vmatpush1.bf16.msra.mxu0 0
        %1955 = vmatprep.subr.bf16.mxu0 0
        %1956 = vmatpush1.bf16.msra.mxu0 0
        %1957 = vmatprep.subr.bf16.mxu0 0
        %1958 = vmatpush1.bf16.msra.mxu0 0
        %1959 = vmatprep.subr.bf16.mxu0 0
        %1960 = vmatpush1.bf16.msra.mxu0 0
        %1961 = vmatprep.subr.bf16.mxu0 0
        %1962 = vmatpush1.bf16.msra.mxu0 0
        %1963 = vmatprep.subr.bf16.mxu0 0
        %1964 = vmatpush1.bf16.msra.mxu0 0
        %1965 = vmatprep.mubr.bf16.mxu0 0
        %1966 = vmatmul.mubr.bf16.gmra.mrb[0].mxu0 %v1928
        %v1967 = vpop.f32.mrb[0].mxu0
        %v1968 = vadd.f32 %v1900, %v1967
        %v1969 = vpop.f32.mrb[0].mxu0
        %v1970 = vadd.f32 %v1900, %v1969
        %v1971 = vpop.f32.mrb[0].mxu0
        %v1972 = vadd.f32 %v1905, %v1971
        %v1973 = vpop.f32.mrb[0].mxu0
        %v1974 = vadd.f32 %v1905, %v1973
        %1975 = vmatprep.mubr.bf16.mxu0 0
        %1976 = vmatmul.mubr.bf16.gmra.mrb[0].mxu0 %v1931
        %v1977 = vpop.f32.mrb[0].mxu0
        %v1978 = vadd.f32 %v1910, %v1977
        %v1979 = vpop.f32.mrb[0].mxu0
        %v1980 = vadd.f32 %v1910, %v1979
        %v1981 = vpop.f32.mrb[0].mxu0
        %v1982 = vadd.f32 %v1915, %v1981
        %v1983 = vpop.f32.mrb[0].mxu0
        %v1984 = vadd.f32 %v1915, %v1983
        %1985 = vdwg.mxu0
        %1986 = vmatprep.subr.bf16.mxu0 0
        %1987 = vmatpush1.bf16.msra.mxu0 %v1877
        %1988 = vmatprep.subr.bf16.mxu0 0
        %1989 = vmatpush1.bf16.msra.mxu0 %v1880
        %1990 = vmatprep.subr.bf16.mxu0 0
        %1991 = vmatpush1.bf16.msra.mxu0 %v1883
        %1992 = vmatprep.subr.bf16.mxu0 0
        %1993 = vmatpush1.bf16.msra.mxu0 %v1886
        %1994 = vmatprep.subr.bf16.mxu0 0
        %1995 = vmatpush1.bf16.msra.mxu0 0
        %1996 = vmatprep.subr.bf16.mxu0 0
        %1997 = vmatpush1.bf16.msra.mxu0 0
        %1998 = vmatprep.subr.bf16.mxu0 0
        %1999 = vmatpush1.bf16.msra.mxu0 0
        %2000 = vmatprep.subr.bf16.mxu0 0
        %2001 = vmatpush1.bf16.msra.mxu0 0
        %2002 = vmatprep.subr.bf16.mxu0 0
        %2003 = vmatpush1.bf16.msra.mxu0 0
        %2004 = vmatprep.subr.bf16.mxu0 0
        %2005 = vmatpush1.bf16.msra.mxu0 0
        %2006 = vmatprep.subr.bf16.mxu0 0
        %2007 = vmatpush1.bf16.msra.mxu0 0
        %2008 = vmatprep.subr.bf16.mxu0 0
        %2009 = vmatpush1.bf16.msra.mxu0 0
        %2010 = vmatprep.subr.bf16.mxu0 0
        %2011 = vmatpush1.bf16.msra.mxu0 0
        %2012 = vmatprep.subr.bf16.mxu0 0
        %2013 = vmatpush1.bf16.msra.mxu0 0
        %2014 = vmatprep.subr.bf16.mxu0 0
        %2015 = vmatpush1.bf16.msra.mxu0 0
        %2016 = vmatprep.subr.bf16.mxu0 0
        %2017 = vmatpush1.bf16.msra.mxu0 0
        %2018 = vmatprep.mubr.bf16.mxu0 0
        %2019 = vmatmul.mubr.bf16.gmra.mrb[0].mxu0 %v1928
        %v2020 = vpop.f32.mrb[0].mxu0
        %v2021 = vadd.f32 %v1900, %v2020
        %v2022 = vpop.f32.mrb[0].mxu0
        %v2023 = vpop.f32.mrb[0].mxu0
        %v2024 = vadd.f32 %v1905, %v2023
        %v2025 = vpop.f32.mrb[0].mxu0
        %2026 = vmatprep.mubr.bf16.mxu0 0
        %2027 = vmatmul.mubr.bf16.gmra.mrb[0].mxu0 %v1931
        %v2028 = vpop.f32.mrb[0].mxu0
        %v2029 = vadd.f32 %v1910, %v2028
        %v2030 = vpop.f32.mrb[0].mxu0
        %v2031 = vpop.f32.mrb[0].mxu0
        %v2032 = vadd.f32 %v1915, %v2031
        %v2033 = vpop.f32.mrb[0].mxu0
        %2034 = vdwg.mxu0
        %v2035 = vmax.f32 %v1968, 0.0
        %v2036 = vmax.f32 %v1970, 0.0
        %v2037 = vmax.f32 %v2021, 0.0
        %v2038 = vmax.f32 %v1972, 0.0
        %v2039 = vmax.f32 %v1974, 0.0
        %v2040 = vmax.f32 %v2024, 0.0
        %v2041 = vmax.f32 %v1978, 0.0
        %v2042 = vmax.f32 %v1980, 0.0
        %v2043 = vmax.f32 %v2029, 0.0
        %v2044 = vmax.f32 %v1982, 0.0
        %v2045 = vmax.f32 %v1984, 0.0
        %v2046 = vmax.f32 %v2032, 0.0
        %v2047 = vmul.f32 %v2035, %v1605
        %v2048 = vmul.f32 %v2036, %v1606
        %v2049 = vmul.f32 %v2037, %v1607
        %v2050 = vmul.f32 %v2038, %v1605
        %v2051 = vmul.f32 %v2039, %v1606
        %v2052 = vmul.f32 %v2040, %v1607
        %v2053 = vmul.f32 %v2041, %v1605
        %v2054 = vmul.f32 %v2042, %v1606
        %v2055 = vmul.f32 %v2043, %v1607
        %v2056 = vmul.f32 %v2044, %v1605
        %v2057 = vmul.f32 %v2045, %v1606
        %v2058 = vmul.f32 %v2046, %v1607
        %2059 = vrot.lane.b32.xlu0 %v2047, 127
        %v2060 = vpop.permute.xlu0 %2059
        %2061 = vrot.lane.b32.xlu0 %v2050, 127
        %v2062 = vpop.permute.xlu0 %2061
        %2063 = vrot.lane.b32.xlu0 %v2053, 127
        %v2064 = vpop.permute.xlu0 %2063
        %2065 = vrot.lane.b32.xlu0 %v2056, 127
        %v2066 = vpop.permute.xlu0 %2065
        %2067 = vrot.lane.b32.xlu0 %v2048, 127
        %v2068 = vpop.permute.xlu0 %2067
        %2069 = vrot.lane.b32.xlu0 %v2051, 127
        %v2070 = vpop.permute.xlu0 %2069
        %2071 = vrot.lane.b32.xlu0 %v2054, 127
        %v2072 = vpop.permute.xlu0 %2071
        %2073 = vrot.lane.b32.xlu0 %v2057, 127
        %v2074 = vpop.permute.xlu0 %2073
        %2075 = vrot.lane.b32.xlu0 %v2049, 127
        %v2076 = vpop.permute.xlu0 %2075
        %2077 = vrot.lane.b32.xlu0 %v2052, 127
        %v2078 = vpop.permute.xlu0 %2077
        %2079 = vrot.lane.b32.xlu0 %v2055, 127
        %v2080 = vpop.permute.xlu0 %2079
        %2081 = vrot.lane.b32.xlu0 %v2058, 127
        %v2082 = vpop.permute.xlu0 %2081
        %v2083 = vsel %vm823, %v2068, %v2076
        %v2084 = vsel %vm823, %v2070, %v2078
        %v2085 = vsel %vm823, %v2072, %v2080
        %v2086 = vsel %vm823, %v2074, %v2082
        %v2087 = vsel %vm823, %v2060, %v2068
        %v2088 = vsel %vm823, %v2062, %v2070
        %v2089 = vsel %vm823, %v2064, %v2072
        %v2090 = vsel %vm823, %v2066, %v2074
        %v2091 = vsel %vm823, %v2076, %v2060
        %v2092 = vsel %vm823, %v2078, %v2062
        %v2093 = vsel %vm823, %v2080, %v2064
        %v2094 = vsel %vm823, %v2082, %v2066
        %v2095 = vpack.c.bf16 %v2050, %v2047
        %v2096 = vpack.c.bf16 %v2051, %v2048
        %v2097 = vpack.c.bf16 %v2052, %v2049
        %v2098 = vpack.c.bf16 %v2056, %v2053
        %v2099 = vpack.c.bf16 %v2057, %v2054
        %v2100 = vpack.c.bf16 %v2058, %v2055
        %v2101 = vpack.c.bf16 %v2088, %v2087
        %v2102 = vpack.c.bf16 %v2084, %v2083
        %v2103 = vpack.c.bf16 %v2092, %v2091
        %v2104 = vpack.c.bf16 %v2090, %v2089
        %v2105 = vpack.c.bf16 %v2086, %v2085
        %v2106 = vpack.c.bf16 %v2094, %v2093
        %s2107 = scalar_lea.vmem %s4, 32
        %v2108 = vld [vmem:[%s2107] sm:$0xf]
        %v2109 = vld [vmem:[%s2107 + $0x4] sm:$0xf]
        %v2110 = vld [vmem:[%s2107 + $0x8] sm:$0xf]
        %v2111 = vld [vmem:[%s2107 + $0xc] sm:$0xf]
        %s2112 = scalar_lea.vmem %s6, 128
        %v2113 = vld [vmem:[%s2112] sm:$0xff]
        %v2114 = vld [vmem:[%s2112 + $0x8] sm:$0xff]
        %v2115 = vld [vmem:[%s2112 + $0x10] sm:$0xff]
        %v2116 = vld [vmem:[%s2112 + $0x18] sm:$0xff]
        %2118 = vset.pattern.permute.xlu0 0
        %2119 = vperm.xlu0 %2118, %v2113
        %v2120 = vpop.permute.xlu0 %2119
        %2123 = vset.pattern.permute.xlu0 0
        %2124 = vperm.xlu0 %2123, %v2114
        %v2125 = vpop.permute.xlu0 %2124
        %2128 = vset.pattern.permute.xlu0 0
        %2129 = vperm.xlu0 %2128, %v2115
        %v2130 = vpop.permute.xlu0 %2129
        %2133 = vset.pattern.permute.xlu0 0
        %2134 = vperm.xlu0 %2133, %v2116
        %v2135 = vpop.permute.xlu0 %2134
        %v2141 = vunpack.c.l.b16 %v2108
        %v2142 = vunpack.c.l.b16 %v2109
        %v2143 = vunpack.c.l.b16 %v2110
        %v2144 = vunpack.c.l.b16 %v2111
        %v2145 = vpack.c.b16 %v2142, %v2141
        %v2146 = vpack.c.b16 %v2144, %v2143
        %v2148 = vsel %vm846, %v2145, 0
        %v2151 = vsel %vm846, %v2146, 0
        %2153 = vmatprep.subr.bf16.mxu0 %v2096
        %2154 = vmatpush1.bf16.msra.mxu0 %v2095
        %2155 = vmatprep.subr.bf16.mxu0 %v2099
        %2156 = vmatpush1.bf16.msra.mxu0 %v2098
        %2157 = vmatprep.subr.bf16.mxu0 %v2102
        %2158 = vmatpush1.bf16.msra.mxu0 %v2101
        %2159 = vmatprep.subr.bf16.mxu0 %v2105
        %2160 = vmatpush1.bf16.msra.mxu0 %v2104
        %2161 = vmatprep.subr.bf16.mxu0 0
        %2162 = vmatpush1.bf16.msra.mxu0 0
        %2163 = vmatprep.subr.bf16.mxu0 0
        %2164 = vmatpush1.bf16.msra.mxu0 0
        %2165 = vmatprep.subr.bf16.mxu0 0
        %2166 = vmatpush1.bf16.msra.mxu0 0
        %2167 = vmatprep.subr.bf16.mxu0 0
        %2168 = vmatpush1.bf16.msra.mxu0 0
        %2169 = vmatprep.subr.bf16.mxu0 0
        %2170 = vmatpush1.bf16.msra.mxu0 0
        %2171 = vmatprep.subr.bf16.mxu0 0
        %2172 = vmatpush1.bf16.msra.mxu0 0
        %2173 = vmatprep.subr.bf16.mxu0 0
        %2174 = vmatpush1.bf16.msra.mxu0 0
        %2175 = vmatprep.subr.bf16.mxu0 0
        %2176 = vmatpush1.bf16.msra.mxu0 0
        %2177 = vmatprep.subr.bf16.mxu0 0
        %2178 = vmatpush1.bf16.msra.mxu0 0
        %2179 = vmatprep.subr.bf16.mxu0 0
        %2180 = vmatpush1.bf16.msra.mxu0 0
        %2181 = vmatprep.subr.bf16.mxu0 0
        %2182 = vmatpush1.bf16.msra.mxu0 0
        %2183 = vmatprep.subr.bf16.mxu0 0
        %2184 = vmatpush1.bf16.msra.mxu0 0
        %2185 = vmatprep.mubr.bf16.mxu0 0
        %2186 = vmatmul.mubr.bf16.gmra.mrb[0].mxu0 %v2148
        %v2187 = vpop.f32.mrb[0].mxu0
        %v2188 = vadd.f32 %v2120, %v2187
        %v2189 = vpop.f32.mrb[0].mxu0
        %v2190 = vadd.f32 %v2120, %v2189
        %v2191 = vpop.f32.mrb[0].mxu0
        %v2192 = vadd.f32 %v2125, %v2191
        %v2193 = vpop.f32.mrb[0].mxu0
        %v2194 = vadd.f32 %v2125, %v2193
        %2195 = vmatprep.mubr.bf16.mxu0 0
        %2196 = vmatmul.mubr.bf16.gmra.mrb[0].mxu0 %v2151
        %v2197 = vpop.f32.mrb[0].mxu0
        %v2198 = vadd.f32 %v2130, %v2197
        %v2199 = vpop.f32.mrb[0].mxu0
        %v2200 = vadd.f32 %v2130, %v2199
        %v2201 = vpop.f32.mrb[0].mxu0
        %v2202 = vadd.f32 %v2135, %v2201
        %v2203 = vpop.f32.mrb[0].mxu0
        %v2204 = vadd.f32 %v2135, %v2203
        %2205 = vdwg.mxu0
        %2206 = vmatprep.subr.bf16.mxu0 0
        %2207 = vmatpush1.bf16.msra.mxu0 %v2097
        %2208 = vmatprep.subr.bf16.mxu0 0
        %2209 = vmatpush1.bf16.msra.mxu0 %v2100
        %2210 = vmatprep.subr.bf16.mxu0 0
        %2211 = vmatpush1.bf16.msra.mxu0 %v2103
        %2212 = vmatprep.subr.bf16.mxu0 0
        %2213 = vmatpush1.bf16.msra.mxu0 %v2106
        %2214 = vmatprep.subr.bf16.mxu0 0
        %2215 = vmatpush1.bf16.msra.mxu0 0
        %2216 = vmatprep.subr.bf16.mxu0 0
        %2217 = vmatpush1.bf16.msra.mxu0 0
        %2218 = vmatprep.subr.bf16.mxu0 0
        %2219 = vmatpush1.bf16.msra.mxu0 0
        %2220 = vmatprep.subr.bf16.mxu0 0
        %2221 = vmatpush1.bf16.msra.mxu0 0
        %2222 = vmatprep.subr.bf16.mxu0 0
        %2223 = vmatpush1.bf16.msra.mxu0 0
        %2224 = vmatprep.subr.bf16.mxu0 0
        %2225 = vmatpush1.bf16.msra.mxu0 0
        %2226 = vmatprep.subr.bf16.mxu0 0
        %2227 = vmatpush1.bf16.msra.mxu0 0
        %2228 = vmatprep.subr.bf16.mxu0 0
        %2229 = vmatpush1.bf16.msra.mxu0 0
        %2230 = vmatprep.subr.bf16.mxu0 0
        %2231 = vmatpush1.bf16.msra.mxu0 0
        %2232 = vmatprep.subr.bf16.mxu0 0
        %2233 = vmatpush1.bf16.msra.mxu0 0
        %2234 = vmatprep.subr.bf16.mxu0 0
        %2235 = vmatpush1.bf16.msra.mxu0 0
        %2236 = vmatprep.subr.bf16.mxu0 0
        %2237 = vmatpush1.bf16.msra.mxu0 0
        %2238 = vmatprep.mubr.bf16.mxu0 0
        %2239 = vmatmul.mubr.bf16.gmra.mrb[0].mxu0 %v2148
        %v2240 = vpop.f32.mrb[0].mxu0
        %v2241 = vadd.f32 %v2120, %v2240
        %v2242 = vpop.f32.mrb[0].mxu0
        %v2243 = vpop.f32.mrb[0].mxu0
        %v2244 = vadd.f32 %v2125, %v2243
        %v2245 = vpop.f32.mrb[0].mxu0
        %2246 = vmatprep.mubr.bf16.mxu0 0
        %2247 = vmatmul.mubr.bf16.gmra.mrb[0].mxu0 %v2151
        %v2248 = vpop.f32.mrb[0].mxu0
        %v2249 = vadd.f32 %v2130, %v2248
        %v2250 = vpop.f32.mrb[0].mxu0
        %v2251 = vpop.f32.mrb[0].mxu0
        %v2252 = vadd.f32 %v2135, %v2251
        %v2253 = vpop.f32.mrb[0].mxu0
        %2254 = vdwg.mxu0
        %v2255 = vmax.f32 %v2188, 0.0
        %v2256 = vmax.f32 %v2190, 0.0
        %v2257 = vmax.f32 %v2241, 0.0
        %v2258 = vmax.f32 %v2192, 0.0
        %v2259 = vmax.f32 %v2194, 0.0
        %v2260 = vmax.f32 %v2244, 0.0
        %v2261 = vmax.f32 %v2198, 0.0
        %v2262 = vmax.f32 %v2200, 0.0
        %v2263 = vmax.f32 %v2249, 0.0
        %v2264 = vmax.f32 %v2202, 0.0
        %v2265 = vmax.f32 %v2204, 0.0
        %v2266 = vmax.f32 %v2252, 0.0
        %v2267 = vmul.f32 %v2255, %v1605
        %v2268 = vmul.f32 %v2256, %v1606
        %v2269 = vmul.f32 %v2257, %v1607
        %v2270 = vmul.f32 %v2258, %v1605
        %v2271 = vmul.f32 %v2259, %v1606
        %v2272 = vmul.f32 %v2260, %v1607
        %v2273 = vmul.f32 %v2261, %v1605
        %v2274 = vmul.f32 %v2262, %v1606
        %v2275 = vmul.f32 %v2263, %v1607
        %v2276 = vmul.f32 %v2264, %v1605
        %v2277 = vmul.f32 %v2265, %v1606
        %v2278 = vmul.f32 %v2266, %v1607
        %2279 = vrot.lane.b32.xlu0 %v2267, 127
        %v2280 = vpop.permute.xlu0 %2279
        %2281 = vrot.lane.b32.xlu0 %v2270, 127
        %v2282 = vpop.permute.xlu0 %2281
        %2283 = vrot.lane.b32.xlu0 %v2273, 127
        %v2284 = vpop.permute.xlu0 %2283
        %2285 = vrot.lane.b32.xlu0 %v2276, 127
        %v2286 = vpop.permute.xlu0 %2285
        %2287 = vrot.lane.b32.xlu0 %v2268, 127
        %v2288 = vpop.permute.xlu0 %2287
        %2289 = vrot.lane.b32.xlu0 %v2271, 127
        %v2290 = vpop.permute.xlu0 %2289
        %2291 = vrot.lane.b32.xlu0 %v2274, 127
        %v2292 = vpop.permute.xlu0 %2291
        %2293 = vrot.lane.b32.xlu0 %v2277, 127
        %v2294 = vpop.permute.xlu0 %2293
        %2295 = vrot.lane.b32.xlu0 %v2269, 127
        %v2296 = vpop.permute.xlu0 %2295
        %2297 = vrot.lane.b32.xlu0 %v2272, 127
        %v2298 = vpop.permute.xlu0 %2297
        %2299 = vrot.lane.b32.xlu0 %v2275, 127
        %v2300 = vpop.permute.xlu0 %2299
        %2301 = vrot.lane.b32.xlu0 %v2278, 127
        %v2302 = vpop.permute.xlu0 %2301
        %v2303 = vsel %vm823, %v2288, %v2296
        %v2304 = vsel %vm823, %v2290, %v2298
        %v2305 = vsel %vm823, %v2292, %v2300
        %v2306 = vsel %vm823, %v2294, %v2302
        %v2307 = vsel %vm823, %v2280, %v2288
        %v2308 = vsel %vm823, %v2282, %v2290
        %v2309 = vsel %vm823, %v2284, %v2292
        %v2310 = vsel %vm823, %v2286, %v2294
        %v2311 = vsel %vm823, %v2296, %v2280
        %v2312 = vsel %vm823, %v2298, %v2282
        %v2313 = vsel %vm823, %v2300, %v2284
        %v2314 = vsel %vm823, %v2302, %v2286
        %v2315 = vpack.c.bf16 %v2270, %v2267
        %v2316 = vpack.c.bf16 %v2271, %v2268
        %v2317 = vpack.c.bf16 %v2272, %v2269
        %v2318 = vpack.c.bf16 %v2276, %v2273
        %v2319 = vpack.c.bf16 %v2277, %v2274
        %v2320 = vpack.c.bf16 %v2278, %v2275
        %v2321 = vpack.c.bf16 %v2308, %v2307
        %v2322 = vpack.c.bf16 %v2304, %v2303
        %v2323 = vpack.c.bf16 %v2312, %v2311
        %v2324 = vpack.c.bf16 %v2310, %v2309
        %v2325 = vpack.c.bf16 %v2306, %v2305
        %v2326 = vpack.c.bf16 %v2314, %v2313
        %s2327 = scalar_lea.vmem %s4, 48
        %v2328 = vld [vmem:[%s2327] sm:$0xf]
        %v2329 = vld [vmem:[%s2327 + $0x4] sm:$0xf]
        %v2330 = vld [vmem:[%s2327 + $0x8] sm:$0xf]
        %v2331 = vld [vmem:[%s2327 + $0xc] sm:$0xf]
        %s2332 = scalar_lea.vmem %s6, 160
        %v2333 = vld [vmem:[%s2332] sm:$0xff]
        %v2334 = vld [vmem:[%s2332 + $0x8] sm:$0xff]
        %v2335 = vld [vmem:[%s2332 + $0x10] sm:$0xff]
        %v2336 = vld [vmem:[%s2332 + $0x18] sm:$0xff]
        %2338 = vset.pattern.permute.xlu0 0
        %2339 = vperm.xlu0 %2338, %v2333
        %v2340 = vpop.permute.xlu0 %2339
        %2343 = vset.pattern.permute.xlu0 0
        %2344 = vperm.xlu0 %2343, %v2334
        %v2345 = vpop.permute.xlu0 %2344
        %2348 = vset.pattern.permute.xlu0 0
        %2349 = vperm.xlu0 %2348, %v2335
        %v2350 = vpop.permute.xlu0 %2349
        %2353 = vset.pattern.permute.xlu0 0
        %2354 = vperm.xlu0 %2353, %v2336
        %v2355 = vpop.permute.xlu0 %2354
        %v2361 = vunpack.c.l.b16 %v2328
        %v2362 = vunpack.c.l.b16 %v2329
        %v2363 = vunpack.c.l.b16 %v2330
        %v2364 = vunpack.c.l.b16 %v2331
        %v2365 = vpack.c.b16 %v2362, %v2361
        %v2366 = vpack.c.b16 %v2364, %v2363
        %v2368 = vsel %vm846, %v2365, 0
        %v2371 = vsel %vm846, %v2366, 0
        %2373 = vmatprep.subr.bf16.mxu0 %v2316
        %2374 = vmatpush1.bf16.msra.mxu0 %v2315
        %2375 = vmatprep.subr.bf16.mxu0 %v2319
        %2376 = vmatpush1.bf16.msra.mxu0 %v2318
        %2377 = vmatprep.subr.bf16.mxu0 %v2322
        %2378 = vmatpush1.bf16.msra.mxu0 %v2321
        %2379 = vmatprep.subr.bf16.mxu0 %v2325
        %2380 = vmatpush1.bf16.msra.mxu0 %v2324
        %2381 = vmatprep.subr.bf16.mxu0 0
        %2382 = vmatpush1.bf16.msra.mxu0 0
        %2383 = vmatprep.subr.bf16.mxu0 0
        %2384 = vmatpush1.bf16.msra.mxu0 0
        %2385 = vmatprep.subr.bf16.mxu0 0
        %2386 = vmatpush1.bf16.msra.mxu0 0
        %2387 = vmatprep.subr.bf16.mxu0 0
        %2388 = vmatpush1.bf16.msra.mxu0 0
        %2389 = vmatprep.subr.bf16.mxu0 0
        %2390 = vmatpush1.bf16.msra.mxu0 0
        %2391 = vmatprep.subr.bf16.mxu0 0
        %2392 = vmatpush1.bf16.msra.mxu0 0
        %2393 = vmatprep.subr.bf16.mxu0 0
        %2394 = vmatpush1.bf16.msra.mxu0 0
        %2395 = vmatprep.subr.bf16.mxu0 0
        %2396 = vmatpush1.bf16.msra.mxu0 0
        %2397 = vmatprep.subr.bf16.mxu0 0
        %2398 = vmatpush1.bf16.msra.mxu0 0
        %2399 = vmatprep.subr.bf16.mxu0 0
        %2400 = vmatpush1.bf16.msra.mxu0 0
        %2401 = vmatprep.subr.bf16.mxu0 0
        %2402 = vmatpush1.bf16.msra.mxu0 0
        %2403 = vmatprep.subr.bf16.mxu0 0
        %2404 = vmatpush1.bf16.msra.mxu0 0
        %2405 = vmatprep.mubr.bf16.mxu0 0
        %2406 = vmatmul.mubr.bf16.gmra.mrb[0].mxu0 %v2368
        %v2407 = vpop.f32.mrb[0].mxu0
        %v2408 = vadd.f32 %v2340, %v2407
        %v2409 = vpop.f32.mrb[0].mxu0
        %v2410 = vadd.f32 %v2340, %v2409
        %v2411 = vpop.f32.mrb[0].mxu0
        %v2412 = vadd.f32 %v2345, %v2411
        %v2413 = vpop.f32.mrb[0].mxu0
        %v2414 = vadd.f32 %v2345, %v2413
        %2415 = vmatprep.mubr.bf16.mxu0 0
        %2416 = vmatmul.mubr.bf16.gmra.mrb[0].mxu0 %v2371
        %v2417 = vpop.f32.mrb[0].mxu0
        %v2418 = vadd.f32 %v2350, %v2417
        %v2419 = vpop.f32.mrb[0].mxu0
        %v2420 = vadd.f32 %v2350, %v2419
        %v2421 = vpop.f32.mrb[0].mxu0
        %v2422 = vadd.f32 %v2355, %v2421
        %v2423 = vpop.f32.mrb[0].mxu0
        %v2424 = vadd.f32 %v2355, %v2423
        %2425 = vdwg.mxu0
        %2426 = vmatprep.subr.bf16.mxu0 0
        %2427 = vmatpush1.bf16.msra.mxu0 %v2317
        %2428 = vmatprep.subr.bf16.mxu0 0
        %2429 = vmatpush1.bf16.msra.mxu0 %v2320
        %2430 = vmatprep.subr.bf16.mxu0 0
        %2431 = vmatpush1.bf16.msra.mxu0 %v2323
        %2432 = vmatprep.subr.bf16.mxu0 0
        %2433 = vmatpush1.bf16.msra.mxu0 %v2326
        %2434 = vmatprep.subr.bf16.mxu0 0
        %2435 = vmatpush1.bf16.msra.mxu0 0
        %2436 = vmatprep.subr.bf16.mxu0 0
        %2437 = vmatpush1.bf16.msra.mxu0 0
        %2438 = vmatprep.subr.bf16.mxu0 0
        %2439 = vmatpush1.bf16.msra.mxu0 0
        %2440 = vmatprep.subr.bf16.mxu0 0
        %2441 = vmatpush1.bf16.msra.mxu0 0
        %2442 = vmatprep.subr.bf16.mxu0 0
        %2443 = vmatpush1.bf16.msra.mxu0 0
        %2444 = vmatprep.subr.bf16.mxu0 0
        %2445 = vmatpush1.bf16.msra.mxu0 0
        %2446 = vmatprep.subr.bf16.mxu0 0
        %2447 = vmatpush1.bf16.msra.mxu0 0
        %2448 = vmatprep.subr.bf16.mxu0 0
        %2449 = vmatpush1.bf16.msra.mxu0 0
        %2450 = vmatprep.subr.bf16.mxu0 0
        %2451 = vmatpush1.bf16.msra.mxu0 0
        %2452 = vmatprep.subr.bf16.mxu0 0
        %2453 = vmatpush1.bf16.msra.mxu0 0
        %2454 = vmatprep.subr.bf16.mxu0 0
        %2455 = vmatpush1.bf16.msra.mxu0 0
        %2456 = vmatprep.subr.bf16.mxu0 0
        %2457 = vmatpush1.bf16.msra.mxu0 0
        %2458 = vmatprep.mubr.bf16.mxu0 0
        %2459 = vmatmul.mubr.bf16.gmra.mrb[0].mxu0 %v2368
        %v2460 = vpop.f32.mrb[0].mxu0
        %v2461 = vadd.f32 %v2340, %v2460
        %v2462 = vpop.f32.mrb[0].mxu0
        %v2463 = vpop.f32.mrb[0].mxu0
        %v2464 = vadd.f32 %v2345, %v2463
        %v2465 = vpop.f32.mrb[0].mxu0
        %2466 = vmatprep.mubr.bf16.mxu0 0
        %2467 = vmatmul.mubr.bf16.gmra.mrb[0].mxu0 %v2371
        %v2468 = vpop.f32.mrb[0].mxu0
        %v2469 = vadd.f32 %v2350, %v2468
        %v2470 = vpop.f32.mrb[0].mxu0
        %v2471 = vpop.f32.mrb[0].mxu0
        %v2472 = vadd.f32 %v2355, %v2471
        %v2473 = vpop.f32.mrb[0].mxu0
        %2474 = vdwg.mxu0
        %v2475 = vmax.f32 %v2408, 0.0
        %v2476 = vmax.f32 %v2410, 0.0
        %v2477 = vmax.f32 %v2461, 0.0
        %v2478 = vmax.f32 %v2412, 0.0
        %v2479 = vmax.f32 %v2414, 0.0
        %v2480 = vmax.f32 %v2464, 0.0
        %v2481 = vmax.f32 %v2418, 0.0
        %v2482 = vmax.f32 %v2420, 0.0
        %v2483 = vmax.f32 %v2469, 0.0
        %v2484 = vmax.f32 %v2422, 0.0
        %v2485 = vmax.f32 %v2424, 0.0
        %v2486 = vmax.f32 %v2472, 0.0
        %v2487 = vmul.f32 %v2475, %v1605
        %v2488 = vmul.f32 %v2476, %v1606
        %v2489 = vmul.f32 %v2477, %v1607
        %v2490 = vmul.f32 %v2478, %v1605
        %v2491 = vmul.f32 %v2479, %v1606
        %v2492 = vmul.f32 %v2480, %v1607
        %v2493 = vmul.f32 %v2481, %v1605
        %v2494 = vmul.f32 %v2482, %v1606
        %v2495 = vmul.f32 %v2483, %v1607
        %v2496 = vmul.f32 %v2484, %v1605
        %v2497 = vmul.f32 %v2485, %v1606
        %v2498 = vmul.f32 %v2486, %v1607
        %2499 = vrot.lane.b32.xlu0 %v2487, 127
        %v2500 = vpop.permute.xlu0 %2499
        %2501 = vrot.lane.b32.xlu0 %v2490, 127
        %v2502 = vpop.permute.xlu0 %2501
        %2503 = vrot.lane.b32.xlu0 %v2493, 127
        %v2504 = vpop.permute.xlu0 %2503
        %2505 = vrot.lane.b32.xlu0 %v2496, 127
        %v2506 = vpop.permute.xlu0 %2505
        %2507 = vrot.lane.b32.xlu0 %v2488, 127
        %v2508 = vpop.permute.xlu0 %2507
        %2509 = vrot.lane.b32.xlu0 %v2491, 127
        %v2510 = vpop.permute.xlu0 %2509
        %2511 = vrot.lane.b32.xlu0 %v2494, 127
        %v2512 = vpop.permute.xlu0 %2511
        %2513 = vrot.lane.b32.xlu0 %v2497, 127
        %v2514 = vpop.permute.xlu0 %2513
        %2515 = vrot.lane.b32.xlu0 %v2489, 127
        %v2516 = vpop.permute.xlu0 %2515
        %2517 = vrot.lane.b32.xlu0 %v2492, 127
        %v2518 = vpop.permute.xlu0 %2517
        %2519 = vrot.lane.b32.xlu0 %v2495, 127
        %v2520 = vpop.permute.xlu0 %2519
        %2521 = vrot.lane.b32.xlu0 %v2498, 127
        %v2522 = vpop.permute.xlu0 %2521
        %v2523 = vsel %vm823, %v2508, %v2516
        %v2524 = vsel %vm823, %v2510, %v2518
        %v2525 = vsel %vm823, %v2512, %v2520
        %v2526 = vsel %vm823, %v2514, %v2522
        %v2527 = vsel %vm823, %v2500, %v2508
        %v2528 = vsel %vm823, %v2502, %v2510
        %v2529 = vsel %vm823, %v2504, %v2512
        %v2530 = vsel %vm823, %v2506, %v2514
        %v2531 = vpack.c.bf16 %v2490, %v2487
        %v2532 = vpack.c.bf16 %v2491, %v2488
        %v2533 = vpack.c.bf16 %v2496, %v2493
        %v2534 = vpack.c.bf16 %v2497, %v2494
        %v2535 = vpack.c.bf16 %v2528, %v2527
        %v2536 = vpack.c.bf16 %v2524, %v2523
        %v2537 = vpack.c.bf16 %v2530, %v2529
        %v2538 = vpack.c.bf16 %v2526, %v2525
        %s2539 = scalar_lea.vmem %s4, 64
        %v2540 = vld [vmem:[%s2539] sm:$0xf]
        %v2541 = vld [vmem:[%s2539 + $0x4] sm:$0xf]
        %v2542 = vld [vmem:[%s2539 + $0x8] sm:$0xf]
        %v2543 = vld [vmem:[%s2539 + $0xc] sm:$0xf]
        %s2544 = scalar_lea.vmem %s6, 192
        %v2545 = vld [vmem:[%s2544] sm:$0xff]
        %v2546 = vld [vmem:[%s2544 + $0x8] sm:$0xff]
        %v2547 = vld [vmem:[%s2544 + $0x10] sm:$0xff]
        %v2548 = vld [vmem:[%s2544 + $0x18] sm:$0xff]
        %2550 = vset.pattern.permute.xlu0 0
        %2551 = vperm.xlu0 %2550, %v2545
        %v2552 = vpop.permute.xlu0 %2551
        %2555 = vset.pattern.permute.xlu0 0
        %2556 = vperm.xlu0 %2555, %v2546
        %v2557 = vpop.permute.xlu0 %2556
        %2560 = vset.pattern.permute.xlu0 0
        %2561 = vperm.xlu0 %2560, %v2547
        %v2562 = vpop.permute.xlu0 %2561
        %2565 = vset.pattern.permute.xlu0 0
        %2566 = vperm.xlu0 %2565, %v2548
        %v2567 = vpop.permute.xlu0 %2566
        %v2573 = vunpack.c.l.b16 %v2540
        %v2574 = vunpack.c.l.b16 %v2541
        %v2575 = vunpack.c.l.b16 %v2542
        %v2576 = vunpack.c.l.b16 %v2543
        %v2577 = vpack.c.b16 %v2574, %v2573
        %v2578 = vpack.c.b16 %v2576, %v2575
        %v2580 = vsel %vm846, %v2577, 0
        %v2583 = vsel %vm846, %v2578, 0
        %2585 = vmatprep.subr.bf16.mxu0 %v2532
        %2586 = vmatpush1.bf16.msra.mxu0 %v2531
        %2587 = vmatprep.subr.bf16.mxu0 %v2534
        %2588 = vmatpush1.bf16.msra.mxu0 %v2533
        %2589 = vmatprep.subr.bf16.mxu0 %v2536
        %2590 = vmatpush1.bf16.msra.mxu0 %v2535
        %2591 = vmatprep.subr.bf16.mxu0 %v2538
        %2592 = vmatpush1.bf16.msra.mxu0 %v2537
        %2593 = vmatprep.subr.bf16.mxu0 0
        %2594 = vmatpush1.bf16.msra.mxu0 0
        %2595 = vmatprep.subr.bf16.mxu0 0
        %2596 = vmatpush1.bf16.msra.mxu0 0
        %2597 = vmatprep.subr.bf16.mxu0 0
        %2598 = vmatpush1.bf16.msra.mxu0 0
        %2599 = vmatprep.subr.bf16.mxu0 0
        %2600 = vmatpush1.bf16.msra.mxu0 0
        %2601 = vmatprep.subr.bf16.mxu0 0
        %2602 = vmatpush1.bf16.msra.mxu0 0
        %2603 = vmatprep.subr.bf16.mxu0 0
        %2604 = vmatpush1.bf16.msra.mxu0 0
        %2605 = vmatprep.subr.bf16.mxu0 0
        %2606 = vmatpush1.bf16.msra.mxu0 0
        %2607 = vmatprep.subr.bf16.mxu0 0
        %2608 = vmatpush1.bf16.msra.mxu0 0
        %2609 = vmatprep.subr.bf16.mxu0 0
        %2610 = vmatpush1.bf16.msra.mxu0 0
        %2611 = vmatprep.subr.bf16.mxu0 0
        %2612 = vmatpush1.bf16.msra.mxu0 0
        %2613 = vmatprep.subr.bf16.mxu0 0
        %2614 = vmatpush1.bf16.msra.mxu0 0
        %2615 = vmatprep.subr.bf16.mxu0 0
        %2616 = vmatpush1.bf16.msra.mxu0 0
        %2617 = vmatprep.mubr.bf16.mxu0 0
        %2618 = vmatmul.mubr.bf16.gmra.mrb[0].mxu0 %v2580
        %v2619 = vpop.f32.mrb[0].mxu0
        %v2620 = vadd.f32 %v2552, %v2619
        %v2621 = vpop.f32.mrb[0].mxu0
        %v2622 = vadd.f32 %v2552, %v2621
        %v2623 = vpop.f32.mrb[0].mxu0
        %v2624 = vadd.f32 %v2557, %v2623
        %v2625 = vpop.f32.mrb[0].mxu0
        %v2626 = vadd.f32 %v2557, %v2625
        %2627 = vmatprep.mubr.bf16.mxu0 0
        %2628 = vmatmul.mubr.bf16.gmra.mrb[0].mxu0 %v2583
        %v2629 = vpop.f32.mrb[0].mxu0
        %v2630 = vadd.f32 %v2562, %v2629
        %v2631 = vpop.f32.mrb[0].mxu0
        %v2632 = vadd.f32 %v2562, %v2631
        %v2633 = vpop.f32.mrb[0].mxu0
        %v2634 = vadd.f32 %v2567, %v2633
        %v2635 = vpop.f32.mrb[0].mxu0
        %v2636 = vadd.f32 %v2567, %v2635
        %2637 = vdwg.mxu0
        %v2638 = vmax.f32 %v2620, 0.0
        %v2639 = vmax.f32 %v2622, 0.0
        %v2640 = vmax.f32 %v2624, 0.0
        %v2641 = vmax.f32 %v2626, 0.0
        %v2642 = vmax.f32 %v2630, 0.0
        %v2643 = vmax.f32 %v2632, 0.0
        %v2644 = vmax.f32 %v2634, 0.0
        %v2645 = vmax.f32 %v2636, 0.0
        %v2646 = vld [vmem:[%s5] sm:$0xf]
        %v2647 = vld [vmem:[%s5 + $0x4] sm:$0xf]
        %v2648 = vld [vmem:[%s5 + $0x8] sm:$0xf]
        %v2649 = vld [vmem:[%s5 + $0xc] sm:$0xf]
        %v2650 = vpack.c.bf16 %v2640, %v2638
        %v2651 = vpack.c.bf16 %v2641, %v2639
        %v2652 = vpack.c.bf16 %v2644, %v2642
        %v2653 = vpack.c.bf16 %v2645, %v2643
        %s2654 = scalar_lea.vmem %s6, 224
        %v2655 = vld [vmem:[%s2654] sm:$0xff]
        %v2656 = vld [vmem:[%s2654 + $0x8] sm:$0xff]
        %v2657 = vld [vmem:[%s2654 + $0x10] sm:$0xff]
        %v2658 = vld [vmem:[%s2654 + $0x18] sm:$0xff]
        %2660 = vset.pattern.permute.xlu0 0
        %2661 = vperm.xlu0 %2660, %v2655
        %v2662 = vpop.permute.xlu0 %2661
        %2665 = vset.pattern.permute.xlu0 0
        %2666 = vperm.xlu0 %2665, %v2656
        %v2667 = vpop.permute.xlu0 %2666
        %2670 = vset.pattern.permute.xlu0 0
        %2671 = vperm.xlu0 %2670, %v2657
        %v2672 = vpop.permute.xlu0 %2671
        %2675 = vset.pattern.permute.xlu0 0
        %2676 = vperm.xlu0 %2675, %v2658
        %v2677 = vpop.permute.xlu0 %2676
        %v2683 = vunpack.c.l.b16 %v2646
        %v2684 = vunpack.c.l.b16 %v2647
        %v2685 = vunpack.c.l.b16 %v2648
        %v2686 = vunpack.c.l.b16 %v2649
        %v2687 = vpack.c.b16 %v2684, %v2683
        %v2688 = vpack.c.b16 %v2686, %v2685
        %vm2689 = vcmask 261120
        %v2691 = vsel %vm2689, %v2687, 0
        %v2694 = vsel %vm2689, %v2688, 0
        %2696 = vmatprep.subr.bf16.mxu0 %v2651
        %2697 = vmatpush1.bf16.msra.mxu0 %v2650
        %2698 = vmatprep.subr.bf16.mxu0 %v2653
        %2699 = vmatpush1.bf16.msra.mxu0 %v2652
        %2700 = vmatprep.subr.bf16.mxu0 0
        %2701 = vmatpush1.bf16.msra.mxu0 0
        %2702 = vmatprep.subr.bf16.mxu0 0
        %2703 = vmatpush1.bf16.msra.mxu0 0
        %2704 = vmatprep.subr.bf16.mxu0 0
        %2705 = vmatpush1.bf16.msra.mxu0 0
        %2706 = vmatprep.subr.bf16.mxu0 0
        %2707 = vmatpush1.bf16.msra.mxu0 0
        %2708 = vmatprep.subr.bf16.mxu0 0
        %2709 = vmatpush1.bf16.msra.mxu0 0
        %2710 = vmatprep.subr.bf16.mxu0 0
        %2711 = vmatpush1.bf16.msra.mxu0 0
        %2712 = vmatprep.subr.bf16.mxu0 0
        %2713 = vmatpush1.bf16.msra.mxu0 0
        %2714 = vmatprep.subr.bf16.mxu0 0
        %2715 = vmatpush1.bf16.msra.mxu0 0
        %2716 = vmatprep.subr.bf16.mxu0 0
        %2717 = vmatpush1.bf16.msra.mxu0 0
        %2718 = vmatprep.subr.bf16.mxu0 0
        %2719 = vmatpush1.bf16.msra.mxu0 0
        %2720 = vmatprep.subr.bf16.mxu0 0
        %2721 = vmatpush1.bf16.msra.mxu0 0
        %2722 = vmatprep.subr.bf16.mxu0 0
        %2723 = vmatpush1.bf16.msra.mxu0 0
        %2724 = vmatprep.subr.bf16.mxu0 0
        %2725 = vmatpush1.bf16.msra.mxu0 0
        %2726 = vmatprep.subr.bf16.mxu0 0
        %2727 = vmatpush1.bf16.msra.mxu0 0
        %2728 = vmatprep.mubr.bf16.mxu0 0
        %2729 = vmatmul.mubr.bf16.gmra.mrb[0].mxu0 %v2691
        %v2730 = vpop.f32.mrb[0].mxu0
        %v2731 = vadd.f32 %v2662, %v2730
        %v2732 = vpop.f32.mrb[0].mxu0
        %v2733 = vadd.f32 %v2662, %v2732
        %v2734 = vpop.f32.mrb[0].mxu0
        %v2735 = vadd.f32 %v2667, %v2734
        %v2736 = vpop.f32.mrb[0].mxu0
        %v2737 = vadd.f32 %v2667, %v2736
        %2738 = vmatprep.mubr.bf16.mxu0 0
        %2739 = vmatmul.mubr.bf16.gmra.mrb[0].mxu0 %v2694
        %v2740 = vpop.f32.mrb[0].mxu0
        %v2741 = vadd.f32 %v2672, %v2740
        %v2742 = vpop.f32.mrb[0].mxu0
        %v2743 = vadd.f32 %v2672, %v2742
        %v2744 = vpop.f32.mrb[0].mxu0
        %v2745 = vadd.f32 %v2677, %v2744
        %v2746 = vpop.f32.mrb[0].mxu0
        %v2747 = vadd.f32 %v2677, %v2746
        %2748 = vdwg.mxu0
        %v2749 = vadd.f32 %v2731, %v2735
        %v2750 = vadd.f32 %v2749, %v2741
        %v2751 = vadd.f32 %v2750, %v2745
        %v2752 = vrot.slane %v2751, 4
        %v2753 = vadd.f32 %v2751, %v2752
        %v2754 = vrot.slane %v2753, 2
        %v2755 = vadd.f32 %v2753, %v2754
        %v2756 = vrot.slane %v2755, 1
        %v2757 = vadd.f32 %v2755, %v2756
        %v2758 = vadd.f32 %v2733, %v2737
        %v2759 = vadd.f32 %v2758, %v2743
        %v2760 = vadd.f32 %v2759, %v2747
        %v2761 = vrot.slane %v2760, 4
        %v2762 = vadd.f32 %v2760, %v2761
        %v2763 = vrot.slane %v2762, 2
        %v2764 = vadd.f32 %v2762, %v2763
        %v2765 = vrot.slane %v2764, 1
        %v2766 = vadd.f32 %v2764, %v2765
        %v2767 = vmul.f32 %v2757, 0.03125
        %v2768 = vmul.f32 %v2766, 0.03125
        %v2769 = vmul.f32 %v2731, %v2731
        %v2770 = vmul.f32 %v2733, %v2733
        %v2771 = vmul.f32 %v2735, %v2735
        %v2772 = vmul.f32 %v2737, %v2737
        %v2773 = vmul.f32 %v2741, %v2741
        %v2774 = vmul.f32 %v2743, %v2743
        %v2775 = vmul.f32 %v2745, %v2745
        %v2776 = vmul.f32 %v2747, %v2747
        %v2777 = vadd.f32 %v2769, %v2771
        %v2778 = vadd.f32 %v2777, %v2773
        %v2779 = vadd.f32 %v2778, %v2775
        %v2780 = vrot.slane %v2779, 4
        %v2781 = vadd.f32 %v2779, %v2780
        %v2782 = vrot.slane %v2781, 2
        %v2783 = vadd.f32 %v2781, %v2782
        %v2784 = vrot.slane %v2783, 1
        %v2785 = vadd.f32 %v2783, %v2784
        %v2786 = vadd.f32 %v2770, %v2772
        %v2787 = vadd.f32 %v2786, %v2774
        %v2788 = vadd.f32 %v2787, %v2776
        %v2789 = vrot.slane %v2788, 4
        %v2790 = vadd.f32 %v2788, %v2789
        %v2791 = vrot.slane %v2790, 2
        %v2792 = vadd.f32 %v2790, %v2791
        %v2793 = vrot.slane %v2792, 1
        %v2794 = vadd.f32 %v2792, %v2793
        %v2795 = vmul.f32 %v2785, 0.03125
        %v2796 = vmul.f32 %v2794, 0.03125
        %v2797 = vsub.f32 %v2731, %v2767
        %v2798 = vsub.f32 %v2733, %v2768
        %v2799 = vsub.f32 %v2735, %v2767
        %v2800 = vsub.f32 %v2737, %v2768
        %v2801 = vsub.f32 %v2741, %v2767
        %v2802 = vsub.f32 %v2743, %v2768
        %v2803 = vsub.f32 %v2745, %v2767
        %v2804 = vsub.f32 %v2747, %v2768
        %v2805 = vmul.f32 %v2767, %v2767
        %v2806 = vmul.f32 %v2768, %v2768
        %v2807 = vsub.f32 %v2795, %v2805
        %v2808 = vsub.f32 %v2796, %v2806
        %v2809 = vadd.f32 %v2807, 1e-05
        %v2810 = vadd.f32 %v2808, 1e-05
        %v2811 = vrsqrt.pop %v2809
        %v2812 = vrsqrt.pop %v2810
        %v2813 = vmul.f32 %v2797, %v2811
        %v2814 = vmul.f32 %v2798, %v2812
        %v2815 = vmul.f32 %v2799, %v2811
        %v2816 = vmul.f32 %v2800, %v2812
        %v2817 = vmul.f32 %v2801, %v2811
        %v2818 = vmul.f32 %v2802, %v2812
        %v2819 = vmul.f32 %v2803, %v2811
        %v2820 = vmul.f32 %v2804, %v2812
        %s2821 = scalar_lea.vmem %s6, 288
        %v2822 = vld [vmem:[%s2821] sm:$0xff]
        %v2823 = vld [vmem:[%s2821 + $0x8] sm:$0xff]
        %v2824 = vld [vmem:[%s2821 + $0x10] sm:$0xff]
        %v2825 = vld [vmem:[%s2821 + $0x18] sm:$0xff]
        %2827 = vset.pattern.permute.xlu0 0
        %2828 = vperm.xlu0 %2827, %v2822
        %v2829 = vpop.permute.xlu0 %2828
        %2832 = vset.pattern.permute.xlu0 0
        %2833 = vperm.xlu0 %2832, %v2823
        %v2834 = vpop.permute.xlu0 %2833
        %2837 = vset.pattern.permute.xlu0 0
        %2838 = vperm.xlu0 %2837, %v2824
        %v2839 = vpop.permute.xlu0 %2838
        %2842 = vset.pattern.permute.xlu0 0
        %2843 = vperm.xlu0 %2842, %v2825
        %v2844 = vpop.permute.xlu0 %2843
        %v2846 = vmul.f32 %v2813, %v2829
        %v2847 = vmul.f32 %v2814, %v2829
        %v2848 = vmul.f32 %v2815, %v2834
        %v2849 = vmul.f32 %v2816, %v2834
        %v2850 = vmul.f32 %v2817, %v2839
        %v2851 = vmul.f32 %v2818, %v2839
        %v2852 = vmul.f32 %v2819, %v2844
        %v2853 = vmul.f32 %v2820, %v2844
        %s2854 = scalar_lea.vmem %s6, 352
        %v2855 = vld [vmem:[%s2854] sm:$0xff]
        %v2856 = vld [vmem:[%s2854 + $0x8] sm:$0xff]
        %v2857 = vld [vmem:[%s2854 + $0x10] sm:$0xff]
        %v2858 = vld [vmem:[%s2854 + $0x18] sm:$0xff]
        %2860 = vset.pattern.permute.xlu0 0
        %2861 = vperm.xlu0 %2860, %v2855
        %v2862 = vpop.permute.xlu0 %2861
        %2865 = vset.pattern.permute.xlu0 0
        %2866 = vperm.xlu0 %2865, %v2856
        %v2867 = vpop.permute.xlu0 %2866
        %2870 = vset.pattern.permute.xlu0 0
        %2871 = vperm.xlu0 %2870, %v2857
        %v2872 = vpop.permute.xlu0 %2871
        %2875 = vset.pattern.permute.xlu0 0
        %2876 = vperm.xlu0 %2875, %v2858
        %v2877 = vpop.permute.xlu0 %2876
        %v2879 = vadd.f32 %v2846, %v2862
        %v2880 = vadd.f32 %v2847, %v2862
        %v2881 = vadd.f32 %v2848, %v2867
        %v2882 = vadd.f32 %v2849, %v2867
        %v2883 = vadd.f32 %v2850, %v2872
        %v2884 = vadd.f32 %v2851, %v2872
        %v2885 = vadd.f32 %v2852, %v2877
        %v2886 = vadd.f32 %v2853, %v2877
        %v2887 = vmax.f32 %v2879, 0.0
        %v2888 = vmax.f32 %v2880, 0.0
        %v2889 = vmax.f32 %v2881, 0.0
        %v2890 = vmax.f32 %v2882, 0.0
        %v2891 = vmax.f32 %v2883, 0.0
        %v2892 = vmax.f32 %v2884, 0.0
        %v2893 = vmax.f32 %v2885, 0.0
        %v2894 = vmax.f32 %v2886, 0.0
        %s2895 = scalar_lea.vmem %s5, 16
        %v2896 = vld [vmem:[%s2895] sm:$0xf]
        %v2897 = vld [vmem:[%s2895 + $0x4] sm:$0xf]
        %v2898 = vld [vmem:[%s2895 + $0x8] sm:$0xf]
        %v2899 = vld [vmem:[%s2895 + $0xc] sm:$0xf]
        %v2900 = vpack.c.bf16 %v2889, %v2887
        %v2901 = vpack.c.bf16 %v2890, %v2888
        %v2902 = vpack.c.bf16 %v2893, %v2891
        %v2903 = vpack.c.bf16 %v2894, %v2892
        %s2904 = scalar_lea.vmem %s6, 256
        %v2905 = vld [vmem:[%s2904] sm:$0xff]
        %v2906 = vld [vmem:[%s2904 + $0x8] sm:$0xff]
        %v2907 = vld [vmem:[%s2904 + $0x10] sm:$0xff]
        %v2908 = vld [vmem:[%s2904 + $0x18] sm:$0xff]
        %2910 = vset.pattern.permute.xlu0 0
        %2911 = vperm.xlu0 %2910, %v2905
        %v2912 = vpop.permute.xlu0 %2911
        %2915 = vset.pattern.permute.xlu0 0
        %2916 = vperm.xlu0 %2915, %v2906
        %v2917 = vpop.permute.xlu0 %2916
        %2920 = vset.pattern.permute.xlu0 0
        %2921 = vperm.xlu0 %2920, %v2907
        %v2922 = vpop.permute.xlu0 %2921
        %2925 = vset.pattern.permute.xlu0 0
        %2926 = vperm.xlu0 %2925, %v2908
        %v2927 = vpop.permute.xlu0 %2926
        %v2933 = vunpack.c.l.b16 %v2896
        %v2934 = vunpack.c.l.b16 %v2897
        %v2935 = vunpack.c.l.b16 %v2898
        %v2936 = vunpack.c.l.b16 %v2899
        %v2937 = vpack.c.b16 %v2934, %v2933
        %v2938 = vpack.c.b16 %v2936, %v2935
        %v2940 = vsel %vm2689, %v2937, 0
        %v2943 = vsel %vm2689, %v2938, 0
        %2945 = vmatprep.subr.bf16.mxu0 %v2901
        %2946 = vmatpush1.bf16.msra.mxu0 %v2900
        %2947 = vmatprep.subr.bf16.mxu0 %v2903
        %2948 = vmatpush1.bf16.msra.mxu0 %v2902
        %2949 = vmatprep.subr.bf16.mxu0 0
        %2950 = vmatpush1.bf16.msra.mxu0 0
        %2951 = vmatprep.subr.bf16.mxu0 0
        %2952 = vmatpush1.bf16.msra.mxu0 0
        %2953 = vmatprep.subr.bf16.mxu0 0
        %2954 = vmatpush1.bf16.msra.mxu0 0
        %2955 = vmatprep.subr.bf16.mxu0 0
        %2956 = vmatpush1.bf16.msra.mxu0 0
        %2957 = vmatprep.subr.bf16.mxu0 0
        %2958 = vmatpush1.bf16.msra.mxu0 0
        %2959 = vmatprep.subr.bf16.mxu0 0
        %2960 = vmatpush1.bf16.msra.mxu0 0
        %2961 = vmatprep.subr.bf16.mxu0 0
        %2962 = vmatpush1.bf16.msra.mxu0 0
        %2963 = vmatprep.subr.bf16.mxu0 0
        %2964 = vmatpush1.bf16.msra.mxu0 0
        %2965 = vmatprep.subr.bf16.mxu0 0
        %2966 = vmatpush1.bf16.msra.mxu0 0
        %2967 = vmatprep.subr.bf16.mxu0 0
        %2968 = vmatpush1.bf16.msra.mxu0 0
        %2969 = vmatprep.subr.bf16.mxu0 0
        %2970 = vmatpush1.bf16.msra.mxu0 0
        %2971 = vmatprep.subr.bf16.mxu0 0
        %2972 = vmatpush1.bf16.msra.mxu0 0
        %2973 = vmatprep.subr.bf16.mxu0 0
        %2974 = vmatpush1.bf16.msra.mxu0 0
        %2975 = vmatprep.subr.bf16.mxu0 0
        %2976 = vmatpush1.bf16.msra.mxu0 0
        %2977 = vmatprep.mubr.bf16.mxu0 0
        %2978 = vmatmul.mubr.bf16.gmra.mrb[0].mxu0 %v2940
        %v2979 = vpop.f32.mrb[0].mxu0
        %v2980 = vadd.f32 %v2912, %v2979
        %v2981 = vpop.f32.mrb[0].mxu0
        %v2982 = vadd.f32 %v2912, %v2981
        %v2983 = vpop.f32.mrb[0].mxu0
        %v2984 = vadd.f32 %v2917, %v2983
        %v2985 = vpop.f32.mrb[0].mxu0
        %v2986 = vadd.f32 %v2917, %v2985
        %2987 = vmatprep.mubr.bf16.mxu0 0
        %2988 = vmatmul.mubr.bf16.gmra.mrb[0].mxu0 %v2943
        %v2989 = vpop.f32.mrb[0].mxu0
        %v2990 = vadd.f32 %v2922, %v2989
        %v2991 = vpop.f32.mrb[0].mxu0
        %v2992 = vadd.f32 %v2922, %v2991
        %v2993 = vpop.f32.mrb[0].mxu0
        %v2994 = vadd.f32 %v2927, %v2993
        %v2995 = vpop.f32.mrb[0].mxu0
        %v2996 = vadd.f32 %v2927, %v2995
        %2997 = vdwg.mxu0
        %v2998 = vadd.f32 %v2980, %v2984
        %v2999 = vadd.f32 %v2998, %v2990
        %v3000 = vadd.f32 %v2999, %v2994
        %v3001 = vrot.slane %v3000, 4
        %v3002 = vadd.f32 %v3000, %v3001
        %v3003 = vrot.slane %v3002, 2
        %v3004 = vadd.f32 %v3002, %v3003
        %v3005 = vrot.slane %v3004, 1
        %v3006 = vadd.f32 %v3004, %v3005
        %v3007 = vadd.f32 %v2982, %v2986
        %v3008 = vadd.f32 %v3007, %v2992
        %v3009 = vadd.f32 %v3008, %v2996
        %v3010 = vrot.slane %v3009, 4
        %v3011 = vadd.f32 %v3009, %v3010
        %v3012 = vrot.slane %v3011, 2
        %v3013 = vadd.f32 %v3011, %v3012
        %v3014 = vrot.slane %v3013, 1
        %v3015 = vadd.f32 %v3013, %v3014
        %v3016 = vmul.f32 %v3006, 0.03125
        %v3017 = vmul.f32 %v3015, 0.03125
        %v3018 = vmul.f32 %v2980, %v2980
        %v3019 = vmul.f32 %v2982, %v2982
        %v3020 = vmul.f32 %v2984, %v2984
        %v3021 = vmul.f32 %v2986, %v2986
        %v3022 = vmul.f32 %v2990, %v2990
        %v3023 = vmul.f32 %v2992, %v2992
        %v3024 = vmul.f32 %v2994, %v2994
        %v3025 = vmul.f32 %v2996, %v2996
        %v3026 = vadd.f32 %v3018, %v3020
        %v3027 = vadd.f32 %v3026, %v3022
        %v3028 = vadd.f32 %v3027, %v3024
        %v3029 = vrot.slane %v3028, 4
        %v3030 = vadd.f32 %v3028, %v3029
        %v3031 = vrot.slane %v3030, 2
        %v3032 = vadd.f32 %v3030, %v3031
        %v3033 = vrot.slane %v3032, 1
        %v3034 = vadd.f32 %v3032, %v3033
        %v3035 = vadd.f32 %v3019, %v3021
        %v3036 = vadd.f32 %v3035, %v3023
        %v3037 = vadd.f32 %v3036, %v3025
        %v3038 = vrot.slane %v3037, 4
        %v3039 = vadd.f32 %v3037, %v3038
        %v3040 = vrot.slane %v3039, 2
        %v3041 = vadd.f32 %v3039, %v3040
        %v3042 = vrot.slane %v3041, 1
        %v3043 = vadd.f32 %v3041, %v3042
        %v3044 = vmul.f32 %v3034, 0.03125
        %v3045 = vmul.f32 %v3043, 0.03125
        %v3046 = vsub.f32 %v2980, %v3016
        %v3047 = vsub.f32 %v2982, %v3017
        %v3048 = vsub.f32 %v2984, %v3016
        %v3049 = vsub.f32 %v2986, %v3017
        %v3050 = vsub.f32 %v2990, %v3016
        %v3051 = vsub.f32 %v2992, %v3017
        %v3052 = vsub.f32 %v2994, %v3016
        %v3053 = vsub.f32 %v2996, %v3017
        %v3054 = vmul.f32 %v3016, %v3016
        %v3055 = vmul.f32 %v3017, %v3017
        %v3056 = vsub.f32 %v3044, %v3054
        %v3057 = vsub.f32 %v3045, %v3055
        %v3058 = vadd.f32 %v3056, 1e-05
        %v3059 = vadd.f32 %v3057, 1e-05
        %v3060 = vrsqrt.pop %v3058
        %v3061 = vrsqrt.pop %v3059
        %v3062 = vmul.f32 %v3046, %v3060
        %v3063 = vmul.f32 %v3047, %v3061
        %v3064 = vmul.f32 %v3048, %v3060
        %v3065 = vmul.f32 %v3049, %v3061
        %v3066 = vmul.f32 %v3050, %v3060
        %v3067 = vmul.f32 %v3051, %v3061
        %v3068 = vmul.f32 %v3052, %v3060
        %v3069 = vmul.f32 %v3053, %v3061
        %s3070 = scalar_lea.vmem %s6, 320
        %v3071 = vld [vmem:[%s3070] sm:$0xff]
        %v3072 = vld [vmem:[%s3070 + $0x8] sm:$0xff]
        %v3073 = vld [vmem:[%s3070 + $0x10] sm:$0xff]
        %v3074 = vld [vmem:[%s3070 + $0x18] sm:$0xff]
        %3076 = vset.pattern.permute.xlu0 0
        %3077 = vperm.xlu0 %3076, %v3071
        %v3078 = vpop.permute.xlu0 %3077
        %3081 = vset.pattern.permute.xlu0 0
        %3082 = vperm.xlu0 %3081, %v3072
        %v3083 = vpop.permute.xlu0 %3082
        %3086 = vset.pattern.permute.xlu0 0
        %3087 = vperm.xlu0 %3086, %v3073
        %v3088 = vpop.permute.xlu0 %3087
        %3091 = vset.pattern.permute.xlu0 0
        %3092 = vperm.xlu0 %3091, %v3074
        %v3093 = vpop.permute.xlu0 %3092
        %v3095 = vmul.f32 %v3062, %v3078
        %v3096 = vmul.f32 %v3063, %v3078
        %v3097 = vmul.f32 %v3064, %v3083
        %v3098 = vmul.f32 %v3065, %v3083
        %v3099 = vmul.f32 %v3066, %v3088
        %v3100 = vmul.f32 %v3067, %v3088
        %v3101 = vmul.f32 %v3068, %v3093
        %v3102 = vmul.f32 %v3069, %v3093
        %s3103 = scalar_lea.vmem %s6, 384
        %v3104 = vld [vmem:[%s3103] sm:$0xff]
        %v3105 = vld [vmem:[%s3103 + $0x8] sm:$0xff]
        %v3106 = vld [vmem:[%s3103 + $0x10] sm:$0xff]
        %v3107 = vld [vmem:[%s3103 + $0x18] sm:$0xff]
        %3109 = vset.pattern.permute.xlu0 0
        %3110 = vperm.xlu0 %3109, %v3104
        %v3111 = vpop.permute.xlu0 %3110
        %3114 = vset.pattern.permute.xlu0 0
        %3115 = vperm.xlu0 %3114, %v3105
        %v3116 = vpop.permute.xlu0 %3115
        %3119 = vset.pattern.permute.xlu0 0
        %3120 = vperm.xlu0 %3119, %v3106
        %v3121 = vpop.permute.xlu0 %3120
        %3124 = vset.pattern.permute.xlu0 0
        %3125 = vperm.xlu0 %3124, %v3107
        %v3126 = vpop.permute.xlu0 %3125
        %v3128 = vadd.f32 %v3095, %v3111
        %v3129 = vadd.f32 %v3096, %v3111
        %v3130 = vadd.f32 %v3097, %v3116
        %v3131 = vadd.f32 %v3098, %v3116
        %v3132 = vadd.f32 %v3099, %v3121
        %v3133 = vadd.f32 %v3100, %v3121
        %v3134 = vadd.f32 %v3101, %v3126
        %v3135 = vadd.f32 %v3102, %v3126
        %v3136 = vmax.f32 %v3128, 0.0
        %v3137 = vmax.f32 %v3129, 0.0
        %v3138 = vmax.f32 %v3130, 0.0
        %v3139 = vmax.f32 %v3131, 0.0
        %v3140 = vmax.f32 %v3132, 0.0
        %v3141 = vmax.f32 %v3133, 0.0
        %v3142 = vmax.f32 %v3134, 0.0
        %v3143 = vmax.f32 %v3135, 0.0
        %3144 = vst [vmem:[%s776] sm:$0xff] %v3136
        %3145 = vst [vmem:[%s776 + $0x8] sm:$0xff] %v3137
        %3146 = vst [vmem:[%s776 + $0x10] sm:$0xff] %v3138
        %3147 = vst [vmem:[%s776 + $0x18] sm:$0xff] %v3139
        %3148 = vst [vmem:[%s776 + $0x20] sm:$0xff] %v3140
        %3149 = vst [vmem:[%s776 + $0x28] sm:$0xff] %v3141
        %3150 = vst [vmem:[%s776 + $0x30] sm:$0xff] %v3142
        %3151 = vst [vmem:[%s776 + $0x38] sm:$0xff] %v3143
        %s3152 = sand.u32 %s211, 1
        %s3153 = scalar_lea.sflag [#allocation5], %s3152
        %s3154 = sand.u32 %s211, 1
        %s3155 = smul.addr %s3154, 64
        %s3156 = scalar_lea.vmem [#allocation6], %s3155
        // Predicated region
        $region119: #{tpu_custom_call.1} parent=109 // pred_check
          %p3157 = pneg %p221
        $region120: #{tpu_custom_call.1} parent=109 // pred_check_branch
          %3159 = sbr.rel (%p3157) target = $region122
        $region121: #{tpu_custom_call.1} parent=109 // pred_region
          %s3161 = ssub.s32 1024, 1024
          %3162 = vsyncadd %s3153, %s3161
          %s3163 = smul.addr %s29, 8
          %s3164 = smul.addr %s28, 16
          %s3165 = sadd.s32 %s3163, %s3164
          %s3166 = smul.addr %s3165, 128
          %s3167 = scalar_lea.hbm %s7, %s3166
          %s3168 = sshll.u32 %s3156, 4
          %s3169 = int_to_ptr.vmem [resolvable:$true] %s3168
          %3174 = dma.vmem_to_hbm [thread:$0]  %s3169, 1024, %s3167, %s3153, 256, 256, 16
        $region122: #{tpu_custom_call.1} parent=109 // pred_fallthru
          _
      $region110: #{tpu_custom_call.1} parent=5 // pred_fallthru
        _
      %p3175 = scmp.le.s32.totalorder 2, %s19
      // Predicated region
      $region123: #{tpu_custom_call.1} parent=5 // pred_check
        %p3176 = pneg %p3175
      $region124: #{tpu_custom_call.1} parent=5 // pred_check_branch
        %3178 = sbr.rel (%p3176) target = $region126
      $region125: #{tpu_custom_call.1} parent=5 // pred_region
        %s3179 = ssub.s32 %s19, 2
        // Predicated region
        $region127: #{tpu_custom_call.1} parent=125 // pred_check
          %p3180 = pneg %p227
        $region128: #{tpu_custom_call.1} parent=125 // pred_check_branch
          %3182 = sbr.rel (%p3180) target = $region130
        $region129: #{tpu_custom_call.1} parent=125 // pred_region
          %s3183 = sand.u32 %s212, 1
          %s3184 = scalar_lea.sflag [#allocation5], %s3183
          %s3185 = sand.u32 %s212, 1
          %s3186 = smul.addr %s3185, 64
          %s3187 = scalar_lea.vmem [#allocation6], %s3186
          %3188 = dma.done %s3184, 1024
        $region130: #{tpu_custom_call.1} parent=125 // pred_fallthru
          _
      $region126: #{tpu_custom_call.1} parent=5 // pred_fallthru
        _
    $region6: #{tpu_custom_call.1} parent=1 // loop_footer
      %s23 = sadd.s32 1, %s19
    $region7: #{tpu_custom_call.1} parent=1 // loop_footer_branch
      %18 = sbr.rel target = $region3
    $region8: #{tpu_custom_call.1} parent=1 // loop_exit
      _
    %3189 = vsyncpa [#allocation4], 1
    %s3190 = scalar_lea.sflag [#allocation4], 1
    %3191 = vsyncpa %s3190, 1
    %3192 = vsyncpa [#allocation5], 1
    %s3193 = scalar_lea.sflag [#allocation5], 1
    %3194 = vsyncpa %s3193, 1

</llo_original>
